<compile_context>
chip_gen: v6e
topology: v6e:2x2x1
jax: 0.10.0
libtpu: 0.0.40
codegen_flags: <defaults>
</compile_context>

<pallas_src>
import functools

import jax
import jax.numpy as jnp
from jax import lax
from jax.experimental import pallas as pl
from jax.experimental.pallas import tpu as pltpu


# -----------------------------------------------------------------------------
# Hoisted input projection: gx = sum_i x_i @ W_i + b  (one big MXU matmul per
# layer; two summed terms let layer 2 consume the previous bi-LSTM's (fwd, bwd)
# planes without materialising the feature concat in HBM).
# -----------------------------------------------------------------------------
def _proj_kernel(*refs, n_terms):
    b_ref = refs[2 * n_terms]
    out_ref = refs[2 * n_terms + 1]
    acc = jnp.dot(refs[0][...].astype(jnp.bfloat16), refs[1][...],
                  preferred_element_type=jnp.float32)
    for i in range(1, n_terms):
        acc = acc + jnp.dot(refs[2 * i][...].astype(jnp.bfloat16),
                            refs[2 * i + 1][...],
                            preferred_element_type=jnp.float32)
    out_ref[...] = acc + b_ref[...]


def input_projection(terms, bias, *, bm=512):
    """terms: list of (x_2d (M, K_i) f32, w (K_i, N) bf16) -> (M, N) f32."""
    M = terms[0][0].shape[0]
    N = bias.shape[1]
    bm = min(bm, M)
    while M % bm:                      # M is a multiple of 8 (batch is padded)
        bm -= 8
    in_specs, args = [], []
    for x, w in terms:
        K = x.shape[1]
        in_specs.append(pl.BlockSpec((bm, K), lambda i: (i, 0)))
        in_specs.append(pl.BlockSpec((K, N), lambda i: (0, 0)))
        args += [x, w]
    in_specs.append(pl.BlockSpec((1, N), lambda i: (0, 0)))
    args.append(bias)
    return pl.pallas_call(
        functools.partial(_proj_kernel, n_terms=len(terms)),
        out_shape=jax.ShapeDtypeStruct((M, N), jnp.float32),
        grid_spec=pltpu.PrefetchScalarGridSpec(
            num_scalar_prefetch=0,
            grid=(M // bm,),
            in_specs=in_specs,
            out_specs=pl.BlockSpec((bm, N), lambda i: (i, 0)),
        ),
        compiler_params=pltpu.CompilerParams(dimension_semantics=("parallel",)),
    )(*args)


# -----------------------------------------------------------------------------
# Fused bidirectional recurrence. Grid = (direction, time_chunk); direction is
# "parallel" (independent fwd/bwd state), time is "arbitrary" (state carried in
# VMEM scratch across chunks). Only h @ W_hh runs inside the loop; the x
# projection is already folded into gx.
# -----------------------------------------------------------------------------
def _bilstm_rec_kernel(gx_ref, whh_ref, h_out_ref, h_sc, c_sc, *, hidden, t_chunk):
    d = pl.program_id(0)               # 0 = forward, 1 = backward

    @pl.when(pl.program_id(1) == 0)
    def _():
        h_sc[...] = jnp.zeros_like(h_sc)
        c_sc[...] = jnp.zeros_like(c_sc)

    H = hidden
    whh = whh_ref[...]                 # (H, 4H) bf16, resident for the chunk

    def step(s, carry):
        h, c = carry
        # forward walks the chunk 0..t_chunk-1; backward walks it back-to-front
        t = d * (t_chunk - 1 - s) + (1 - d) * s
        gates = gx_ref[t] + jnp.dot(h.astype(jnp.bfloat16), whh,
                                    preferred_element_type=jnp.float32)
        # PyTorch gate order i, f, g, o. (For production H >= 128 these slices
        # are lane-aligned; at H=32 they are masked lane ops — small-demo only.)
        i = jax.nn.sigmoid(gates[:, 0 * H:1 * H])
        f = jax.nn.sigmoid(gates[:, 1 * H:2 * H])
        g = jnp.tanh(gates[:, 2 * H:3 * H])
        o = jax.nn.sigmoid(gates[:, 3 * H:4 * H])
        c_new = f * c + i * g
        h_new = o * jnp.tanh(c_new)
        h_out_ref[t] = h_new
        return h_new, c_new

    h_fin, c_fin = lax.fori_loop(0, t_chunk, step, (h_sc[...], c_sc[...]),
                                 unroll=True)
    h_sc[...] = h_fin
    c_sc[...] = c_fin


def bilstm_recurrence(gx, whh, *, hidden, t_chunk):
    """gx: (T, Bp, 8H) f32 (fwd gates in cols [0,4H), bwd in [4H,8H)).
    whh: (2, H, 4H) bf16. Returns (2, T, Bp, H) f32 (plane 0 = fwd, 1 = bwd)."""
    T, Bp, _ = gx.shape
    H = hidden
    C = T // t_chunk

    def gx_map(d, c):
        tb = d * (C - 1 - c) + (1 - d) * c   # backward visits chunks in reverse
        return (tb, 0, d)

    def out_map(d, c):
        tb = d * (C - 1 - c) + (1 - d) * c
        return (d, tb, 0, 0)

    return pl.pallas_call(
        functools.partial(_bilstm_rec_kernel, hidden=H, t_chunk=t_chunk),
        out_shape=jax.ShapeDtypeStruct((2, T, Bp, H), jnp.float32),
        grid_spec=pltpu.PrefetchScalarGridSpec(
            num_scalar_prefetch=0,
            grid=(2, C),
            in_specs=[
                pl.BlockSpec((t_chunk, Bp, 4 * H), gx_map),
                pl.BlockSpec((None, H, 4 * H), lambda d, c: (d, 0, 0)),
            ],
            out_specs=pl.BlockSpec((None, t_chunk, Bp, H), out_map),
            scratch_shapes=[
                pltpu.VMEM((Bp, H), jnp.float32),   # h state (per core/direction)
                pltpu.VMEM((Bp, H), jnp.float32),   # c state
            ],
        ),
        compiler_params=pltpu.CompilerParams(
            dimension_semantics=("parallel", "arbitrary")),
        # NOTE: at production H, also tile the 4H output dim and set
        # vmem_limit_bytes explicitly (v7x has 64 MiB physical VMEM).
    )(gx, whh)


def bilstm_layer(x, p, hidden, *, from_bidir):
    """x: (T, Bp, Din) f32, or (2, T, Bp, H) f32 when fed by a previous bi-LSTM."""
    if from_bidir:
        _, T, Bp, Hin = x.shape
        w = p["w_in"]                                   # (2*Hin, 8H) bf16
        terms = [(x[0].reshape(T * Bp, Hin), w[:Hin]),
                 (x[1].reshape(T * Bp, Hin), w[Hin:])]
    else:
        T, Bp, Din = x.shape
        terms = [(x.reshape(T * Bp, Din), p["w_in"])]
    gx = input_projection(terms, p["b_in"])             # (T*Bp, 8H) f32
    gx = gx.reshape(T, Bp, 8 * hidden)
    t_chunk = next(c for c in (32, 16, 8, 4, 2, 1) if T % c == 0)
    return bilstm_recurrence(gx, p["whh"], hidden=hidden, t_chunk=t_chunk)


# -----------------------------------------------------------------------------
# Attention pooling + fc1 + BN(eval) + ReLU + fc2 + softmax, fused in one kernel
# with T folded into the matmul M dimension and a B-tiled grid.
# -----------------------------------------------------------------------------
def _head_kernel(h_ref, aw1f_ref, aw1b_ref, ab1_ref, aw2_ref, ab2_ref,
                 fc1wf_ref, fc1wb_ref, fc1b_ref,
                 gamma_ref, beta_ref, rmean_ref, rvar_ref,
                 fc2w_ref, fc2b_ref, out_ref):
    hf = h_ref[0]                      # (T, Bb, H) forward hidden states
    hb = h_ref[1]                      # (T, Bb, H) backward hidden states
    T, Bb, H = hf.shape
    Hh = aw1f_ref.shape[1]

    # attention Linear(2H,H): T folded into M; fwd/bwd concat as two matmuls.
    hf2 = hf.reshape(T * Bb, H)
    hb2 = hb.reshape(T * Bb, H)
    a1 = jnp.tanh(
        jnp.dot(hf2.astype(jnp.bfloat16), aw1f_ref[...],
                preferred_element_type=jnp.float32)
        + jnp.dot(hb2.astype(jnp.bfloat16), aw1b_ref[...],
                  preferred_element_type=jnp.float32)
        + ab1_ref[...])                                  # (T*Bb, Hh)
    a1 = a1.reshape(T, Bb, Hh)

    # attention Linear(H,1) as an elementwise mul + lane reduction (avoids N=1 matmul)
    scores = jnp.sum(a1 * aw2_ref[...], axis=-1, keepdims=True) + ab2_ref[...]
    # softmax over the time axis (torch dim=1 on the batch-first tensor)
    scores = scores - jnp.max(scores, axis=0, keepdims=True)
    e = jnp.exp(scores)
    attn = e * pl.reciprocal(jnp.sum(e, axis=0, keepdims=True), approx=True)

    ctx_f = jnp.sum(attn * hf, axis=0)                   # (Bb, H)
    ctx_b = jnp.sum(attn * hb, axis=0)                   # (Bb, H)

    # fc1 + BatchNorm1d (eval: running stats) + ReLU.
    # TODO(synk): nn.Dropout has no eval-mode effect, so it is the identity here.
    y = (jnp.dot(ctx_f.astype(jnp.bfloat16), fc1wf_ref[...],
                 preferred_element_type=jnp.float32)
         + jnp.dot(ctx_b.astype(jnp.bfloat16), fc1wb_ref[...],
                   preferred_element_type=jnp.float32)
         + fc1b_ref[...])
    y = (y - rmean_ref[...]) * lax.rsqrt(rvar_ref[...] + 1e-5) * gamma_ref[...] + beta_ref[...]
    y = jnp.maximum(y, 0.0)

    # fc2 + softmax over classes (exact division so rows sum to 1 tightly)
    z = jnp.dot(y.astype(jnp.bfloat16), fc2w_ref[...],
                preferred_element_type=jnp.float32) + fc2b_ref[...]
    z = z - jnp.max(z, axis=1, keepdims=True)
    ez = jnp.exp(z)
    out_ref[...] = ez / jnp.sum(ez, axis=1, keepdims=True)


def head(h2, p, output_dim):
    _, T, Bp, H = h2.shape
    b_blk = min(Bp, 128)
    while Bp % b_blk:
        b_blk -= 8

    def full(a):
        nd = a.ndim
        return pl.BlockSpec(a.shape, lambda b: (0,) * nd)

    weights = [p["aw1f"], p["aw1b"], p["ab1"], p["aw2"], p["ab2"],
               p["fc1wf"], p["fc1wb"], p["fc1b"],
               p["bn_gamma"], p["bn_beta"], p["bn_mean"], p["bn_var"],
               p["fc2w"], p["fc2b"]]
    return pl.pallas_call(
        _head_kernel,
        out_shape=jax.ShapeDtypeStruct((Bp, output_dim), jnp.float32),
        grid_spec=pltpu.PrefetchScalarGridSpec(
            num_scalar_prefetch=0,
            grid=(Bp // b_blk,),
            in_specs=[pl.BlockSpec((2, T, b_blk, H), lambda b: (0, 0, b, 0))]
                     + [full(w) for w in weights],
            out_specs=pl.BlockSpec((b_blk, output_dim), lambda b: (b, 0)),
        ),
        compiler_params=pltpu.CompilerParams(dimension_semantics=("parallel",)),
    )(h2, *weights)


# -----------------------------------------------------------------------------
# Full model
# -----------------------------------------------------------------------------
def lstm_model_forward(tokens, params, output_dim):
    B, T = tokens.shape
    Bp = ((B + 7) // 8) * 8            # pad batch to a sublane multiple of 8
    if Bp != B:
        tokens = jnp.pad(tokens, ((0, Bp - B), (0, 0)))
    hidden = params["lstm1"]["whh"].shape[1]

    # TODO(synk): the embedding lookup is a gather, kept as XLA glue (no Pallas gather used).
    emb = params["embedding"][tokens]              # (Bp, T, E)
    x = jnp.transpose(emb, (1, 0, 2))              # time-major (T, Bp, E)

    h = bilstm_layer(x, params["lstm1"], hidden, from_bidir=False)   # (2,T,Bp,H)
    h = bilstm_layer(h, params["lstm2"], hidden, from_bidir=True)    # (2,T,Bp,H)
    out = head(h, params["head"], output_dim)                        # (Bp, OUT)
    return out[:B]


# -----------------------------------------------------------------------------
# Parameter initialisation (weights pre-packed for the kernel layouts;
# matmul weights stored in bf16, biases / BN / state math in f32).
# -----------------------------------------------------------------------------
def _lstm_layer_params(key, d_in, hidden):
    ks = jax.random.split(key, 8)
    s = 1.0 / (hidden ** 0.5)

    def u(k, shape):
        return jax.random.uniform(k, shape, jnp.float32, -s, s)

    wih_f = u(ks[0], (d_in, 4 * hidden))
    whh_f = u(ks[1], (hidden, 4 * hidden))
    b_f = u(ks[2], (1, 4 * hidden)) + u(ks[3], (1, 4 * hidden))   # b_ih + b_hh
    wih_b = u(ks[4], (d_in, 4 * hidden))
    whh_b = u(ks[5], (hidden, 4 * hidden))
    b_b = u(ks[6], (1, 4 * hidden)) + u(ks[7], (1, 4 * hidden))
    return {
        "w_in": jnp.concatenate([wih_f, wih_b], axis=1).astype(jnp.bfloat16),  # (Din, 8H)
        "b_in": jnp.concatenate([b_f, b_b], axis=1),                            # (1, 8H) f32
        "whh": jnp.stack([whh_f, whh_b], axis=0).astype(jnp.bfloat16),          # (2, H, 4H)
    }


def init_params(key, vocab_size, embedding_dim, hidden_dim, output_dim):
    keys = jax.random.split(key, 12)
    H, H2 = hidden_dim, 2 * hidden_dim

    def n(k, shape):
        return 0.1 * jax.random.normal(k, shape, jnp.float32)

    aw1 = n(keys[3], (H2, H))
    fc1w = n(keys[6], (H2, 128))
    return {
        "embedding": n(keys[0], (vocab_size, embedding_dim)),
        "lstm1": _lstm_layer_params(keys[1], embedding_dim, H),
        "lstm2": _lstm_layer_params(keys[2], H2, H),
        "head": {
            "aw1f": aw1[:H].astype(jnp.bfloat16),
            "aw1b": aw1[H:].astype(jnp.bfloat16),
            "ab1": n(keys[4], (1, H)),
            "aw2": n(keys[5], (1, H)),          # row form of the (H, 1) attention vector
            "ab2": n(keys[7], (1, 1)),
            "fc1wf": fc1w[:H].astype(jnp.bfloat16),
            "fc1wb": fc1w[H:].astype(jnp.bfloat16),
            "fc1b": n(keys[8], (1, 128)),
            "bn_gamma": jnp.ones((1, 128), jnp.float32),
            "bn_beta": jnp.zeros((1, 128), jnp.float32),
            "bn_mean": jnp.zeros((1, 128), jnp.float32),
            "bn_var": jnp.ones((1, 128), jnp.float32),
            "fc2w": n(keys[9], (128, output_dim)).astype(jnp.bfloat16),
            "fc2b": n(keys[10], (1, output_dim)),
        },
    }


if __name__ == "__main__":
    # Small shapes consistent with the module's forward contract.
    B, T = 2, 8
    VOCAB, EMB, HIDDEN, OUT = 100, 32, 32, 3

    root = jax.random.PRNGKey(0)
    k_param, k_tok = jax.random.split(root)
    params = init_params(k_param, VOCAB, EMB, HIDDEN, OUT)
    tokens = jax.random.randint(k_tok, (B, T), 0, VOCAB, dtype=jnp.int32)

    fwd = jax.jit(functools.partial(lstm_model_forward, output_dim=OUT))
    probs = jax.block_until_ready(fwd(tokens, params))

    assert probs.shape == (B, OUT)
    assert bool(jnp.all(jnp.isfinite(probs)))
    assert bool(jnp.allclose(jnp.sum(probs, axis=1), 1.0, atol=1e-5))
    print("KERNEL_OK")
</pallas_src>

<mosaic_0001>
module attributes {stable_mosaic.version = 11 : i64} {
  func.func @_proj_kernel(%arg0: i32, %arg1: memref<64x32xf32, #tpu.memory_space<vmem>>, %arg2: memref<32x256xbf16, #tpu.memory_space<vmem>>, %arg3: memref<1x256xf32, #tpu.memory_space<vmem>>, %arg4: memref<64x256xf32, #tpu.memory_space<vmem>>) attributes {dimension_semantics = [#tpu.dimension_semantics<parallel>], iteration_bounds = array<i64: 1>, scalar_prefetch = 0 : i64, scratch_operands = 0 : i64, tpu.core_type = #tpu.core_type<tc>, window_params = [{transform_indices = @transform_0, window_bounds = array<i64: 64, 32>}, {pipeline_mode = #tpu.pipeline_mode<synchronous>, transform_indices = @transform_1, window_bounds = array<i64: 32, 256>}, {pipeline_mode = #tpu.pipeline_mode<synchronous>, transform_indices = @transform_2, window_bounds = array<i64: 1, 256>}, {transform_indices = @transform_3, window_bounds = array<i64: 64, 256>}]} {
    %c0 = arith.constant 0 : index
    %c0_0 = arith.constant 0 : index
    %0 = vector.load %arg1[%c0, %c0_0] : memref<64x32xf32, #tpu.memory_space<vmem>>, vector<64x32xf32>
    %1 = arith.truncf %0 : vector<64x32xf32> to vector<64x32xbf16>
    %c0_1 = arith.constant 0 : index
    %c0_2 = arith.constant 0 : index
    %2 = vector.load %arg2[%c0_1, %c0_2] : memref<32x256xbf16, #tpu.memory_space<vmem>>, vector<32x256xbf16>
    %cst = arith.constant dense<0.000000e+00> : vector<64x256xf32>
    %3 = tpu.matmul %1, %2, %cst {dimension_numbers = #tpu.dot_dimension_numbers<[1], [0], [0], [1], [0, 0, 1, 1], [], []>} : vector<64x32xbf16>, vector<32x256xbf16>, vector<64x256xf32> -> vector<64x256xf32>
    %c0_3 = arith.constant 0 : index
    %c0_4 = arith.constant 0 : index
    %4 = vector.load %arg3[%c0_3, %c0_4] : memref<1x256xf32, #tpu.memory_space<vmem>>, vector<1x256xf32>
    %5 = vector.broadcast %4 : vector<1x256xf32> to vector<64x256xf32>
    %6 = arith.addf %3, %5 : vector<64x256xf32>
    %c0_5 = arith.constant 0 : index
    %c0_6 = arith.constant 0 : index
    %7 = vector.load %arg4[%c0_5, %c0_6] : memref<64x256xf32, #tpu.memory_space<vmem>>, vector<64x256xf32>
    tpu.vector_store %arg4[%c0_5, %c0_6], %6 {strides = array<i32>} : memref<64x256xf32, #tpu.memory_space<vmem>>, vector<64x256xf32>,
    return
  }
  func.func @transform_0(%arg0: i32) -> (i32, i32) {
    %c0_i32 = arith.constant 0 : i32
    %c0_i32_0 = arith.constant 0 : i32
    return %arg0, %c0_i32 : i32, i32
  }
  func.func @transform_1(%arg0: i32) -> (i32, i32) {
    %c0_i32 = arith.constant 0 : i32
    %c0_i32_0 = arith.constant 0 : i32
    %c0_i32_1 = arith.constant 0 : i32
    return %c0_i32, %c0_i32_0 : i32, i32
  }
  func.func @transform_2(%arg0: i32) -> (i32, i32) {
    %c0_i32 = arith.constant 0 : i32
    %c0_i32_0 = arith.constant 0 : i32
    %c0_i32_1 = arith.constant 0 : i32
    return %c0_i32, %c0_i32_0 : i32, i32
  }
  func.func @transform_3(%arg0: i32) -> (i32, i32) {
    %c0_i32 = arith.constant 0 : i32
    %c0_i32_0 = arith.constant 0 : i32
    return %arg0, %c0_i32 : i32, i32
  }
}

module attributes {stable_mosaic.version = 11 : i64} {
  func.func @_proj_kernel(%arg0: i32, %arg1: memref<64x32xf32, #tpu.memory_space<vmem>>, %arg2: memref<32x256xbf16, #tpu.memory_space<vmem>>, %arg3: memref<64x32xf32, #tpu.memory_space<vmem>>, %arg4: memref<32x256xbf16, #tpu.memory_space<vmem>>, %arg5: memref<1x256xf32, #tpu.memory_space<vmem>>, %arg6: memref<64x256xf32, #tpu.memory_space<vmem>>) attributes {dimension_semantics = [#tpu.dimension_semantics<parallel>], iteration_bounds = array<i64: 1>, scalar_prefetch = 0 : i64, scratch_operands = 0 : i64, tpu.core_type = #tpu.core_type<tc>, window_params = [{transform_indices = @transform_0, window_bounds = array<i64: 64, 32>}, {pipeline_mode = #tpu.pipeline_mode<synchronous>, transform_indices = @transform_1, window_bounds = array<i64: 32, 256>}, {transform_indices = @transform_2, window_bounds = array<i64: 64, 32>}, {pipeline_mode = #tpu.pipeline_mode<synchronous>, transform_indices = @transform_3, window_bounds = array<i64: 32, 256>}, {pipeline_mode = #tpu.pipeline_mode<synchronous>, transform_indices = @transform_4, window_bounds = array<i64: 1, 256>}, {transform_indices = @transform_5, window_bounds = array<i64: 64, 256>}]} {
    %c0 = arith.constant 0 : index
    %c0_0 = arith.constant 0 : index
    %0 = vector.load %arg1[%c0, %c0_0] : memref<64x32xf32, #tpu.memory_space<vmem>>, vector<64x32xf32>
    %1 = arith.truncf %0 : vector<64x32xf32> to vector<64x32xbf16>
    %c0_1 = arith.constant 0 : index
    %c0_2 = arith.constant 0 : index
    %2 = vector.load %arg2[%c0_1, %c0_2] : memref<32x256xbf16, #tpu.memory_space<vmem>>, vector<32x256xbf16>
    %cst = arith.constant dense<0.000000e+00> : vector<64x256xf32>
    %3 = tpu.matmul %1, %2, %cst {dimension_numbers = #tpu.dot_dimension_numbers<[1], [0], [0], [1], [0, 0, 1, 1], [], []>} : vector<64x32xbf16>, vector<32x256xbf16>, vector<64x256xf32> -> vector<64x256xf32>
    %c0_3 = arith.constant 0 : index
    %c0_4 = arith.constant 0 : index
    %4 = vector.load %arg3[%c0_3, %c0_4] : memref<64x32xf32, #tpu.memory_space<vmem>>, vector<64x32xf32>
    %5 = arith.truncf %4 : vector<64x32xf32> to vector<64x32xbf16>
    %c0_5 = arith.constant 0 : index
    %c0_6 = arith.constant 0 : index
    %6 = vector.load %arg4[%c0_5, %c0_6] : memref<32x256xbf16, #tpu.memory_space<vmem>>, vector<32x256xbf16>
    %cst_7 = arith.constant dense<0.000000e+00> : vector<64x256xf32>
    %7 = tpu.matmul %5, %6, %cst_7 {dimension_numbers = #tpu.dot_dimension_numbers<[1], [0], [0], [1], [0, 0, 1, 1], [], []>} : vector<64x32xbf16>, vector<32x256xbf16>, vector<64x256xf32> -> vector<64x256xf32>
    %8 = arith.addf %3, %7 : vector<64x256xf32>
    %c0_8 = arith.constant 0 : index
    %c0_9 = arith.constant 0 : index
    %9 = vector.load %arg5[%c0_8, %c0_9] : memref<1x256xf32, #tpu.memory_space<vmem>>, vector<1x256xf32>
    %10 = vector.broadcast %9 : vector<1x256xf32> to vector<64x256xf32>
    %11 = arith.addf %8, %10 : vector<64x256xf32>
    %c0_10 = arith.constant 0 : index
    %c0_11 = arith.constant 0 : index
    %12 = vector.load %arg6[%c0_10, %c0_11] : memref<64x256xf32, #tpu.memory_space<vmem>>, vector<64x256xf32>
    tpu.vector_store %arg6[%c0_10, %c0_11], %11 {strides = array<i32>} : memref<64x256xf32, #tpu.memory_space<vmem>>, vector<64x256xf32>,
    return
  }
  func.func @transform_0(%arg0: i32) -> (i32, i32) {
    %c0_i32 = arith.constant 0 : i32
    %c0_i32_0 = arith.constant 0 : i32
    return %arg0, %c0_i32 : i32, i32
  }
  func.func @transform_1(%arg0: i32) -> (i32, i32) {
    %c0_i32 = arith.constant 0 : i32
    %c0_i32_0 = arith.constant 0 : i32
    %c0_i32_1 = arith.constant 0 : i32
    return %c0_i32, %c0_i32_0 : i32, i32
  }
  func.func @transform_2(%arg0: i32) -> (i32, i32) {
    %c0_i32 = arith.constant 0 : i32
    %c0_i32_0 = arith.constant 0 : i32
    return %arg0, %c0_i32 : i32, i32
  }
  func.func @transform_3(%arg0: i32) -> (i32, i32) {
    %c0_i32 = arith.constant 0 : i32
    %c0_i32_0 = arith.constant 0 : i32
    %c0_i32_1 = arith.constant 0 : i32
    return %c0_i32, %c0_i32_0 : i32, i32
  }
  func.func @transform_4(%arg0: i32) -> (i32, i32) {
    %c0_i32 = arith.constant 0 : i32
    %c0_i32_0 = arith.constant 0 : i32
    %c0_i32_1 = arith.constant 0 : i32
    return %c0_i32, %c0_i32_0 : i32, i32
  }
  func.func @transform_5(%arg0: i32) -> (i32, i32) {
    %c0_i32 = arith.constant 0 : i32
    %c0_i32_0 = arith.constant 0 : i32
    return %arg0, %c0_i32 : i32, i32
  }
}

module attributes {stable_mosaic.version = 11 : i64} {
  func.func @_bilstm_rec_kernel(%arg0: i32, %arg1: i32, %arg2: memref<8x8x128xf32, #tpu.memory_space<vmem>>, %arg3: memref<1x32x128xbf16, #tpu.memory_space<vmem>>, %arg4: memref<1x8x8x32xf32, #tpu.memory_space<vmem>>, %arg5: memref<8x32xf32, #tpu.memory_space<vmem>>, %arg6: memref<8x32xf32, #tpu.memory_space<vmem>>) attributes {dimension_semantics = [#tpu.dimension_semantics<parallel>, #tpu.dimension_semantics<arbitrary>], iteration_bounds = array<i64: 2, 1>, scalar_prefetch = 0 : i64, scratch_operands = 2 : i64, tpu.core_type = #tpu.core_type<tc>, window_params = [{transform_indices = @transform_0, window_bounds = array<i64: 8, 8, 128>}, {transform_indices = @transform_1, window_bounds = array<i64: 1, 32, 128>}, {transform_indices = @transform_2, window_bounds = array<i64: 1, 8, 8, 32>}]} {
    %c0_i32 = arith.constant 0 : i32
    %0 = arith.cmpi eq, %arg1, %c0_i32 : i32
    %1 = arith.extui %0 : i1 to i32
    %c0_i32_0 = arith.constant 0 : i32
    %2 = arith.cmpi ne, %1, %c0_i32_0 : i32
    scf.if %2 {
      %cst_99 = arith.constant 0.000000e+00 : f32
      %329 = vector.broadcast %cst_99 : f32 to vector<8x32xf32>
      %c0_100 = arith.constant 0 : index
      %c0_101 = arith.constant 0 : index
      %330 = vector.load %arg5[%c0_100, %c0_101] : memref<8x32xf32, #tpu.memory_space<vmem>>, vector<8x32xf32>
      tpu.vector_store %arg5[%c0_100, %c0_101], %329 {strides = array<i32>} : memref<8x32xf32, #tpu.memory_space<vmem>>, vector<8x32xf32>,
      %cst_102 = arith.constant 0.000000e+00 : f32
      %331 = vector.broadcast %cst_102 : f32 to vector<8x32xf32>
      %c0_103 = arith.constant 0 : index
      %c0_104 = arith.constant 0 : index
      %332 = vector.load %arg6[%c0_103, %c0_104] : memref<8x32xf32, #tpu.memory_space<vmem>>, vector<8x32xf32>
      tpu.vector_store %arg6[%c0_103, %c0_104], %331 {strides = array<i32>} : memref<8x32xf32, #tpu.memory_space<vmem>>, vector<8x32xf32>,
    } else {
    }
    %c0 = arith.constant 0 : index
    %c0_1 = arith.constant 0 : index
    %c0_2 = arith.constant 0 : index
    %3 = vector.load %arg3[%c0, %c0_1, %c0_2] : memref<1x32x128xbf16, #tpu.memory_space<vmem>>, vector<1x32x128xbf16>
    %4 = vector.shape_cast %3 : vector<1x32x128xbf16> to vector<32x128xbf16>
    %c0_3 = arith.constant 0 : index
    %c0_4 = arith.constant 0 : index
    %5 = vector.load %arg5[%c0_3, %c0_4] : memref<8x32xf32, #tpu.memory_space<vmem>>, vector<8x32xf32>
    %c0_5 = arith.constant 0 : index
    %c0_6 = arith.constant 0 : index
    %6 = vector.load %arg6[%c0_5, %c0_6] : memref<8x32xf32, #tpu.memory_space<vmem>>, vector<8x32xf32>
    %c0_i32_7 = arith.constant 0 : i32
    %c7_i32 = arith.constant 7 : i32
    %7 = arith.subi %c7_i32, %c0_i32_7 : i32
    %8 = arith.muli %arg0, %7 : i32
    %c1_i32 = arith.constant 1 : i32
    %9 = arith.subi %c1_i32, %arg0 : i32
    %10 = arith.muli %9, %c0_i32_7 : i32
    %11 = arith.addi %8, %10 : i32
    %12 = arith.index_cast %11 : i32 to index
    %c0_8 = arith.constant 0 : index
    %c0_9 = arith.constant 0 : index
    %13 = vector.load %arg2[%12, %c0_8, %c0_9] : memref<8x8x128xf32, #tpu.memory_space<vmem>>, vector<1x8x128xf32>
    %14 = vector.shape_cast %13 : vector<1x8x128xf32> to vector<8x128xf32>
    %15 = arith.truncf %5 : vector<8x32xf32> to vector<8x32xbf16>
    %cst = arith.constant dense<0.000000e+00> : vector<8x128xf32>
    %16 = tpu.matmul %15, %4, %cst {dimension_numbers = #tpu.dot_dimension_numbers<[1], [0], [0], [1], [0, 0, 1, 1], [], []>} : vector<8x32xbf16>, vector<32x128xbf16>, vector<8x128xf32> -> vector<8x128xf32>
    %17 = arith.addf %14, %16 : vector<8x128xf32>
    %18 = vector.extract_strided_slice %17 {offsets = [0, 0], sizes = [8, 32], strides = [1, 1]} : vector<8x128xf32> to vector<8x32xf32>
    %19 = arith.negf %18 : vector<8x32xf32>
    %20 = math.exp %19 : vector<8x32xf32>
    %cst_10 = arith.constant 1.000000e+00 : f32
    %21 = vector.broadcast %cst_10 : f32 to vector<8x32xf32>
    %22 = arith.addf %21, %20 : vector<8x32xf32>
    %23 = arith.divf %21, %22 : vector<8x32xf32>
    %24 = vector.extract_strided_slice %17 {offsets = [0, 32], sizes = [8, 32], strides = [1, 1]} : vector<8x128xf32> to vector<8x32xf32>
    %25 = arith.negf %24 : vector<8x32xf32>
    %26 = math.exp %25 : vector<8x32xf32>
    %cst_11 = arith.constant 1.000000e+00 : f32
    %27 = vector.broadcast %cst_11 : f32 to vector<8x32xf32>
    %28 = arith.addf %27, %26 : vector<8x32xf32>
    %29 = arith.divf %27, %28 : vector<8x32xf32>
    %30 = vector.extract_strided_slice %17 {offsets = [0, 64], sizes = [8, 32], strides = [1, 1]} : vector<8x128xf32> to vector<8x32xf32>
    %31 = math.tanh %30 : vector<8x32xf32>
    %32 = vector.extract_strided_slice %17 {offsets = [0, 96], sizes = [8, 32], strides = [1, 1]} : vector<8x128xf32> to vector<8x32xf32>
    %33 = arith.negf %32 : vector<8x32xf32>
    %34 = math.exp %33 : vector<8x32xf32>
    %cst_12 = arith.constant 1.000000e+00 : f32
    %35 = vector.broadcast %cst_12 : f32 to vector<8x32xf32>
    %36 = arith.addf %35, %34 : vector<8x32xf32>
    %37 = arith.divf %35, %36 : vector<8x32xf32>
    %38 = arith.mulf %29, %6 : vector<8x32xf32>
    %39 = arith.mulf %23, %31 : vector<8x32xf32>
    %40 = arith.addf %38, %39 : vector<8x32xf32>
    %41 = math.tanh %40 : vector<8x32xf32>
    %42 = arith.mulf %37, %41 : vector<8x32xf32>
    %c0_13 = arith.constant 0 : index
    %43 = arith.index_cast %11 : i32 to index
    %c0_14 = arith.constant 0 : index
    %c0_15 = arith.constant 0 : index
    %44 = vector.load %arg4[%c0_13, %43, %c0_14, %c0_15] : memref<1x8x8x32xf32, #tpu.memory_space<vmem>>, vector<1x1x8x32xf32>
    %45 = vector.shape_cast %44 : vector<1x1x8x32xf32> to vector<8x32xf32>
    %46 = vector.shape_cast %42 : vector<8x32xf32> to vector<1x1x8x32xf32>
    tpu.vector_store %arg4[%c0_13, %43, %c0_14, %c0_15], %46 {strides = array<i32>} : memref<1x8x8x32xf32, #tpu.memory_space<vmem>>, vector<1x1x8x32xf32>,
    %c1_i32_16 = arith.constant 1 : i32
    %c7_i32_17 = arith.constant 7 : i32
    %47 = arith.subi %c7_i32_17, %c1_i32_16 : i32
    %48 = arith.muli %arg0, %47 : i32
    %c1_i32_18 = arith.constant 1 : i32
    %49 = arith.subi %c1_i32_18, %arg0 : i32
    %50 = arith.muli %49, %c1_i32_16 : i32
    %51 = arith.addi %48, %50 : i32
    %52 = arith.index_cast %51 : i32 to index
    %c0_19 = arith.constant 0 : index
    %c0_20 = arith.constant 0 : index
    %53 = vector.load %arg2[%52, %c0_19, %c0_20] : memref<8x8x128xf32, #tpu.memory_space<vmem>>, vector<1x8x128xf32>
    %54 = vector.shape_cast %53 : vector<1x8x128xf32> to vector<8x128xf32>
    %55 = arith.truncf %42 : vector<8x32xf32> to vector<8x32xbf16>
    %cst_21 = arith.constant dense<0.000000e+00> : vector<8x128xf32>
    %56 = tpu.matmul %55, %4, %cst_21 {dimension_numbers = #tpu.dot_dimension_numbers<[1], [0], [0], [1], [0, 0, 1, 1], [], []>} : vector<8x32xbf16>, vector<32x128xbf16>, vector<8x128xf32> -> vector<8x128xf32>
    %57 = arith.addf %54, %56 : vector<8x128xf32>
    %58 = vector.extract_strided_slice %57 {offsets = [0, 0], sizes = [8, 32], strides = [1, 1]} : vector<8x128xf32> to vector<8x32xf32>
    %59 = arith.negf %58 : vector<8x32xf32>
    %60 = math.exp %59 : vector<8x32xf32>
    %cst_22 = arith.constant 1.000000e+00 : f32
    %61 = vector.broadcast %cst_22 : f32 to vector<8x32xf32>
    %62 = arith.addf %61, %60 : vector<8x32xf32>
    %63 = arith.divf %61, %62 : vector<8x32xf32>
    %64 = vector.extract_strided_slice %57 {offsets = [0, 32], sizes = [8, 32], strides = [1, 1]} : vector<8x128xf32> to vector<8x32xf32>
    %65 = arith.negf %64 : vector<8x32xf32>
    %66 = math.exp %65 : vector<8x32xf32>
    %cst_23 = arith.constant 1.000000e+00 : f32
    %67 = vector.broadcast %cst_23 : f32 to vector<8x32xf32>
    %68 = arith.addf %67, %66 : vector<8x32xf32>
    %69 = arith.divf %67, %68 : vector<8x32xf32>
    %70 = vector.extract_strided_slice %57 {offsets = [0, 64], sizes = [8, 32], strides = [1, 1]} : vector<8x128xf32> to vector<8x32xf32>
    %71 = math.tanh %70 : vector<8x32xf32>
    %72 = vector.extract_strided_slice %57 {offsets = [0, 96], sizes = [8, 32], strides = [1, 1]} : vector<8x128xf32> to vector<8x32xf32>
    %73 = arith.negf %72 : vector<8x32xf32>
    %74 = math.exp %73 : vector<8x32xf32>
    %cst_24 = arith.constant 1.000000e+00 : f32
    %75 = vector.broadcast %cst_24 : f32 to vector<8x32xf32>
    %76 = arith.addf %75, %74 : vector<8x32xf32>
    %77 = arith.divf %75, %76 : vector<8x32xf32>
    %78 = arith.mulf %69, %40 : vector<8x32xf32>
    %79 = arith.mulf %63, %71 : vector<8x32xf32>
    %80 = arith.addf %78, %79 : vector<8x32xf32>
    %81 = math.tanh %80 : vector<8x32xf32>
    %82 = arith.mulf %77, %81 : vector<8x32xf32>
    %c0_25 = arith.constant 0 : index
    %83 = arith.index_cast %51 : i32 to index
    %c0_26 = arith.constant 0 : index
    %c0_27 = arith.constant 0 : index
    %84 = vector.load %arg4[%c0_25, %83, %c0_26, %c0_27] : memref<1x8x8x32xf32, #tpu.memory_space<vmem>>, vector<1x1x8x32xf32>
    %85 = vector.shape_cast %84 : vector<1x1x8x32xf32> to vector<8x32xf32>
    %86 = vector.shape_cast %82 : vector<8x32xf32> to vector<1x1x8x32xf32>
    tpu.vector_store %arg4[%c0_25, %83, %c0_26, %c0_27], %86 {strides = array<i32>} : memref<1x8x8x32xf32, #tpu.memory_space<vmem>>, vector<1x1x8x32xf32>,
    %c2_i32 = arith.constant 2 : i32
    %c7_i32_28 = arith.constant 7 : i32
    %87 = arith.subi %c7_i32_28, %c2_i32 : i32
    %88 = arith.muli %arg0, %87 : i32
    %c1_i32_29 = arith.constant 1 : i32
    %89 = arith.subi %c1_i32_29, %arg0 : i32
    %90 = arith.muli %89, %c2_i32 : i32
    %91 = arith.addi %88, %90 : i32
    %92 = arith.index_cast %91 : i32 to index
    %c0_30 = arith.constant 0 : index
    %c0_31 = arith.constant 0 : index
    %93 = vector.load %arg2[%92, %c0_30, %c0_31] : memref<8x8x128xf32, #tpu.memory_space<vmem>>, vector<1x8x128xf32>
    %94 = vector.shape_cast %93 : vector<1x8x128xf32> to vector<8x128xf32>
    %95 = arith.truncf %82 : vector<8x32xf32> to vector<8x32xbf16>
    %cst_32 = arith.constant dense<0.000000e+00> : vector<8x128xf32>
    %96 = tpu.matmul %95, %4, %cst_32 {dimension_numbers = #tpu.dot_dimension_numbers<[1], [0], [0], [1], [0, 0, 1, 1], [], []>} : vector<8x32xbf16>, vector<32x128xbf16>, vector<8x128xf32> -> vector<8x128xf32>
    %97 = arith.addf %94, %96 : vector<8x128xf32>
    %98 = vector.extract_strided_slice %97 {offsets = [0, 0], sizes = [8, 32], strides = [1, 1]} : vector<8x128xf32> to vector<8x32xf32>
    %99 = arith.negf %98 : vector<8x32xf32>
    %100 = math.exp %99 : vector<8x32xf32>
    %cst_33 = arith.constant 1.000000e+00 : f32
    %101 = vector.broadcast %cst_33 : f32 to vector<8x32xf32>
    %102 = arith.addf %101, %100 : vector<8x32xf32>
    %103 = arith.divf %101, %102 : vector<8x32xf32>
    %104 = vector.extract_strided_slice %97 {offsets = [0, 32], sizes = [8, 32], strides = [1, 1]} : vector<8x128xf32> to vector<8x32xf32>
    %105 = arith.negf %104 : vector<8x32xf32>
    %106 = math.exp %105 : vector<8x32xf32>
    %cst_34 = arith.constant 1.000000e+00 : f32
    %107 = vector.broadcast %cst_34 : f32 to vector<8x32xf32>
    %108 = arith.addf %107, %106 : vector<8x32xf32>
    %109 = arith.divf %107, %108 : vector<8x32xf32>
    %110 = vector.extract_strided_slice %97 {offsets = [0, 64], sizes = [8, 32], strides = [1, 1]} : vector<8x128xf32> to vector<8x32xf32>
    %111 = math.tanh %110 : vector<8x32xf32>
    %112 = vector.extract_strided_slice %97 {offsets = [0, 96], sizes = [8, 32], strides = [1, 1]} : vector<8x128xf32> to vector<8x32xf32>
    %113 = arith.negf %112 : vector<8x32xf32>
    %114 = math.exp %113 : vector<8x32xf32>
    %cst_35 = arith.constant 1.000000e+00 : f32
    %115 = vector.broadcast %cst_35 : f32 to vector<8x32xf32>
    %116 = arith.addf %115, %114 : vector<8x32xf32>
    %117 = arith.divf %115, %116 : vector<8x32xf32>
    %118 = arith.mulf %109, %80 : vector<8x32xf32>
    %119 = arith.mulf %103, %111 : vector<8x32xf32>
    %120 = arith.addf %118, %119 : vector<8x32xf32>
    %121 = math.tanh %120 : vector<8x32xf32>
    %122 = arith.mulf %117, %121 : vector<8x32xf32>
    %c0_36 = arith.constant 0 : index
    %123 = arith.index_cast %91 : i32 to index
    %c0_37 = arith.constant 0 : index
    %c0_38 = arith.constant 0 : index
    %124 = vector.load %arg4[%c0_36, %123, %c0_37, %c0_38] : memref<1x8x8x32xf32, #tpu.memory_space<vmem>>, vector<1x1x8x32xf32>
    %125 = vector.shape_cast %124 : vector<1x1x8x32xf32> to vector<8x32xf32>
    %126 = vector.shape_cast %122 : vector<8x32xf32> to vector<1x1x8x32xf32>
    tpu.vector_store %arg4[%c0_36, %123, %c0_37, %c0_38], %126 {strides = array<i32>} : memref<1x8x8x32xf32, #tpu.memory_space<vmem>>, vector<1x1x8x32xf32>,
    %c3_i32 = arith.constant 3 : i32
    %c7_i32_39 = arith.constant 7 : i32
    %127 = arith.subi %c7_i32_39, %c3_i32 : i32
    %128 = arith.muli %arg0, %127 : i32
    %c1_i32_40 = arith.constant 1 : i32
    %129 = arith.subi %c1_i32_40, %arg0 : i32
    %130 = arith.muli %129, %c3_i32 : i32
    %131 = arith.addi %128, %130 : i32
    %132 = arith.index_cast %131 : i32 to index
    %c0_41 = arith.constant 0 : index
    %c0_42 = arith.constant 0 : index
    %133 = vector.load %arg2[%132, %c0_41, %c0_42] : memref<8x8x128xf32, #tpu.memory_space<vmem>>, vector<1x8x128xf32>
    %134 = vector.shape_cast %133 : vector<1x8x128xf32> to vector<8x128xf32>
    %135 = arith.truncf %122 : vector<8x32xf32> to vector<8x32xbf16>
    %cst_43 = arith.constant dense<0.000000e+00> : vector<8x128xf32>
    %136 = tpu.matmul %135, %4, %cst_43 {dimension_numbers = #tpu.dot_dimension_numbers<[1], [0], [0], [1], [0, 0, 1, 1], [], []>} : vector<8x32xbf16>, vector<32x128xbf16>, vector<8x128xf32> -> vector<8x128xf32>
    %137 = arith.addf %134, %136 : vector<8x128xf32>
    %138 = vector.extract_strided_slice %137 {offsets = [0, 0], sizes = [8, 32], strides = [1, 1]} : vector<8x128xf32> to vector<8x32xf32>
    %139 = arith.negf %138 : vector<8x32xf32>
    %140 = math.exp %139 : vector<8x32xf32>
    %cst_44 = arith.constant 1.000000e+00 : f32
    %141 = vector.broadcast %cst_44 : f32 to vector<8x32xf32>
    %142 = arith.addf %141, %140 : vector<8x32xf32>
    %143 = arith.divf %141, %142 : vector<8x32xf32>
    %144 = vector.extract_strided_slice %137 {offsets = [0, 32], sizes = [8, 32], strides = [1, 1]} : vector<8x128xf32> to vector<8x32xf32>
    %145 = arith.negf %144 : vector<8x32xf32>
    %146 = math.exp %145 : vector<8x32xf32>
    %cst_45 = arith.constant 1.000000e+00 : f32
    %147 = vector.broadcast %cst_45 : f32 to vector<8x32xf32>
    %148 = arith.addf %147, %146 : vector<8x32xf32>
    %149 = arith.divf %147, %148 : vector<8x32xf32>
    %150 = vector.extract_strided_slice %137 {offsets = [0, 64], sizes = [8, 32], strides = [1, 1]} : vector<8x128xf32> to vector<8x32xf32>
    %151 = math.tanh %150 : vector<8x32xf32>
    %152 = vector.extract_strided_slice %137 {offsets = [0, 96], sizes = [8, 32], strides = [1, 1]} : vector<8x128xf32> to vector<8x32xf32>
    %153 = arith.negf %152 : vector<8x32xf32>
    %154 = math.exp %153 : vector<8x32xf32>
    %cst_46 = arith.constant 1.000000e+00 : f32
    %155 = vector.broadcast %cst_46 : f32 to vector<8x32xf32>
    %156 = arith.addf %155, %154 : vector<8x32xf32>
    %157 = arith.divf %155, %156 : vector<8x32xf32>
    %158 = arith.mulf %149, %120 : vector<8x32xf32>
    %159 = arith.mulf %143, %151 : vector<8x32xf32>
    %160 = arith.addf %158, %159 : vector<8x32xf32>
    %161 = math.tanh %160 : vector<8x32xf32>
    %162 = arith.mulf %157, %161 : vector<8x32xf32>
    %c0_47 = arith.constant 0 : index
    %163 = arith.index_cast %131 : i32 to index
    %c0_48 = arith.constant 0 : index
    %c0_49 = arith.constant 0 : index
    %164 = vector.load %arg4[%c0_47, %163, %c0_48, %c0_49] : memref<1x8x8x32xf32, #tpu.memory_space<vmem>>, vector<1x1x8x32xf32>
    %165 = vector.shape_cast %164 : vector<1x1x8x32xf32> to vector<8x32xf32>
    %166 = vector.shape_cast %162 : vector<8x32xf32> to vector<1x1x8x32xf32>
    tpu.vector_store %arg4[%c0_47, %163, %c0_48, %c0_49], %166 {strides = array<i32>} : memref<1x8x8x32xf32, #tpu.memory_space<vmem>>, vector<1x1x8x32xf32>,
    %c4_i32 = arith.constant 4 : i32
    %c7_i32_50 = arith.constant 7 : i32
    %167 = arith.subi %c7_i32_50, %c4_i32 : i32
    %168 = arith.muli %arg0, %167 : i32
    %c1_i32_51 = arith.constant 1 : i32
    %169 = arith.subi %c1_i32_51, %arg0 : i32
    %170 = arith.muli %169, %c4_i32 : i32
    %171 = arith.addi %168, %170 : i32
    %172 = arith.index_cast %171 : i32 to index
    %c0_52 = arith.constant 0 : index
    %c0_53 = arith.constant 0 : index
    %173 = vector.load %arg2[%172, %c0_52, %c0_53] : memref<8x8x128xf32, #tpu.memory_space<vmem>>, vector<1x8x128xf32>
    %174 = vector.shape_cast %173 : vector<1x8x128xf32> to vector<8x128xf32>
    %175 = arith.truncf %162 : vector<8x32xf32> to vector<8x32xbf16>
    %cst_54 = arith.constant dense<0.000000e+00> : vector<8x128xf32>
    %176 = tpu.matmul %175, %4, %cst_54 {dimension_numbers = #tpu.dot_dimension_numbers<[1], [0], [0], [1], [0, 0, 1, 1], [], []>} : vector<8x32xbf16>, vector<32x128xbf16>, vector<8x128xf32> -> vector<8x128xf32>
    %177 = arith.addf %174, %176 : vector<8x128xf32>
    %178 = vector.extract_strided_slice %177 {offsets = [0, 0], sizes = [8, 32], strides = [1, 1]} : vector<8x128xf32> to vector<8x32xf32>
    %179 = arith.negf %178 : vector<8x32xf32>
    %180 = math.exp %179 : vector<8x32xf32>
    %cst_55 = arith.constant 1.000000e+00 : f32
    %181 = vector.broadcast %cst_55 : f32 to vector<8x32xf32>
    %182 = arith.addf %181, %180 : vector<8x32xf32>
    %183 = arith.divf %181, %182 : vector<8x32xf32>
    %184 = vector.extract_strided_slice %177 {offsets = [0, 32], sizes = [8, 32], strides = [1, 1]} : vector<8x128xf32> to vector<8x32xf32>
    %185 = arith.negf %184 : vector<8x32xf32>
    %186 = math.exp %185 : vector<8x32xf32>
    %cst_56 = arith.constant 1.000000e+00 : f32
    %187 = vector.broadcast %cst_56 : f32 to vector<8x32xf32>
    %188 = arith.addf %187, %186 : vector<8x32xf32>
    %189 = arith.divf %187, %188 : vector<8x32xf32>
    %190 = vector.extract_strided_slice %177 {offsets = [0, 64], sizes = [8, 32], strides = [1, 1]} : vector<8x128xf32> to vector<8x32xf32>
    %191 = math.tanh %190 : vector<8x32xf32>
    %192 = vector.extract_strided_slice %177 {offsets = [0, 96], sizes = [8, 32], strides = [1, 1]} : vector<8x128xf32> to vector<8x32xf32>
    %193 = arith.negf %192 : vector<8x32xf32>
    %194 = math.exp %193 : vector<8x32xf32>
    %cst_57 = arith.constant 1.000000e+00 : f32
    %195 = vector.broadcast %cst_57 : f32 to vector<8x32xf32>
    %196 = arith.addf %195, %194 : vector<8x32xf32>
    %197 = arith.divf %195, %196 : vector<8x32xf32>
    %198 = arith.mulf %189, %160 : vector<8x32xf32>
    %199 = arith.mulf %183, %191 : vector<8x32xf32>
    %200 = arith.addf %198, %199 : vector<8x32xf32>
    %201 = math.tanh %200 : vector<8x32xf32>
    %202 = arith.mulf %197, %201 : vector<8x32xf32>
    %c0_58 = arith.constant 0 : index
    %203 = arith.index_cast %171 : i32 to index
    %c0_59 = arith.constant 0 : index
    %c0_60 = arith.constant 0 : index
    %204 = vector.load %arg4[%c0_58, %203, %c0_59, %c0_60] : memref<1x8x8x32xf32, #tpu.memory_space<vmem>>, vector<1x1x8x32xf32>
    %205 = vector.shape_cast %204 : vector<1x1x8x32xf32> to vector<8x32xf32>
    %206 = vector.shape_cast %202 : vector<8x32xf32> to vector<1x1x8x32xf32>
    tpu.vector_store %arg4[%c0_58, %203, %c0_59, %c0_60], %206 {strides = array<i32>} : memref<1x8x8x32xf32, #tpu.memory_space<vmem>>, vector<1x1x8x32xf32>,
    %c5_i32 = arith.constant 5 : i32
    %c7_i32_61 = arith.constant 7 : i32
    %207 = arith.subi %c7_i32_61, %c5_i32 : i32
    %208 = arith.muli %arg0, %207 : i32
    %c1_i32_62 = arith.constant 1 : i32
    %209 = arith.subi %c1_i32_62, %arg0 : i32
    %210 = arith.muli %209, %c5_i32 : i32
    %211 = arith.addi %208, %210 : i32
    %212 = arith.index_cast %211 : i32 to index
    %c0_63 = arith.constant 0 : index
    %c0_64 = arith.constant 0 : index
    %213 = vector.load %arg2[%212, %c0_63, %c0_64] : memref<8x8x128xf32, #tpu.memory_space<vmem>>, vector<1x8x128xf32>
    %214 = vector.shape_cast %213 : vector<1x8x128xf32> to vector<8x128xf32>
    %215 = arith.truncf %202 : vector<8x32xf32> to vector<8x32xbf16>
    %cst_65 = arith.constant dense<0.000000e+00> : vector<8x128xf32>
    %216 = tpu.matmul %215, %4, %cst_65 {dimension_numbers = #tpu.dot_dimension_numbers<[1], [0], [0], [1], [0, 0, 1, 1], [], []>} : vector<8x32xbf16>, vector<32x128xbf16>, vector<8x128xf32> -> vector<8x128xf32>
    %217 = arith.addf %214, %216 : vector<8x128xf32>
    %218 = vector.extract_strided_slice %217 {offsets = [0, 0], sizes = [8, 32], strides = [1, 1]} : vector<8x128xf32> to vector<8x32xf32>
    %219 = arith.negf %218 : vector<8x32xf32>
    %220 = math.exp %219 : vector<8x32xf32>
    %cst_66 = arith.constant 1.000000e+00 : f32
    %221 = vector.broadcast %cst_66 : f32 to vector<8x32xf32>
    %222 = arith.addf %221, %220 : vector<8x32xf32>
    %223 = arith.divf %221, %222 : vector<8x32xf32>
    %224 = vector.extract_strided_slice %217 {offsets = [0, 32], sizes = [8, 32], strides = [1, 1]} : vector<8x128xf32> to vector<8x32xf32>
    %225 = arith.negf %224 : vector<8x32xf32>
    %226 = math.exp %225 : vector<8x32xf32>
    %cst_67 = arith.constant 1.000000e+00 : f32
    %227 = vector.broadcast %cst_67 : f32 to vector<8x32xf32>
    %228 = arith.addf %227, %226 : vector<8x32xf32>
    %229 = arith.divf %227, %228 : vector<8x32xf32>
    %230 = vector.extract_strided_slice %217 {offsets = [0, 64], sizes = [8, 32], strides = [1, 1]} : vector<8x128xf32> to vector<8x32xf32>
    %231 = math.tanh %230 : vector<8x32xf32>
    %232 = vector.extract_strided_slice %217 {offsets = [0, 96], sizes = [8, 32], strides = [1, 1]} : vector<8x128xf32> to vector<8x32xf32>
    %233 = arith.negf %232 : vector<8x32xf32>
    %234 = math.exp %233 : vector<8x32xf32>
    %cst_68 = arith.constant 1.000000e+00 : f32
    %235 = vector.broadcast %cst_68 : f32 to vector<8x32xf32>
    %236 = arith.addf %235, %234 : vector<8x32xf32>
    %237 = arith.divf %235, %236 : vector<8x32xf32>
    %238 = arith.mulf %229, %200 : vector<8x32xf32>
    %239 = arith.mulf %223, %231 : vector<8x32xf32>
    %240 = arith.addf %238, %239 : vector<8x32xf32>
    %241 = math.tanh %240 : vector<8x32xf32>
    %242 = arith.mulf %237, %241 : vector<8x32xf32>
    %c0_69 = arith.constant 0 : index
    %243 = arith.index_cast %211 : i32 to index
    %c0_70 = arith.constant 0 : index
    %c0_71 = arith.constant 0 : index
    %244 = vector.load %arg4[%c0_69, %243, %c0_70, %c0_71] : memref<1x8x8x32xf32, #tpu.memory_space<vmem>>, vector<1x1x8x32xf32>
    %245 = vector.shape_cast %244 : vector<1x1x8x32xf32> to vector<8x32xf32>
    %246 = vector.shape_cast %242 : vector<8x32xf32> to vector<1x1x8x32xf32>
    tpu.vector_store %arg4[%c0_69, %243, %c0_70, %c0_71], %246 {strides = array<i32>} : memref<1x8x8x32xf32, #tpu.memory_space<vmem>>, vector<1x1x8x32xf32>,
    %c6_i32 = arith.constant 6 : i32
    %c7_i32_72 = arith.constant 7 : i32
    %247 = arith.subi %c7_i32_72, %c6_i32 : i32
    %248 = arith.muli %arg0, %247 : i32
    %c1_i32_73 = arith.constant 1 : i32
    %249 = arith.subi %c1_i32_73, %arg0 : i32
    %250 = arith.muli %249, %c6_i32 : i32
    %251 = arith.addi %248, %250 : i32
    %252 = arith.index_cast %251 : i32 to index
    %c0_74 = arith.constant 0 : index
    %c0_75 = arith.constant 0 : index
    %253 = vector.load %arg2[%252, %c0_74, %c0_75] : memref<8x8x128xf32, #tpu.memory_space<vmem>>, vector<1x8x128xf32>
    %254 = vector.shape_cast %253 : vector<1x8x128xf32> to vector<8x128xf32>
    %255 = arith.truncf %242 : vector<8x32xf32> to vector<8x32xbf16>
    %cst_76 = arith.constant dense<0.000000e+00> : vector<8x128xf32>
    %256 = tpu.matmul %255, %4, %cst_76 {dimension_numbers = #tpu.dot_dimension_numbers<[1], [0], [0], [1], [0, 0, 1, 1], [], []>} : vector<8x32xbf16>, vector<32x128xbf16>, vector<8x128xf32> -> vector<8x128xf32>
    %257 = arith.addf %254, %256 : vector<8x128xf32>
    %258 = vector.extract_strided_slice %257 {offsets = [0, 0], sizes = [8, 32], strides = [1, 1]} : vector<8x128xf32> to vector<8x32xf32>
    %259 = arith.negf %258 : vector<8x32xf32>
    %260 = math.exp %259 : vector<8x32xf32>
    %cst_77 = arith.constant 1.000000e+00 : f32
    %261 = vector.broadcast %cst_77 : f32 to vector<8x32xf32>
    %262 = arith.addf %261, %260 : vector<8x32xf32>
    %263 = arith.divf %261, %262 : vector<8x32xf32>
    %264 = vector.extract_strided_slice %257 {offsets = [0, 32], sizes = [8, 32], strides = [1, 1]} : vector<8x128xf32> to vector<8x32xf32>
    %265 = arith.negf %264 : vector<8x32xf32>
    %266 = math.exp %265 : vector<8x32xf32>
    %cst_78 = arith.constant 1.000000e+00 : f32
    %267 = vector.broadcast %cst_78 : f32 to vector<8x32xf32>
    %268 = arith.addf %267, %266 : vector<8x32xf32>
    %269 = arith.divf %267, %268 : vector<8x32xf32>
    %270 = vector.extract_strided_slice %257 {offsets = [0, 64], sizes = [8, 32], strides = [1, 1]} : vector<8x128xf32> to vector<8x32xf32>
    %271 = math.tanh %270 : vector<8x32xf32>
    %272 = vector.extract_strided_slice %257 {offsets = [0, 96], sizes = [8, 32], strides = [1, 1]} : vector<8x128xf32> to vector<8x32xf32>
    %273 = arith.negf %272 : vector<8x32xf32>
    %274 = math.exp %273 : vector<8x32xf32>
    %cst_79 = arith.constant 1.000000e+00 : f32
    %275 = vector.broadcast %cst_79 : f32 to vector<8x32xf32>
    %276 = arith.addf %275, %274 : vector<8x32xf32>
    %277 = arith.divf %275, %276 : vector<8x32xf32>
    %278 = arith.mulf %269, %240 : vector<8x32xf32>
    %279 = arith.mulf %263, %271 : vector<8x32xf32>
    %280 = arith.addf %278, %279 : vector<8x32xf32>
    %281 = math.tanh %280 : vector<8x32xf32>
    %282 = arith.mulf %277, %281 : vector<8x32xf32>
    %c0_80 = arith.constant 0 : index
    %283 = arith.index_cast %251 : i32 to index
    %c0_81 = arith.constant 0 : index
    %c0_82 = arith.constant 0 : index
    %284 = vector.load %arg4[%c0_80, %283, %c0_81, %c0_82] : memref<1x8x8x32xf32, #tpu.memory_space<vmem>>, vector<1x1x8x32xf32>
    %285 = vector.shape_cast %284 : vector<1x1x8x32xf32> to vector<8x32xf32>
    %286 = vector.shape_cast %282 : vector<8x32xf32> to vector<1x1x8x32xf32>
    tpu.vector_store %arg4[%c0_80, %283, %c0_81, %c0_82], %286 {strides = array<i32>} : memref<1x8x8x32xf32, #tpu.memory_space<vmem>>, vector<1x1x8x32xf32>,
    %c7_i32_83 = arith.constant 7 : i32
    %c7_i32_84 = arith.constant 7 : i32
    %287 = arith.subi %c7_i32_84, %c7_i32_83 : i32
    %288 = arith.muli %arg0, %287 : i32
    %c1_i32_85 = arith.constant 1 : i32
    %289 = arith.subi %c1_i32_85, %arg0 : i32
    %290 = arith.muli %289, %c7_i32_83 : i32
    %291 = arith.addi %288, %290 : i32
    %292 = arith.index_cast %291 : i32 to index
    %c0_86 = arith.constant 0 : index
    %c0_87 = arith.constant 0 : index
    %293 = vector.load %arg2[%292, %c0_86, %c0_87] : memref<8x8x128xf32, #tpu.memory_space<vmem>>, vector<1x8x128xf32>
    %294 = vector.shape_cast %293 : vector<1x8x128xf32> to vector<8x128xf32>
    %295 = arith.truncf %282 : vector<8x32xf32> to vector<8x32xbf16>
    %cst_88 = arith.constant dense<0.000000e+00> : vector<8x128xf32>
    %296 = tpu.matmul %295, %4, %cst_88 {dimension_numbers = #tpu.dot_dimension_numbers<[1], [0], [0], [1], [0, 0, 1, 1], [], []>} : vector<8x32xbf16>, vector<32x128xbf16>, vector<8x128xf32> -> vector<8x128xf32>
    %297 = arith.addf %294, %296 : vector<8x128xf32>
    %298 = vector.extract_strided_slice %297 {offsets = [0, 0], sizes = [8, 32], strides = [1, 1]} : vector<8x128xf32> to vector<8x32xf32>
    %299 = arith.negf %298 : vector<8x32xf32>
    %300 = math.exp %299 : vector<8x32xf32>
    %cst_89 = arith.constant 1.000000e+00 : f32
    %301 = vector.broadcast %cst_89 : f32 to vector<8x32xf32>
    %302 = arith.addf %301, %300 : vector<8x32xf32>
    %303 = arith.divf %301, %302 : vector<8x32xf32>
    %304 = vector.extract_strided_slice %297 {offsets = [0, 32], sizes = [8, 32], strides = [1, 1]} : vector<8x128xf32> to vector<8x32xf32>
    %305 = arith.negf %304 : vector<8x32xf32>
    %306 = math.exp %305 : vector<8x32xf32>
    %cst_90 = arith.constant 1.000000e+00 : f32
    %307 = vector.broadcast %cst_90 : f32 to vector<8x32xf32>
    %308 = arith.addf %307, %306 : vector<8x32xf32>
    %309 = arith.divf %307, %308 : vector<8x32xf32>
    %310 = vector.extract_strided_slice %297 {offsets = [0, 64], sizes = [8, 32], strides = [1, 1]} : vector<8x128xf32> to vector<8x32xf32>
    %311 = math.tanh %310 : vector<8x32xf32>
    %312 = vector.extract_strided_slice %297 {offsets = [0, 96], sizes = [8, 32], strides = [1, 1]} : vector<8x128xf32> to vector<8x32xf32>
    %313 = arith.negf %312 : vector<8x32xf32>
    %314 = math.exp %313 : vector<8x32xf32>
    %cst_91 = arith.constant 1.000000e+00 : f32
    %315 = vector.broadcast %cst_91 : f32 to vector<8x32xf32>
    %316 = arith.addf %315, %314 : vector<8x32xf32>
    %317 = arith.divf %315, %316 : vector<8x32xf32>
    %318 = arith.mulf %309, %280 : vector<8x32xf32>
    %319 = arith.mulf %303, %311 : vector<8x32xf32>
    %320 = arith.addf %318, %319 : vector<8x32xf32>
    %321 = math.tanh %320 : vector<8x32xf32>
    %322 = arith.mulf %317, %321 : vector<8x32xf32>
    %c0_92 = arith.constant 0 : index
    %323 = arith.index_cast %291 : i32 to index
    %c0_93 = arith.constant 0 : index
    %c0_94 = arith.constant 0 : index
    %324 = vector.load %arg4[%c0_92, %323, %c0_93, %c0_94] : memref<1x8x8x32xf32, #tpu.memory_space<vmem>>, vector<1x1x8x32xf32>
    %325 = vector.shape_cast %324 : vector<1x1x8x32xf32> to vector<8x32xf32>
    %326 = vector.shape_cast %322 : vector<8x32xf32> to vector<1x1x8x32xf32>
    tpu.vector_store %arg4[%c0_92, %323, %c0_93, %c0_94], %326 {strides = array<i32>} : memref<1x8x8x32xf32, #tpu.memory_space<vmem>>, vector<1x1x8x32xf32>,
    %c8_i32 = arith.constant 8 : i32
    %c0_95 = arith.constant 0 : index
    %c0_96 = arith.constant 0 : index
    %327 = vector.load %arg5[%c0_95, %c0_96] : memref<8x32xf32, #tpu.memory_space<vmem>>, vector<8x32xf32>
    tpu.vector_store %arg5[%c0_95, %c0_96], %322 {strides = array<i32>} : memref<8x32xf32, #tpu.memory_space<vmem>>, vector<8x32xf32>,
    %c0_97 = arith.constant 0 : index
    %c0_98 = arith.constant 0 : index
    %328 = vector.load %arg6[%c0_97, %c0_98] : memref<8x32xf32, #tpu.memory_space<vmem>>, vector<8x32xf32>
    tpu.vector_store %arg6[%c0_97, %c0_98], %320 {strides = array<i32>} : memref<8x32xf32, #tpu.memory_space<vmem>>, vector<8x32xf32>,
    return
  }
  func.func @transform_0(%arg0: i32, %arg1: i32) -> (i32, i32, i32) {
    %c0_i32 = arith.constant 0 : i32
    %0 = arith.subi %c0_i32, %arg1 : i32
    %1 = arith.muli %arg0, %0 : i32
    %c1_i32 = arith.constant 1 : i32
    %2 = arith.subi %c1_i32, %arg0 : i32
    %3 = arith.muli %2, %arg1 : i32
    %4 = arith.addi %1, %3 : i32
    %c0_i32_0 = arith.constant 0 : i32
    %c0_i32_1 = arith.constant 0 : i32
    return %4, %c0_i32_0, %arg0 : i32, i32, i32
  }
  func.func @transform_1(%arg0: i32, %arg1: i32) -> (i32, i32, i32) {
    %c0_i32 = arith.constant 0 : i32
    %c0_i32_0 = arith.constant 0 : i32
    %c0_i32_1 = arith.constant 0 : i32
    return %arg0, %c0_i32, %c0_i32_0 : i32, i32, i32
  }
  func.func @transform_2(%arg0: i32, %arg1: i32) -> (i32, i32, i32, i32) {
    %c0_i32 = arith.constant 0 : i32
    %0 = arith.subi %c0_i32, %arg1 : i32
    %1 = arith.muli %arg0, %0 : i32
    %c1_i32 = arith.constant 1 : i32
    %2 = arith.subi %c1_i32, %arg0 : i32
    %3 = arith.muli %2, %arg1 : i32
    %4 = arith.addi %1, %3 : i32
    %c0_i32_0 = arith.constant 0 : i32
    %c0_i32_1 = arith.constant 0 : i32
    %c0_i32_2 = arith.constant 0 : i32
    return %arg0, %4, %c0_i32_0, %c0_i32_1 : i32, i32, i32, i32
  }
}

module attributes {stable_mosaic.version = 11 : i64} {
  func.func @_head_kernel(%arg0: i32, %arg1: memref<2x8x8x32xf32, #tpu.memory_space<vmem>>, %arg2: memref<32x32xbf16, #tpu.memory_space<vmem>>, %arg3: memref<32x32xbf16, #tpu.memory_space<vmem>>, %arg4: memref<1x32xf32, #tpu.memory_space<vmem>>, %arg5: memref<1x32xf32, #tpu.memory_space<vmem>>, %arg6: memref<1x1xf32, #tpu.memory_space<vmem>>, %arg7: memref<32x128xbf16, #tpu.memory_space<vmem>>, %arg8: memref<32x128xbf16, #tpu.memory_space<vmem>>, %arg9: memref<1x128xf32, #tpu.memory_space<vmem>>, %arg10: memref<1x128xf32, #tpu.memory_space<vmem>>, %arg11: memref<1x128xf32, #tpu.memory_space<vmem>>, %arg12: memref<1x128xf32, #tpu.memory_space<vmem>>, %arg13: memref<1x128xf32, #tpu.memory_space<vmem>>, %arg14: memref<128x3xbf16, #tpu.memory_space<vmem>>, %arg15: memref<1x3xf32, #tpu.memory_space<vmem>>, %arg16: memref<8x3xf32, #tpu.memory_space<vmem>>) attributes {dimension_semantics = [#tpu.dimension_semantics<parallel>], iteration_bounds = array<i64: 1>, scalar_prefetch = 0 : i64, scratch_operands = 0 : i64, tpu.core_type = #tpu.core_type<tc>, window_params = [{transform_indices = @transform_0, window_bounds = array<i64: 2, 8, 8, 32>}, {pipeline_mode = #tpu.pipeline_mode<synchronous>, transform_indices = @transform_1, window_bounds = array<i64: 32, 32>}, {pipeline_mode = #tpu.pipeline_mode<synchronous>, transform_indices = @transform_2, window_bounds = array<i64: 32, 32>}, {pipeline_mode = #tpu.pipeline_mode<synchronous>, transform_indices = @transform_3, window_bounds = array<i64: 1, 32>}, {pipeline_mode = #tpu.pipeline_mode<synchronous>, transform_indices = @transform_4, window_bounds = array<i64: 1, 32>}, {pipeline_mode = #tpu.pipeline_mode<synchronous>, transform_indices = @transform_5, window_bounds = array<i64: 1, 1>}, {pipeline_mode = #tpu.pipeline_mode<synchronous>, transform_indices = @transform_6, window_bounds = array<i64: 32, 128>}, {pipeline_mode = #tpu.pipeline_mode<synchronous>, transform_indices = @transform_7, window_bounds = array<i64: 32, 128>}, {pipeline_mode = #tpu.pipeline_mode<synchronous>, transform_indices = @transform_8, window_bounds = array<i64: 1, 128>}, {pipeline_mode = #tpu.pipeline_mode<synchronous>, transform_indices = @transform_9, window_bounds = array<i64: 1, 128>}, {pipeline_mode = #tpu.pipeline_mode<synchronous>, transform_indices = @transform_10, window_bounds = array<i64: 1, 128>}, {pipeline_mode = #tpu.pipeline_mode<synchronous>, transform_indices = @transform_11, window_bounds = array<i64: 1, 128>}, {pipeline_mode = #tpu.pipeline_mode<synchronous>, transform_indices = @transform_12, window_bounds = array<i64: 1, 128>}, {pipeline_mode = #tpu.pipeline_mode<synchronous>, transform_indices = @transform_13, window_bounds = array<i64: 128, 3>}, {pipeline_mode = #tpu.pipeline_mode<synchronous>, transform_indices = @transform_14, window_bounds = array<i64: 1, 3>}, {transform_indices = @transform_15, window_bounds = array<i64: 8, 3>}]} {
    %c0 = arith.constant 0 : index
    %c0_0 = arith.constant 0 : index
    %c0_1 = arith.constant 0 : index
    %c0_2 = arith.constant 0 : index
    %0 = vector.load %arg1[%c0, %c0_0, %c0_1, %c0_2] : memref<2x8x8x32xf32, #tpu.memory_space<vmem>>, vector<1x8x8x32xf32>
    %1 = vector.shape_cast %0 : vector<1x8x8x32xf32> to vector<8x8x32xf32>
    %c1 = arith.constant 1 : index
    %c0_3 = arith.constant 0 : index
    %c0_4 = arith.constant 0 : index
    %c0_5 = arith.constant 0 : index
    %2 = vector.load %arg1[%c1, %c0_3, %c0_4, %c0_5] : memref<2x8x8x32xf32, #tpu.memory_space<vmem>>, vector<1x8x8x32xf32>
    %3 = vector.shape_cast %2 : vector<1x8x8x32xf32> to vector<8x8x32xf32>
    %4 = vector.shape_cast %1 : vector<8x8x32xf32> to vector<64x32xf32>
    %5 = vector.shape_cast %3 : vector<8x8x32xf32> to vector<64x32xf32>
    %6 = arith.truncf %4 : vector<64x32xf32> to vector<64x32xbf16>
    %c0_6 = arith.constant 0 : index
    %c0_7 = arith.constant 0 : index
    %7 = vector.load %arg2[%c0_6, %c0_7] : memref<32x32xbf16, #tpu.memory_space<vmem>>, vector<32x32xbf16>
    %cst = arith.constant dense<0.000000e+00> : vector<64x32xf32>
    %8 = tpu.matmul %6, %7, %cst {dimension_numbers = #tpu.dot_dimension_numbers<[1], [0], [0], [1], [0, 0, 1, 1], [], []>} : vector<64x32xbf16>, vector<32x32xbf16>, vector<64x32xf32> -> vector<64x32xf32>
    %9 = arith.truncf %5 : vector<64x32xf32> to vector<64x32xbf16>
    %c0_8 = arith.constant 0 : index
    %c0_9 = arith.constant 0 : index
    %10 = vector.load %arg3[%c0_8, %c0_9] : memref<32x32xbf16, #tpu.memory_space<vmem>>, vector<32x32xbf16>
    %cst_10 = arith.constant dense<0.000000e+00> : vector<64x32xf32>
    %11 = tpu.matmul %9, %10, %cst_10 {dimension_numbers = #tpu.dot_dimension_numbers<[1], [0], [0], [1], [0, 0, 1, 1], [], []>} : vector<64x32xbf16>, vector<32x32xbf16>, vector<64x32xf32> -> vector<64x32xf32>
    %12 = arith.addf %8, %11 : vector<64x32xf32>
    %c0_11 = arith.constant 0 : index
    %c0_12 = arith.constant 0 : index
    %13 = vector.load %arg4[%c0_11, %c0_12] : memref<1x32xf32, #tpu.memory_space<vmem>>, vector<1x32xf32>
    %14 = vector.broadcast %13 : vector<1x32xf32> to vector<64x32xf32>
    %15 = arith.addf %12, %14 : vector<64x32xf32>
    %16 = math.tanh %15 : vector<64x32xf32>
    %17 = vector.shape_cast %16 : vector<64x32xf32> to vector<8x8x32xf32>
    %c0_13 = arith.constant 0 : index
    %c0_14 = arith.constant 0 : index
    %18 = vector.load %arg5[%c0_13, %c0_14] : memref<1x32xf32, #tpu.memory_space<vmem>>, vector<1x32xf32>
    %19 = vector.shape_cast %18 : vector<1x32xf32> to vector<1x1x32xf32>
    %20 = vector.broadcast %19 : vector<1x1x32xf32> to vector<8x8x32xf32>
    %21 = arith.mulf %17, %20 : vector<8x8x32xf32>
    %cst_15 = arith.constant dense<0.000000e+00> : vector<8x8xf32>
    %22 = vector.multi_reduction <add>, %21, %cst_15 [2] : vector<8x8x32xf32> to vector<8x8xf32>
    %23 = vector.shape_cast %22 : vector<8x8xf32> to vector<8x8x1xf32>
    %c0_16 = arith.constant 0 : index
    %c0_17 = arith.constant 0 : index
    %24 = vector.load %arg6[%c0_16, %c0_17] : memref<1x1xf32, #tpu.memory_space<vmem>>, vector<1x1xf32>
    %25 = vector.shape_cast %24 : vector<1x1xf32> to vector<1x1x1xf32>
    %26 = vector.broadcast %25 : vector<1x1x1xf32> to vector<8x8x1xf32>
    %27 = arith.addf %23, %26 : vector<8x8x1xf32>
    %cst_18 = arith.constant dense<0xFF800000> : vector<8x1xf32>
    %28 = vector.multi_reduction <maximumf>, %27, %cst_18 [0] : vector<8x8x1xf32> to vector<8x1xf32>
    %29 = vector.shape_cast %28 : vector<8x1xf32> to vector<1x8x1xf32>
    %30 = vector.broadcast %29 : vector<1x8x1xf32> to vector<8x8x1xf32>
    %31 = arith.subf %27, %30 : vector<8x8x1xf32>
    %32 = math.exp %31 : vector<8x8x1xf32>
    %cst_19 = arith.constant dense<0.000000e+00> : vector<8x1xf32>
    %33 = vector.multi_reduction <add>, %32, %cst_19 [0] : vector<8x8x1xf32> to vector<8x1xf32>
    %34 = vector.shape_cast %33 : vector<8x1xf32> to vector<1x8x1xf32>
    %35 = tpu.reciprocal %34 {approx = true} : vector<1x8x1xf32> -> vector<1x8x1xf32>
    %36 = vector.broadcast %35 : vector<1x8x1xf32> to vector<8x8x1xf32>
    %37 = arith.mulf %32, %36 : vector<8x8x1xf32>
    %38 = vector.broadcast %37 : vector<8x8x1xf32> to vector<8x8x32xf32>
    %39 = arith.mulf %38, %1 : vector<8x8x32xf32>
    %cst_20 = arith.constant dense<0.000000e+00> : vector<8x32xf32>
    %40 = vector.multi_reduction <add>, %39, %cst_20 [0] : vector<8x8x32xf32> to vector<8x32xf32>
    %41 = vector.broadcast %37 : vector<8x8x1xf32> to vector<8x8x32xf32>
    %42 = arith.mulf %41, %3 : vector<8x8x32xf32>
    %cst_21 = arith.constant dense<0.000000e+00> : vector<8x32xf32>
    %43 = vector.multi_reduction <add>, %42, %cst_21 [0] : vector<8x8x32xf32> to vector<8x32xf32>
    %44 = arith.truncf %40 : vector<8x32xf32> to vector<8x32xbf16>
    %c0_22 = arith.constant 0 : index
    %c0_23 = arith.constant 0 : index
    %45 = vector.load %arg7[%c0_22, %c0_23] : memref<32x128xbf16, #tpu.memory_space<vmem>>, vector<32x128xbf16>
    %cst_24 = arith.constant dense<0.000000e+00> : vector<8x128xf32>
    %46 = tpu.matmul %44, %45, %cst_24 {dimension_numbers = #tpu.dot_dimension_numbers<[1], [0], [0], [1], [0, 0, 1, 1], [], []>} : vector<8x32xbf16>, vector<32x128xbf16>, vector<8x128xf32> -> vector<8x128xf32>
    %47 = arith.truncf %43 : vector<8x32xf32> to vector<8x32xbf16>
    %c0_25 = arith.constant 0 : index
    %c0_26 = arith.constant 0 : index
    %48 = vector.load %arg8[%c0_25, %c0_26] : memref<32x128xbf16, #tpu.memory_space<vmem>>, vector<32x128xbf16>
    %cst_27 = arith.constant dense<0.000000e+00> : vector<8x128xf32>
    %49 = tpu.matmul %47, %48, %cst_27 {dimension_numbers = #tpu.dot_dimension_numbers<[1], [0], [0], [1], [0, 0, 1, 1], [], []>} : vector<8x32xbf16>, vector<32x128xbf16>, vector<8x128xf32> -> vector<8x128xf32>
    %50 = arith.addf %46, %49 : vector<8x128xf32>
    %c0_28 = arith.constant 0 : index
    %c0_29 = arith.constant 0 : index
    %51 = vector.load %arg9[%c0_28, %c0_29] : memref<1x128xf32, #tpu.memory_space<vmem>>, vector<1x128xf32>
    %52 = vector.broadcast %51 : vector<1x128xf32> to vector<8x128xf32>
    %53 = arith.addf %50, %52 : vector<8x128xf32>
    %c0_30 = arith.constant 0 : index
    %c0_31 = arith.constant 0 : index
    %54 = vector.load %arg12[%c0_30, %c0_31] : memref<1x128xf32, #tpu.memory_space<vmem>>, vector<1x128xf32>
    %55 = vector.broadcast %54 : vector<1x128xf32> to vector<8x128xf32>
    %56 = arith.subf %53, %55 : vector<8x128xf32>
    %c0_32 = arith.constant 0 : index
    %c0_33 = arith.constant 0 : index
    %57 = vector.load %arg13[%c0_32, %c0_33] : memref<1x128xf32, #tpu.memory_space<vmem>>, vector<1x128xf32>
    %cst_34 = arith.constant 9.99999974E-6 : f32
    %58 = vector.broadcast %cst_34 : f32 to vector<1x128xf32>
    %59 = arith.addf %57, %58 : vector<1x128xf32>
    %60 = math.rsqrt %59 : vector<1x128xf32>
    %61 = vector.broadcast %60 : vector<1x128xf32> to vector<8x128xf32>
    %62 = arith.mulf %56, %61 : vector<8x128xf32>
    %c0_35 = arith.constant 0 : index
    %c0_36 = arith.constant 0 : index
    %63 = vector.load %arg10[%c0_35, %c0_36] : memref<1x128xf32, #tpu.memory_space<vmem>>, vector<1x128xf32>
    %64 = vector.broadcast %63 : vector<1x128xf32> to vector<8x128xf32>
    %65 = arith.mulf %62, %64 : vector<8x128xf32>
    %c0_37 = arith.constant 0 : index
    %c0_38 = arith.constant 0 : index
    %66 = vector.load %arg11[%c0_37, %c0_38] : memref<1x128xf32, #tpu.memory_space<vmem>>, vector<1x128xf32>
    %67 = vector.broadcast %66 : vector<1x128xf32> to vector<8x128xf32>
    %68 = arith.addf %65, %67 : vector<8x128xf32>
    %cst_39 = arith.constant 0.000000e+00 : f32
    %69 = vector.broadcast %cst_39 : f32 to vector<8x128xf32>
    %70 = arith.maximumf %68, %69 : vector<8x128xf32>
    %71 = arith.truncf %70 : vector<8x128xf32> to vector<8x128xbf16>
    %c0_40 = arith.constant 0 : index
    %c0_41 = arith.constant 0 : index
    %72 = vector.load %arg14[%c0_40, %c0_41] : memref<128x3xbf16, #tpu.memory_space<vmem>>, vector<128x3xbf16>
    %cst_42 = arith.constant dense<0.000000e+00> : vector<8x3xf32>
    %73 = tpu.matmul %71, %72, %cst_42 {dimension_numbers = #tpu.dot_dimension_numbers<[1], [0], [0], [1], [0, 0, 1, 1], [], []>} : vector<8x128xbf16>, vector<128x3xbf16>, vector<8x3xf32> -> vector<8x3xf32>
    %c0_43 = arith.constant 0 : index
    %c0_44 = arith.constant 0 : index
    %74 = vector.load %arg15[%c0_43, %c0_44] : memref<1x3xf32, #tpu.memory_space<vmem>>, vector<1x3xf32>
    %75 = vector.broadcast %74 : vector<1x3xf32> to vector<8x3xf32>
    %76 = arith.addf %73, %75 : vector<8x3xf32>
    %cst_45 = arith.constant dense<0xFF800000> : vector<8xf32>
    %77 = vector.multi_reduction <maximumf>, %76, %cst_45 [1] : vector<8x3xf32> to vector<8xf32>
    %78 = vector.shape_cast %77 : vector<8xf32> to vector<8x1xf32>
    %79 = vector.broadcast %78 : vector<8x1xf32> to vector<8x3xf32>
    %80 = arith.subf %76, %79 : vector<8x3xf32>
    %81 = math.exp %80 : vector<8x3xf32>
    %cst_46 = arith.constant dense<0.000000e+00> : vector<8xf32>
    %82 = vector.multi_reduction <add>, %81, %cst_46 [1] : vector<8x3xf32> to vector<8xf32>
    %83 = vector.shape_cast %82 : vector<8xf32> to vector<8x1xf32>
    %84 = vector.broadcast %83 : vector<8x1xf32> to vector<8x3xf32>
    %85 = arith.divf %81, %84 : vector<8x3xf32>
    %c0_47 = arith.constant 0 : index
    %c0_48 = arith.constant 0 : index
    %86 = vector.load %arg16[%c0_47, %c0_48] : memref<8x3xf32, #tpu.memory_space<vmem>>, vector<8x3xf32>
    tpu.vector_store %arg16[%c0_47, %c0_48], %85 {strides = array<i32>} : memref<8x3xf32, #tpu.memory_space<vmem>>, vector<8x3xf32>,
    return
  }
  func.func @transform_0(%arg0: i32) -> (i32, i32, i32, i32) {
    %c0_i32 = arith.constant 0 : i32
    %c0_i32_0 = arith.constant 0 : i32
    %c0_i32_1 = arith.constant 0 : i32
    %c0_i32_2 = arith.constant 0 : i32
    return %c0_i32, %c0_i32_0, %arg0, %c0_i32_1 : i32, i32, i32, i32
  }
  func.func @transform_1(%arg0: i32) -> (i32, i32) {
    %c0_i32 = arith.constant 0 : i32
    %c0_i32_0 = arith.constant 0 : i32
    %c0_i32_1 = arith.constant 0 : i32
    return %c0_i32, %c0_i32_0 : i32, i32
  }
  func.func @transform_2(%arg0: i32) -> (i32, i32) {
    %c0_i32 = arith.constant 0 : i32
    %c0_i32_0 = arith.constant 0 : i32
    %c0_i32_1 = arith.constant 0 : i32
    return %c0_i32, %c0_i32_0 : i32, i32
  }
  func.func @transform_3(%arg0: i32) -> (i32, i32) {
    %c0_i32 = arith.constant 0 : i32
    %c0_i32_0 = arith.constant 0 : i32
    %c0_i32_1 = arith.constant 0 : i32
    return %c0_i32, %c0_i32_0 : i32, i32
  }
  func.func @transform_4(%arg0: i32) -> (i32, i32) {
    %c0_i32 = arith.constant 0 : i32
    %c0_i32_0 = arith.constant 0 : i32
    %c0_i32_1 = arith.constant 0 : i32
    return %c0_i32, %c0_i32_0 : i32, i32
  }
  func.func @transform_5(%arg0: i32) -> (i32, i32) {
    %c0_i32 = arith.constant 0 : i32
    %c0_i32_0 = arith.constant 0 : i32
    %c0_i32_1 = arith.constant 0 : i32
    return %c0_i32, %c0_i32_0 : i32, i32
  }
  func.func @transform_6(%arg0: i32) -> (i32, i32) {
    %c0_i32 = arith.constant 0 : i32
    %c0_i32_0 = arith.constant 0 : i32
    %c0_i32_1 = arith.constant 0 : i32
    return %c0_i32, %c0_i32_0 : i32, i32
  }
  func.func @transform_7(%arg0: i32) -> (i32, i32) {
    %c0_i32 = arith.constant 0 : i32
    %c0_i32_0 = arith.constant 0 : i32
    %c0_i32_1 = arith.constant 0 : i32
    return %c0_i32, %c0_i32_0 : i32, i32
  }
  func.func @transform_8(%arg0: i32) -> (i32, i32) {
    %c0_i32 = arith.constant 0 : i32
    %c0_i32_0 = arith.constant 0 : i32
    %c0_i32_1 = arith.constant 0 : i32
    return %c0_i32, %c0_i32_0 : i32, i32
  }
  func.func @transform_9(%arg0: i32) -> (i32, i32) {
    %c0_i32 = arith.constant 0 : i32
    %c0_i32_0 = arith.constant 0 : i32
    %c0_i32_1 = arith.constant 0 : i32
    return %c0_i32, %c0_i32_0 : i32, i32
  }
  func.func @transform_10(%arg0: i32) -> (i32, i32) {
    %c0_i32 = arith.constant 0 : i32
    %c0_i32_0 = arith.constant 0 : i32
    %c0_i32_1 = arith.constant 0 : i32
    return %c0_i32, %c0_i32_0 : i32, i32
  }
  func.func @transform_11(%arg0: i32) -> (i32, i32) {
    %c0_i32 = arith.constant 0 : i32
    %c0_i32_0 = arith.constant 0 : i32
    %c0_i32_1 = arith.constant 0 : i32
    return %c0_i32, %c0_i32_0 : i32, i32
  }
  func.func @transform_12(%arg0: i32) -> (i32, i32) {
    %c0_i32 = arith.constant 0 : i32
    %c0_i32_0 = arith.constant 0 : i32
    %c0_i32_1 = arith.constant 0 : i32
    return %c0_i32, %c0_i32_0 : i32, i32
  }
  func.func @transform_13(%arg0: i32) -> (i32, i32) {
    %c0_i32 = arith.constant 0 : i32
    %c0_i32_0 = arith.constant 0 : i32
    %c0_i32_1 = arith.constant 0 : i32
    return %c0_i32, %c0_i32_0 : i32, i32
  }
  func.func @transform_14(%arg0: i32) -> (i32, i32) {
    %c0_i32 = arith.constant 0 : i32
    %c0_i32_0 = arith.constant 0 : i32
    %c0_i32_1 = arith.constant 0 : i32
    return %c0_i32, %c0_i32_0 : i32, i32
  }
  func.func @transform_15(%arg0: i32) -> (i32, i32) {
    %c0_i32 = arith.constant 0 : i32
    %c0_i32_0 = arith.constant 0 : i32
    return %arg0, %c0_i32 : i32, i32
  }
}

</mosaic_0001>

<llo_original>
// kernel: lstm_model_forward.5
$region0: #{lstm_model_forward.5}
  #allocation0 [shape = 'u32[]', space=smem, size = 0x4, offset = 0x4, fixed_abs, tag = 'smem constant byte address 0x4 - core index']
  #allocation1 [shape = 'u32[144,128]{1,0:T(1,128)}', space=vmem, size = 0x12000, scoped, tag = 'internal scratch']
  %s0 = inlined_call_operand.vmem [shape: f32[64,32], index: 0, kind: input, shape index: {}]
  %s1 = inlined_call_operand.vmem [shape: bf16[32,256], index: 1, kind: input, shape index: {}]
  %s2 = inlined_call_operand.vmem [shape: f32[1,256], index: 2, kind: input, shape index: {}]
  %s3 = inlined_call_operand.vmem [shape: f32[64,256], index: 3, kind: output, shape index: {}]
  %s4 = sld [smem:[#allocation0]]
  $region22: #{lstm_model_forward.5} parent=0
    _
  %s6 = ssub.s32 1, %s4
  %s7 = scalar_select 0, %s6, %s4
  // Predicated region
  $region2: #{lstm_model_forward.5} parent=0 // pred_check
    _
  $region3: #{lstm_model_forward.5} parent=0 // pred_check_branch
    %9 = sbr.rel (0) target = $region5
  $region4: #{lstm_model_forward.5} parent=0 // pred_region
    _
  $region5: #{lstm_model_forward.5} parent=0 // pred_fallthru
    _
  // Predicated region
  $region6: #{lstm_model_forward.5} parent=0 // pred_check
    _
  $region7: #{lstm_model_forward.5} parent=0 // pred_check_branch
    %11 = sbr.rel (0) target = $region9
  $region8: #{lstm_model_forward.5} parent=0 // pred_region
    _
  $region9: #{lstm_model_forward.5} parent=0 // pred_fallthru
    _
  // Predicated region
  $region10: #{lstm_model_forward.5} parent=0 // pred_check
    _
  $region11: #{lstm_model_forward.5} parent=0 // pred_check_branch
    %13 = sbr.rel (0) target = $region13
  $region12: #{lstm_model_forward.5} parent=0 // pred_region
    _
  $region13: #{lstm_model_forward.5} parent=0 // pred_fallthru
    _
  %v15 = vld [vmem:[%s0] sm:$0xff]
  %v16 = vld [vmem:[%s0 + $0x8] sm:$0xff]
  %v17 = vld [vmem:[%s0 + $0x10] sm:$0xff]
  %v18 = vld [vmem:[%s0 + $0x18] sm:$0xff]
  %v19 = vld [vmem:[%s0 + $0x20] sm:$0xff]
  %v20 = vld [vmem:[%s0 + $0x28] sm:$0xff]
  %v21 = vld [vmem:[%s0 + $0x30] sm:$0xff]
  %v22 = vld [vmem:[%s0 + $0x38] sm:$0xff]
  %v23 = vpack.c.bf16 %v16, %v15
  %v24 = vpack.c.bf16 %v18, %v17
  %v25 = vpack.c.bf16 %v20, %v19
  %v26 = vpack.c.bf16 %v22, %v21
  %v27 = vld [vmem:[%s1] sm:$0xff]
  %v28 = vld [vmem:[%s1 + $0x8] sm:$0xff]
  %v29 = vld [vmem:[%s1 + $0x10] sm:$0xff]
  %v30 = vld [vmem:[%s1 + $0x18] sm:$0xff]
  %v31 = vld [vmem:[%s2] sm:$0x3]
  %v33 = vlaneseq
  %v34 = vshrl.u32 %v33, 7
  %v35 = vsub.s32 0, %v34
  %v36 = vrot.slane %v31, %v35
  %v37 = vlaneseq
  %v38 = vshrl.u32 %v37, 7
  %v39 = vsub.s32 1, %v38
  %v40 = vrot.slane %v31, %v39
  %v47 = vunpack.c.l.b16 %v27
  %v48 = vunpack.c.h.b16 %v27
  %v49 = vunpack.c.l.b16 %v28
  %v50 = vunpack.c.h.b16 %v28
  %v51 = vunpack.c.l.b16 %v29
  %v52 = vunpack.c.h.b16 %v29
  %v53 = vunpack.c.l.b16 %v30
  %v54 = vunpack.c.h.b16 %v30
  %v55 = vpack.c.b16 %v49, %v47
  %v56 = vpack.c.b16 %v50, %v48
  %v57 = vpack.c.b16 %v53, %v51
  %v58 = vpack.c.b16 %v54, %v52
  %vm63 = vcmask 261120
  %v65 = vsel %vm63, %v23, 0
  %v68 = vsel %vm63, %v24, 0
  %v71 = vsel %vm63, %v25, 0
  %v74 = vsel %vm63, %v26, 0
  %76 = vmatprep.subr.bf16.mxu0 0
  %77 = vmatpush1.bf16.msra.mxu0 0
  %78 = vmatprep.subr.bf16.mxu0 0
  %79 = vmatpush1.bf16.msra.mxu0 0
  %80 = vmatprep.subr.bf16.mxu0 0
  %81 = vmatpush1.bf16.msra.mxu0 0
  %82 = vmatprep.subr.bf16.mxu0 0
  %83 = vmatpush1.bf16.msra.mxu0 0
  %84 = vmatprep.subr.bf16.mxu0 0
  %85 = vmatpush1.bf16.msra.mxu0 0
  %86 = vmatprep.subr.bf16.mxu0 0
  %87 = vmatpush1.bf16.msra.mxu0 0
  %88 = vmatprep.subr.bf16.mxu0 %v58
  %89 = vmatpush1.bf16.msra.mxu0 %v57
  %90 = vmatprep.subr.bf16.mxu0 %v56
  %91 = vmatpush1.bf16.msra.mxu0 %v55
  %92 = vmatprep.subr.bf16.mxu0 0
  %93 = vmatpush2.bf16.msra.mxu0 0
  %94 = vmatprep.subr.bf16.mxu0 0
  %95 = vmatpush2.bf16.msra.mxu0 0
  %96 = vmatprep.subr.bf16.mxu0 0
  %97 = vmatpush2.bf16.msra.mxu0 0
  %98 = vmatprep.subr.bf16.mxu0 0
  %99 = vmatpush2.bf16.msra.mxu0 0
  %100 = vmatprep.subr.bf16.mxu0 0
  %101 = vmatpush2.bf16.msra.mxu0 0
  %102 = vmatprep.subr.bf16.mxu0 0
  %103 = vmatpush2.bf16.msra.mxu0 0
  %104 = vmatprep.subr.bf16.mxu0 0
  %105 = vmatpush2.bf16.msra.mxu0 0
  %106 = vmatprep.subr.bf16.mxu0 0
  %107 = vmatpush2.bf16.msra.mxu0 0
  %108 = vmatprep.mubr.bf16.mxu0 0
  %109 = vmatmul.mubr.bf16.gmra.mxu0 %v65
  %v110 = vpop.f32.mrf.mxu0
  %v111 = vadd.f32 %v36, %v110
  %v112 = vpop.f32.mrf.mxu0
  %v113 = vadd.f32 %v40, %v112
  %v114 = vpop.f32.mrf.mxu0
  %v115 = vadd.f32 %v36, %v114
  %v116 = vpop.f32.mrf.mxu0
  %v117 = vadd.f32 %v40, %v116
  %118 = vmatprep.mubr.bf16.mxu0 0
  %119 = vmatmul.mubr.bf16.gmra.mxu0 %v68
  %v120 = vpop.f32.mrf.mxu0
  %v121 = vadd.f32 %v36, %v120
  %v122 = vpop.f32.mrf.mxu0
  %v123 = vadd.f32 %v40, %v122
  %v124 = vpop.f32.mrf.mxu0
  %v125 = vadd.f32 %v36, %v124
  %v126 = vpop.f32.mrf.mxu0
  %v127 = vadd.f32 %v40, %v126
  %128 = vmatprep.mubr.bf16.mxu0 0
  %129 = vmatmul.mubr.bf16.gmra.mxu0 %v71
  %v130 = vpop.f32.mrf.mxu0
  %v131 = vadd.f32 %v36, %v130
  %v132 = vpop.f32.mrf.mxu0
  %v133 = vadd.f32 %v40, %v132
  %v134 = vpop.f32.mrf.mxu0
  %v135 = vadd.f32 %v36, %v134
  %v136 = vpop.f32.mrf.mxu0
  %v137 = vadd.f32 %v40, %v136
  %138 = vmatprep.mubr.bf16.mxu0 0
  %139 = vmatmul.mubr.bf16.gmra.mxu0 %v74
  %v140 = vpop.f32.mrf.mxu0
  %v141 = vadd.f32 %v36, %v140
  %v142 = vpop.f32.mrf.mxu0
  %v143 = vadd.f32 %v40, %v142
  %v144 = vpop.f32.mrf.mxu0
  %v145 = vadd.f32 %v36, %v144
  %v146 = vpop.f32.mrf.mxu0
  %v147 = vadd.f32 %v40, %v146
  %148 = vdwg.mxu0
  %149 = vst [vmem:[%s3] sm:$0xff] %v111
  %150 = vst [vmem:[%s3 + $0x8] sm:$0xff] %v113
  %151 = vst [vmem:[%s3 + $0x10] sm:$0xff] %v115
  %152 = vst [vmem:[%s3 + $0x18] sm:$0xff] %v117
  %153 = vst [vmem:[%s3 + $0x20] sm:$0xff] %v121
  %154 = vst [vmem:[%s3 + $0x28] sm:$0xff] %v123
  %155 = vst [vmem:[%s3 + $0x30] sm:$0xff] %v125
  %156 = vst [vmem:[%s3 + $0x38] sm:$0xff] %v127
  %157 = vst [vmem:[%s3 + $0x40] sm:$0xff] %v131
  %158 = vst [vmem:[%s3 + $0x48] sm:$0xff] %v133
  %159 = vst [vmem:[%s3 + $0x50] sm:$0xff] %v135
  %160 = vst [vmem:[%s3 + $0x58] sm:$0xff] %v137
  %161 = vst [vmem:[%s3 + $0x60] sm:$0xff] %v141
  %162 = vst [vmem:[%s3 + $0x68] sm:$0xff] %v143
  %163 = vst [vmem:[%s3 + $0x70] sm:$0xff] %v145
  %164 = vst [vmem:[%s3 + $0x78] sm:$0xff] %v147
  // Predicated region
  $region14: #{lstm_model_forward.5} parent=0 // pred_check
    _
  $region15: #{lstm_model_forward.5} parent=0 // pred_check_branch
    %166 = sbr.rel (0) target = $region17
  $region16: #{lstm_model_forward.5} parent=0 // pred_region
    _
  $region17: #{lstm_model_forward.5} parent=0 // pred_fallthru
    _
  // Predicated region
  $region18: #{lstm_model_forward.5} parent=0 // pred_check
    _
  $region19: #{lstm_model_forward.5} parent=0 // pred_check_branch
    %168 = sbr.rel (0) target = $region21
  $region20: #{lstm_model_forward.5} parent=0 // pred_region
    _
  $region21: #{lstm_model_forward.5} parent=0 // pred_fallthru
    _

// kernel: lstm_model_forward.7
$region0: #{lstm_model_forward.7}
  #allocation0 [shape = 'u32[]', space=smem, size = 0x4, offset = 0x4, fixed_abs, tag = 'smem constant byte address 0x4 - core index']
  #allocation1 [shape = 'u32[144,128]{1,0:T(1,128)}', space=vmem, size = 0x12000, scoped, tag = 'internal scratch']
  %s0 = inlined_call_operand.vmem [shape: f32[64,32], index: 0, kind: input, shape index: {}]
  %s1 = inlined_call_operand.vmem [shape: bf16[32,256], index: 1, kind: input, shape index: {}]
  %s2 = inlined_call_operand.vmem [shape: f32[64,32], index: 2, kind: input, shape index: {}]
  %s3 = inlined_call_operand.vmem [shape: bf16[32,256], index: 3, kind: input, shape index: {}]
  %s4 = inlined_call_operand.vmem [shape: f32[1,256], index: 4, kind: input, shape index: {}]
  %s5 = inlined_call_operand.vmem [shape: f32[64,256], index: 5, kind: output, shape index: {}]
  %s6 = sld [smem:[#allocation0]]
  $region30: #{lstm_model_forward.7} parent=0
    _
  %s8 = ssub.s32 1, %s6
  %s9 = scalar_select 0, %s8, %s6
  // Predicated region
  $region2: #{lstm_model_forward.7} parent=0 // pred_check
    _
  $region3: #{lstm_model_forward.7} parent=0 // pred_check_branch
    %11 = sbr.rel (0) target = $region5
  $region4: #{lstm_model_forward.7} parent=0 // pred_region
    _
  $region5: #{lstm_model_forward.7} parent=0 // pred_fallthru
    _
  // Predicated region
  $region6: #{lstm_model_forward.7} parent=0 // pred_check
    _
  $region7: #{lstm_model_forward.7} parent=0 // pred_check_branch
    %13 = sbr.rel (0) target = $region9
  $region8: #{lstm_model_forward.7} parent=0 // pred_region
    _
  $region9: #{lstm_model_forward.7} parent=0 // pred_fallthru
    _
  // Predicated region
  $region10: #{lstm_model_forward.7} parent=0 // pred_check
    _
  $region11: #{lstm_model_forward.7} parent=0 // pred_check_branch
    %15 = sbr.rel (0) target = $region13
  $region12: #{lstm_model_forward.7} parent=0 // pred_region
    _
  $region13: #{lstm_model_forward.7} parent=0 // pred_fallthru
    _
  // Predicated region
  $region14: #{lstm_model_forward.7} parent=0 // pred_check
    _
  $region15: #{lstm_model_forward.7} parent=0 // pred_check_branch
    %17 = sbr.rel (0) target = $region17
  $region16: #{lstm_model_forward.7} parent=0 // pred_region
    _
  $region17: #{lstm_model_forward.7} parent=0 // pred_fallthru
    _
  // Predicated region
  $region18: #{lstm_model_forward.7} parent=0 // pred_check
    _
  $region19: #{lstm_model_forward.7} parent=0 // pred_check_branch
    %19 = sbr.rel (0) target = $region21
  $region20: #{lstm_model_forward.7} parent=0 // pred_region
    _
  $region21: #{lstm_model_forward.7} parent=0 // pred_fallthru
    _
  %v21 = vld [vmem:[%s0] sm:$0xff]
  %v22 = vld [vmem:[%s0 + $0x8] sm:$0xff]
  %v23 = vld [vmem:[%s0 + $0x10] sm:$0xff]
  %v24 = vld [vmem:[%s0 + $0x18] sm:$0xff]
  %v25 = vld [vmem:[%s0 + $0x20] sm:$0xff]
  %v26 = vld [vmem:[%s0 + $0x28] sm:$0xff]
  %v27 = vld [vmem:[%s0 + $0x30] sm:$0xff]
  %v28 = vld [vmem:[%s0 + $0x38] sm:$0xff]
  %v29 = vpack.c.bf16 %v22, %v21
  %v30 = vpack.c.bf16 %v24, %v23
  %v31 = vpack.c.bf16 %v26, %v25
  %v32 = vpack.c.bf16 %v28, %v27
  %v33 = vld [vmem:[%s1] sm:$0xff]
  %v34 = vld [vmem:[%s1 + $0x8] sm:$0xff]
  %v35 = vld [vmem:[%s1 + $0x10] sm:$0xff]
  %v36 = vld [vmem:[%s1 + $0x18] sm:$0xff]
  %v37 = vld [vmem:[%s2] sm:$0xff]
  %v38 = vld [vmem:[%s2 + $0x8] sm:$0xff]
  %v39 = vld [vmem:[%s2 + $0x10] sm:$0xff]
  %v40 = vld [vmem:[%s2 + $0x18] sm:$0xff]
  %v41 = vld [vmem:[%s2 + $0x20] sm:$0xff]
  %v42 = vld [vmem:[%s2 + $0x28] sm:$0xff]
  %v43 = vld [vmem:[%s2 + $0x30] sm:$0xff]
  %v44 = vld [vmem:[%s2 + $0x38] sm:$0xff]
  %v45 = vpack.c.bf16 %v38, %v37
  %v46 = vpack.c.bf16 %v40, %v39
  %v47 = vpack.c.bf16 %v42, %v41
  %v48 = vpack.c.bf16 %v44, %v43
  %v49 = vld [vmem:[%s3] sm:$0xff]
  %v50 = vld [vmem:[%s3 + $0x8] sm:$0xff]
  %v51 = vld [vmem:[%s3 + $0x10] sm:$0xff]
  %v52 = vld [vmem:[%s3 + $0x18] sm:$0xff]
  %v57 = vunpack.c.l.b16 %v49
  %v58 = vunpack.c.h.b16 %v49
  %v59 = vunpack.c.l.b16 %v50
  %v60 = vunpack.c.h.b16 %v50
  %v61 = vunpack.c.l.b16 %v51
  %v62 = vunpack.c.h.b16 %v51
  %v63 = vunpack.c.l.b16 %v52
  %v64 = vunpack.c.h.b16 %v52
  %v65 = vpack.c.b16 %v59, %v57
  %v66 = vpack.c.b16 %v60, %v58
  %v67 = vpack.c.b16 %v63, %v61
  %v68 = vpack.c.b16 %v64, %v62
  %vm73 = vcmask 261120
  %v75 = vsel %vm73, %v45, 0
  %v78 = vsel %vm73, %v46, 0
  %v81 = vsel %vm73, %v47, 0
  %v84 = vsel %vm73, %v48, 0
  %86 = vmatprep.subr.bf16.mxu0 0
  %87 = vmatpush1.bf16.msra.mxu0 0
  %88 = vmatprep.subr.bf16.mxu0 0
  %89 = vmatpush1.bf16.msra.mxu0 0
  %90 = vmatprep.subr.bf16.mxu0 0
  %91 = vmatpush1.bf16.msra.mxu0 0
  %92 = vmatprep.subr.bf16.mxu0 0
  %93 = vmatpush1.bf16.msra.mxu0 0
  %94 = vmatprep.subr.bf16.mxu0 0
  %95 = vmatpush1.bf16.msra.mxu0 0
  %96 = vmatprep.subr.bf16.mxu0 0
  %97 = vmatpush1.bf16.msra.mxu0 0
  %98 = vmatprep.subr.bf16.mxu0 %v68
  %99 = vmatpush1.bf16.msra.mxu0 %v67
  %100 = vmatprep.subr.bf16.mxu0 %v66
  %101 = vmatpush1.bf16.msra.mxu0 %v65
  %102 = vmatprep.subr.bf16.mxu0 0
  %103 = vmatpush2.bf16.msra.mxu0 0
  %104 = vmatprep.subr.bf16.mxu0 0
  %105 = vmatpush2.bf16.msra.mxu0 0
  %106 = vmatprep.subr.bf16.mxu0 0
  %107 = vmatpush2.bf16.msra.mxu0 0
  %108 = vmatprep.subr.bf16.mxu0 0
  %109 = vmatpush2.bf16.msra.mxu0 0
  %110 = vmatprep.subr.bf16.mxu0 0
  %111 = vmatpush2.bf16.msra.mxu0 0
  %112 = vmatprep.subr.bf16.mxu0 0
  %113 = vmatpush2.bf16.msra.mxu0 0
  %114 = vmatprep.subr.bf16.mxu0 0
  %115 = vmatpush2.bf16.msra.mxu0 0
  %116 = vmatprep.subr.bf16.mxu0 0
  %117 = vmatpush2.bf16.msra.mxu0 0
  %118 = vmatprep.mubr.bf16.mxu0 0
  %119 = vmatmul.mubr.bf16.gmra.mxu0 %v75
  %v120 = vpop.f32.mrf.mxu0
  %v121 = vadd.f32 0.0, %v120
  %v122 = vpop.f32.mrf.mxu0
  %v123 = vadd.f32 0.0, %v122
  %v124 = vpop.f32.mrf.mxu0
  %v125 = vadd.f32 0.0, %v124
  %v126 = vpop.f32.mrf.mxu0
  %v127 = vadd.f32 0.0, %v126
  %128 = vmatprep.mubr.bf16.mxu0 0
  %129 = vmatmul.mubr.bf16.gmra.mxu0 %v78
  %v130 = vpop.f32.mrf.mxu0
  %v131 = vadd.f32 0.0, %v130
  %v132 = vpop.f32.mrf.mxu0
  %v133 = vadd.f32 0.0, %v132
  %v134 = vpop.f32.mrf.mxu0
  %v135 = vadd.f32 0.0, %v134
  %v136 = vpop.f32.mrf.mxu0
  %v137 = vadd.f32 0.0, %v136
  %138 = vmatprep.mubr.bf16.mxu0 0
  %139 = vmatmul.mubr.bf16.gmra.mxu0 %v81
  %v140 = vpop.f32.mrf.mxu0
  %v141 = vadd.f32 0.0, %v140
  %v142 = vpop.f32.mrf.mxu0
  %v143 = vadd.f32 0.0, %v142
  %v144 = vpop.f32.mrf.mxu0
  %v145 = vadd.f32 0.0, %v144
  %v146 = vpop.f32.mrf.mxu0
  %v147 = vadd.f32 0.0, %v146
  %148 = vmatprep.mubr.bf16.mxu0 0
  %149 = vmatmul.mubr.bf16.gmra.mxu0 %v84
  %v150 = vpop.f32.mrf.mxu0
  %v151 = vadd.f32 0.0, %v150
  %v152 = vpop.f32.mrf.mxu0
  %v153 = vadd.f32 0.0, %v152
  %v154 = vpop.f32.mrf.mxu0
  %v155 = vadd.f32 0.0, %v154
  %v156 = vpop.f32.mrf.mxu0
  %v157 = vadd.f32 0.0, %v156
  %158 = vdwg.mxu0
  %v163 = vunpack.c.l.b16 %v33
  %v164 = vunpack.c.h.b16 %v33
  %v165 = vunpack.c.l.b16 %v34
  %v166 = vunpack.c.h.b16 %v34
  %v167 = vunpack.c.l.b16 %v35
  %v168 = vunpack.c.h.b16 %v35
  %v169 = vunpack.c.l.b16 %v36
  %v170 = vunpack.c.h.b16 %v36
  %v171 = vpack.c.b16 %v165, %v163
  %v172 = vpack.c.b16 %v166, %v164
  %v173 = vpack.c.b16 %v169, %v167
  %v174 = vpack.c.b16 %v170, %v168
  %v180 = vsel %vm73, %v29, 0
  %v183 = vsel %vm73, %v30, 0
  %v186 = vsel %vm73, %v31, 0
  %v189 = vsel %vm73, %v32, 0
  %191 = vmatprep.subr.bf16.mxu0 0
  %192 = vmatpush1.bf16.msra.mxu0 0
  %193 = vmatprep.subr.bf16.mxu0 0
  %194 = vmatpush1.bf16.msra.mxu0 0
  %195 = vmatprep.subr.bf16.mxu0 0
  %196 = vmatpush1.bf16.msra.mxu0 0
  %197 = vmatprep.subr.bf16.mxu0 0
  %198 = vmatpush1.bf16.msra.mxu0 0
  %199 = vmatprep.subr.bf16.mxu0 0
  %200 = vmatpush1.bf16.msra.mxu0 0
  %201 = vmatprep.subr.bf16.mxu0 0
  %202 = vmatpush1.bf16.msra.mxu0 0
  %203 = vmatprep.subr.bf16.mxu0 %v174
  %204 = vmatpush1.bf16.msra.mxu0 %v173
  %205 = vmatprep.subr.bf16.mxu0 %v172
  %206 = vmatpush1.bf16.msra.mxu0 %v171
  %207 = vmatprep.subr.bf16.mxu0 0
  %208 = vmatpush2.bf16.msra.mxu0 0
  %209 = vmatprep.subr.bf16.mxu0 0
  %210 = vmatpush2.bf16.msra.mxu0 0
  %211 = vmatprep.subr.bf16.mxu0 0
  %212 = vmatpush2.bf16.msra.mxu0 0
  %213 = vmatprep.subr.bf16.mxu0 0
  %214 = vmatpush2.bf16.msra.mxu0 0
  %215 = vmatprep.subr.bf16.mxu0 0
  %216 = vmatpush2.bf16.msra.mxu0 0
  %217 = vmatprep.subr.bf16.mxu0 0
  %218 = vmatpush2.bf16.msra.mxu0 0
  %219 = vmatprep.subr.bf16.mxu0 0
  %220 = vmatpush2.bf16.msra.mxu0 0
  %221 = vmatprep.subr.bf16.mxu0 0
  %222 = vmatpush2.bf16.msra.mxu0 0
  %223 = vmatprep.mubr.bf16.mxu0 0
  %224 = vmatmul.mubr.bf16.gmra.mxu0 %v180
  %v225 = vpop.f32.mrf.mxu0
  %v226 = vadd.f32 %v121, %v225
  %v227 = vpop.f32.mrf.mxu0
  %v228 = vadd.f32 %v123, %v227
  %v229 = vpop.f32.mrf.mxu0
  %v230 = vadd.f32 %v125, %v229
  %v231 = vpop.f32.mrf.mxu0
  %v232 = vadd.f32 %v127, %v231
  %233 = vmatprep.mubr.bf16.mxu0 0
  %234 = vmatmul.mubr.bf16.gmra.mxu0 %v183
  %v235 = vpop.f32.mrf.mxu0
  %v236 = vadd.f32 %v131, %v235
  %v237 = vpop.f32.mrf.mxu0
  %v238 = vadd.f32 %v133, %v237
  %v239 = vpop.f32.mrf.mxu0
  %v240 = vadd.f32 %v135, %v239
  %v241 = vpop.f32.mrf.mxu0
  %v242 = vadd.f32 %v137, %v241
  %243 = vmatprep.mubr.bf16.mxu0 0
  %244 = vmatmul.mubr.bf16.gmra.mxu0 %v186
  %v245 = vpop.f32.mrf.mxu0
  %v246 = vadd.f32 %v141, %v245
  %v247 = vpop.f32.mrf.mxu0
  %v248 = vadd.f32 %v143, %v247
  %v249 = vpop.f32.mrf.mxu0
  %v250 = vadd.f32 %v145, %v249
  %v251 = vpop.f32.mrf.mxu0
  %v252 = vadd.f32 %v147, %v251
  %253 = vmatprep.mubr.bf16.mxu0 0
  %254 = vmatmul.mubr.bf16.gmra.mxu0 %v189
  %v255 = vpop.f32.mrf.mxu0
  %v256 = vadd.f32 %v151, %v255
  %v257 = vpop.f32.mrf.mxu0
  %v258 = vadd.f32 %v153, %v257
  %v259 = vpop.f32.mrf.mxu0
  %v260 = vadd.f32 %v155, %v259
  %v261 = vpop.f32.mrf.mxu0
  %v262 = vadd.f32 %v157, %v261
  %263 = vdwg.mxu0
  %v264 = vld [vmem:[%s4] sm:$0x3]
  %v266 = vlaneseq
  %v267 = vshrl.u32 %v266, 7
  %v268 = vsub.s32 0, %v267
  %v269 = vrot.slane %v264, %v268
  %v270 = vlaneseq
  %v271 = vshrl.u32 %v270, 7
  %v272 = vsub.s32 1, %v271
  %v273 = vrot.slane %v264, %v272
  %v276 = vadd.f32 %v226, %v269
  %v277 = vadd.f32 %v228, %v273
  %v278 = vadd.f32 %v230, %v269
  %v279 = vadd.f32 %v232, %v273
  %v280 = vadd.f32 %v236, %v269
  %v281 = vadd.f32 %v238, %v273
  %v282 = vadd.f32 %v240, %v269
  %v283 = vadd.f32 %v242, %v273
  %v284 = vadd.f32 %v246, %v269
  %v285 = vadd.f32 %v248, %v273
  %v286 = vadd.f32 %v250, %v269
  %v287 = vadd.f32 %v252, %v273
  %v288 = vadd.f32 %v256, %v269
  %v289 = vadd.f32 %v258, %v273
  %v290 = vadd.f32 %v260, %v269
  %v291 = vadd.f32 %v262, %v273
  %292 = vst [vmem:[%s5] sm:$0xff] %v276
  %293 = vst [vmem:[%s5 + $0x8] sm:$0xff] %v277
  %294 = vst [vmem:[%s5 + $0x10] sm:$0xff] %v278
  %295 = vst [vmem:[%s5 + $0x18] sm:$0xff] %v279
  %296 = vst [vmem:[%s5 + $0x20] sm:$0xff] %v280
  %297 = vst [vmem:[%s5 + $0x28] sm:$0xff] %v281
  %298 = vst [vmem:[%s5 + $0x30] sm:$0xff] %v282
  %299 = vst [vmem:[%s5 + $0x38] sm:$0xff] %v283
  %300 = vst [vmem:[%s5 + $0x40] sm:$0xff] %v284
  %301 = vst [vmem:[%s5 + $0x48] sm:$0xff] %v285
  %302 = vst [vmem:[%s5 + $0x50] sm:$0xff] %v286
  %303 = vst [vmem:[%s5 + $0x58] sm:$0xff] %v287
  %304 = vst [vmem:[%s5 + $0x60] sm:$0xff] %v288
  %305 = vst [vmem:[%s5 + $0x68] sm:$0xff] %v289
  %306 = vst [vmem:[%s5 + $0x70] sm:$0xff] %v290
  %307 = vst [vmem:[%s5 + $0x78] sm:$0xff] %v291
  // Predicated region
  $region22: #{lstm_model_forward.7} parent=0 // pred_check
    _
  $region23: #{lstm_model_forward.7} parent=0 // pred_check_branch
    %309 = sbr.rel (0) target = $region25
  $region24: #{lstm_model_forward.7} parent=0 // pred_region
    _
  $region25: #{lstm_model_forward.7} parent=0 // pred_fallthru
    _
  // Predicated region
  $region26: #{lstm_model_forward.7} parent=0 // pred_check
    _
  $region27: #{lstm_model_forward.7} parent=0 // pred_check_branch
    %311 = sbr.rel (0) target = $region29
  $region28: #{lstm_model_forward.7} parent=0 // pred_region
    _
  $region29: #{lstm_model_forward.7} parent=0 // pred_fallthru
    _

// kernel: lstm_model_forward.6
$region0: #{lstm_model_forward.6}
  #allocation0 [shape = 'u32[]', space=smem, size = 0x4, offset = 0x4, fixed_abs, tag = 'smem constant byte address 0x4 - core index']
  #allocation1 [shape = 'u32[144,128]{1,0:T(1,128)}', space=vmem, size = 0x12000, scoped, tag = 'internal scratch']
  #allocation2 [shape = 'f32[8,32]{1,0:T(8,128)}', space=vmem, size = 0x1000, scoped, tag = 'scratch operand']
  #allocation3 [shape = 'f32[8,32]{1,0:T(8,128)}', space=vmem, size = 0x1000, scoped, tag = 'scratch operand']
  %s0 = inlined_call_operand.vmem [shape: f32[8,8,256], index: 0, kind: input, shape index: {}]
  %s1 = inlined_call_operand.vmem [shape: bf16[2,32,128], index: 1, kind: input, shape index: {}]
  %s2 = inlined_call_operand.vmem [shape: f32[2,8,8,32], index: 2, kind: output, shape index: {}]
  %s3 = sld [smem:[#allocation0]]
  $region83: #{lstm_model_forward.6} parent=0
    _
  %s5 = ssub.s32 1, %s3
  %s6 = scalar_select 0, %s5, %s3
  $region1: #{lstm_model_forward.6} parent=0
    #allocation4 [shape = 'u8[65536]{0}', space=vmem, size = 0x10000, scoped, tag = 'input window, operand 0']
    loop: start=0, step=1, limit=4
    $region2: #{lstm_model_forward.6} parent=1 // loop_pre_header
      _
    $region3: #{lstm_model_forward.6} parent=1 // loop_header
      %s8 = sphi 0, %s12
      %p9 = scmp.ge.s32.totalorder %s8, 4
      %s15 = sphi 0, %s27
      %s16 = sphi 0, %s23
      %s17 = sphi 0, %s15
      %s18 = sphi 0, %s16
      %s19 = sphi 0, %s17
      %s20 = sphi 0, %s18
      %s42 = sphi 0, %s44
      %s45 = sphi 0, %s42
      %s46 = sphi 0, %s45
      %s62 = sphi 0, %s46
      %s68 = sphi 0, %s70
      %s71 = sphi 0, %s68
      %s72 = sphi 0, %s71
      %s88 = sphi 0, %s72
      %s106 = sphi 0, %s108
      %s109 = sphi 0, %s106
      %s110 = sphi 0, %s109
      %s126 = sphi 0, %s110
    $region4: #{lstm_model_forward.6} parent=1 // loop_header_branch
      %11 = sbr.rel (%p9) target = $region8
    $region5: #{lstm_model_forward.6} parent=1 // loop_body
      %s13 = ssub.s32 %s8, 1
      %s14 = ssub.s32 %s8, 2
      %s21 = sadd.s32 1, %s16
      %p22 = scmp.ge.s32.totalorder %s21, 1
      %s23 = scalar_select %p22, 0, %s21
      %s24 = sadd.s32 1, %s15
      %s25 = scalar_select %p22, %s24, %s15
      %p26 = scmp.ge.s32.totalorder %s25, 2
      %s27 = scalar_select %p26, 0, %s25
      %s28 = ssub.s32 0, %s16
      %s29 = smul.u32 %s15, %s28
      %s30 = ssub.s32 1, %s15
      %s31 = smul.u32 %s30, %s16
      %s32 = sadd.s32 %s29, %s31
      %s33 = ssub.s32 0, %s23
      %s34 = smul.u32 %s27, %s33
      %s35 = ssub.s32 1, %s27
      %s36 = smul.u32 %s35, %s23
      %s37 = sadd.s32 %s34, %s36
      %s38 = ssub.s32 %s32, %s37
      %s39 = ssub.s32 %s15, %s27
      %s40 = sor.u32 %s38, %s39
      %p41 = scmp.eq.s32.totalorder %s40, 0
      %s43 = sadd.s32 %s42, 1
      %s44 = scalar_select %p41, %s42, %s43
      %p47 = pneg %p41
      %p48 = scmp.eq.s32.totalorder %s8, 1
      %p49 = por %p47, %p48
      %p50 = scmp.ne.s32.totalorder %s42, %s45
      %p51 = scmp.eq.s32.totalorder %s8, 0
      %p52 = por %p50, %p51
      %p53 = scmp.ne.s32.totalorder %s42, %s45
      %p54 = scmp.eq.s32.totalorder %s13, 1
      %p55 = por %p53, %p54
      %p56 = scmp.ne.s32.totalorder %s45, %s46
      %p57 = scmp.eq.s32.totalorder %s13, 0
      %p58 = por %p56, %p57
      %p59 = scmp.ne.s32.totalorder %s45, %s46
      %p60 = scmp.eq.s32.totalorder %s14, 1
      %p61 = por %p59, %p60
      %p63 = scmp.ne.s32.totalorder %s46, %s62
      %p64 = scmp.eq.s32.totalorder %s14, 0
      %p65 = por %p63, %p64
      %s66 = ssub.s32 %s15, %s27
      %p67 = scmp.eq.s32.totalorder %s66, 0
      %s69 = sadd.s32 %s68, 1
      %s70 = scalar_select %p67, %s68, %s69
      %p73 = pneg %p67
      %p74 = scmp.eq.s32.totalorder %s8, 1
      %p75 = por %p73, %p74
      %p76 = scmp.ne.s32.totalorder %s68, %s71
      %p77 = scmp.eq.s32.totalorder %s8, 0
      %p78 = por %p76, %p77
      %p79 = scmp.ne.s32.totalorder %s68, %s71
      %p80 = scmp.eq.s32.totalorder %s13, 1
      %p81 = por %p79, %p80
      %p82 = scmp.ne.s32.totalorder %s71, %s72
      %p83 = scmp.eq.s32.totalorder %s13, 0
      %p84 = por %p82, %p83
      %p85 = scmp.ne.s32.totalorder %s71, %s72
      %p86 = scmp.eq.s32.totalorder %s14, 1
      %p87 = por %p85, %p86
      %p89 = scmp.ne.s32.totalorder %s72, %s88
      %p90 = scmp.eq.s32.totalorder %s14, 0
      %p91 = por %p89, %p90
      %s92 = ssub.s32 0, %s16
      %s93 = smul.u32 %s15, %s92
      %s94 = ssub.s32 1, %s15
      %s95 = smul.u32 %s94, %s16
      %s96 = sadd.s32 %s93, %s95
      %s97 = ssub.s32 0, %s23
      %s98 = smul.u32 %s27, %s97
      %s99 = ssub.s32 1, %s27
      %s100 = smul.u32 %s99, %s23
      %s101 = sadd.s32 %s98, %s100
      %s102 = ssub.s32 %s15, %s27
      %s103 = ssub.s32 %s96, %s101
      %s104 = sor.u32 %s102, %s103
      %p105 = scmp.eq.s32.totalorder %s104, 0
      %s107 = sadd.s32 %s106, 1
      %s108 = scalar_select %p105, %s106, %s107
      %p111 = pneg %p105
      %p112 = scmp.eq.s32.totalorder %s8, 1
      %p113 = por %p111, %p112
      %p114 = scmp.ne.s32.totalorder %s106, %s109
      %p115 = scmp.eq.s32.totalorder %s8, 0
      %p116 = por %p114, %p115
      %p117 = scmp.ne.s32.totalorder %s106, %s109
      %p118 = scmp.eq.s32.totalorder %s13, 1
      %p119 = por %p117, %p118
      %p120 = scmp.ne.s32.totalorder %s109, %s110
      %p121 = scmp.eq.s32.totalorder %s13, 0
      %p122 = por %p120, %p121
      %p123 = scmp.ne.s32.totalorder %s109, %s110
      %p124 = scmp.eq.s32.totalorder %s14, 1
      %p125 = por %p123, %p124
      %p127 = scmp.ne.s32.totalorder %s110, %s126
      %p128 = scmp.eq.s32.totalorder %s14, 0
      %p129 = por %p127, %p128
      %p130 = scmp.le.s32.totalorder 1, %s8
      %p131 = scmp.lt.s32.totalorder %s8, 3
      %p132 = pnand %p130, %p131
      %p133 = pneg %p132
      // Predicated region
      $region9: #{lstm_model_forward.6} parent=5 // pred_check
        _
      $region10: #{lstm_model_forward.6} parent=5 // pred_check_branch
        %135 = sbr.rel (%p132) target = $region12
      $region11: #{lstm_model_forward.6} parent=5 // pred_region
        %s136 = ssub.s32 %s8, 1
      $region12: #{lstm_model_forward.6} parent=5 // pred_fallthru
        _
      %p137 = scmp.lt.s32.totalorder %s8, 2
      // Predicated region
      $region13: #{lstm_model_forward.6} parent=5 // pred_check
        %p138 = pneg %p137
      $region14: #{lstm_model_forward.6} parent=5 // pred_check_branch
        %140 = sbr.rel (%p138) target = $region16
      $region15: #{lstm_model_forward.6} parent=5 // pred_region
        // Predicated region
        $region17: #{lstm_model_forward.6} parent=15 // pred_check
          %p141 = pneg %p52
        $region18: #{lstm_model_forward.6} parent=15 // pred_check_branch
          %143 = sbr.rel (%p141) target = $region20
        $region19: #{lstm_model_forward.6} parent=15 // pred_region
          %s144 = sand.u32 %s42, 1
          %s145 = sand.u32 %s42, 1
          %s146 = smul.addr %s145, 64
          %s147 = scalar_lea.vmem [#allocation4], %s146
          %s148 = ssub.s32 0, %s16
          %s149 = smul.u32 %s15, %s148
          %s150 = ssub.s32 1, %s15
          %s151 = smul.u32 %s150, %s16
          %s152 = sadd.s32 %s149, %s151
          %s153 = smul.u32 8, %s152
          %s154 = smul.addr %s153, 2
          %s155 = sadd.s32 %s15, %s154
          %s156 = smul.addr %s155, 8
          %s157 = scalar_lea.vmem %s0, %s156
          // Predicated region
          $region21: #{lstm_model_forward.6} parent=19 // pred_check
            _
          $region22: #{lstm_model_forward.6} parent=19 // pred_check_branch
            %159 = sbr.rel (0) target = $region24
          $region23: #{lstm_model_forward.6} parent=19 // pred_region
            // Predicated region
            $region25: #{lstm_model_forward.6} parent=23 // pred_check
              _
            $region26: #{lstm_model_forward.6} parent=23 // pred_check_branch
              %161 = sbr.rel (0) target = $region28
            $region27: #{lstm_model_forward.6} parent=23 // pred_region
              // Predicated region
              $region40: #{lstm_model_forward.6} parent=27 // pred_check
                _
              $region41: #{lstm_model_forward.6} parent=27 // pred_check_branch
                %191 = sbr.rel (0) target = $region43
              $region42: #{lstm_model_forward.6} parent=27 // pred_region
                loop: start=0, step=1, limit=1
                $region44: #{lstm_model_forward.6} parent=42 // loop_pre_header
                  _
                $region45: #{lstm_model_forward.6} parent=42 // loop_header
                  %s193 = sphi 0, %s197
                  %p194 = scmp.ge.s32.totalorder %s193, 1
                  %s198 = sphi %s157, %s157
                  %s199 = sphi %s147, %s147
                $region46: #{lstm_model_forward.6} parent=42 // loop_header_branch
                  %196 = sbr.rel (%p194) target = $region50
                $region47: #{lstm_model_forward.6} parent=42 // loop_body
                  %v200 = vld [vmem:[%s198] sm:$0xff]
                  %201 = vst [vmem:[%s199] sm:$0xff] %v200
                  %v202 = vld [vmem:[%s198 + $0x10] sm:$0xff]
                  %203 = vst [vmem:[%s199 + $0x8] sm:$0xff] %v202
                  %v204 = vld [vmem:[%s198 + $0x20] sm:$0xff]
                  %205 = vst [vmem:[%s199 + $0x10] sm:$0xff] %v204
                  %v206 = vld [vmem:[%s198 + $0x30] sm:$0xff]
                  %207 = vst [vmem:[%s199 + $0x18] sm:$0xff] %v206
                  %v208 = vld [vmem:[%s198 + $0x40] sm:$0xff]
                  %209 = vst [vmem:[%s199 + $0x20] sm:$0xff] %v208
                  %v210 = vld [vmem:[%s198 + $0x50] sm:$0xff]
                  %211 = vst [vmem:[%s199 + $0x28] sm:$0xff] %v210
                  %v212 = vld [vmem:[%s198 + $0x60] sm:$0xff]
                  %213 = vst [vmem:[%s199 + $0x30] sm:$0xff] %v212
                  %v214 = vld [vmem:[%s198 + $0x70] sm:$0xff]
                  %215 = vst [vmem:[%s199 + $0x38] sm:$0xff] %v214
                $region48: #{lstm_model_forward.6} parent=42 // loop_footer
                  %s197 = sadd.s32 1, %s193
                $region49: #{lstm_model_forward.6} parent=42 // loop_footer_branch
                  %192 = sbr.rel target = $region45
                $region50: #{lstm_model_forward.6} parent=42 // loop_exit
                  _
              $region43: #{lstm_model_forward.6} parent=27 // pred_fallthru
                _
              // Predicated region
              $region51: #{lstm_model_forward.6} parent=27 // pred_check
                _
              $region52: #{lstm_model_forward.6} parent=27 // pred_check_branch
                %217 = sbr.rel target = $region54
              $region53: #{lstm_model_forward.6} parent=27 // pred_region
                _
              $region54: #{lstm_model_forward.6} parent=27 // pred_fallthru
                _
            $region28: #{lstm_model_forward.6} parent=23 // pred_fallthru
              _
            // Predicated region
            $region29: #{lstm_model_forward.6} parent=23 // pred_check
              _
            $region30: #{lstm_model_forward.6} parent=23 // pred_check_branch
              %163 = sbr.rel target = $region32
            $region31: #{lstm_model_forward.6} parent=23 // pred_region
              %s165 = ssub.s32 256, 1
              loop: start=0, step=1, limit=1
              $region33: #{lstm_model_forward.6} parent=31 // loop_pre_header
                _
              $region34: #{lstm_model_forward.6} parent=31 // loop_header
                %s167 = sphi 0, %s171
                %p168 = scmp.ge.s32.totalorder %s167, 1
                %s172 = sphi %s157, %s157
                %s173 = sphi %s147, %s147
              $region35: #{lstm_model_forward.6} parent=31 // loop_header_branch
                %170 = sbr.rel (%p168) target = $region39
              $region36: #{lstm_model_forward.6} parent=31 // loop_body
                %v174 = vld [vmem:[%s172] sm:%s165]
                %175 = vst [vmem:[%s173] sm:%s165] %v174
                %v176 = vld [vmem:[%s172 + $0x10] sm:%s165]
                %177 = vst [vmem:[%s173 + $0x8] sm:%s165] %v176
                %v178 = vld [vmem:[%s172 + $0x20] sm:%s165]
                %179 = vst [vmem:[%s173 + $0x10] sm:%s165] %v178
                %v180 = vld [vmem:[%s172 + $0x30] sm:%s165]
                %181 = vst [vmem:[%s173 + $0x18] sm:%s165] %v180
                %v182 = vld [vmem:[%s172 + $0x40] sm:%s165]
                %183 = vst [vmem:[%s173 + $0x20] sm:%s165] %v182
                %v184 = vld [vmem:[%s172 + $0x50] sm:%s165]
                %185 = vst [vmem:[%s173 + $0x28] sm:%s165] %v184
                %v186 = vld [vmem:[%s172 + $0x60] sm:%s165]
                %187 = vst [vmem:[%s173 + $0x30] sm:%s165] %v186
                %v188 = vld [vmem:[%s172 + $0x70] sm:%s165]
                %189 = vst [vmem:[%s173 + $0x38] sm:%s165] %v188
              $region37: #{lstm_model_forward.6} parent=31 // loop_footer
                %s171 = sadd.s32 1, %s167
              $region38: #{lstm_model_forward.6} parent=31 // loop_footer_branch
                %166 = sbr.rel target = $region34
              $region39: #{lstm_model_forward.6} parent=31 // loop_exit
                _
            $region32: #{lstm_model_forward.6} parent=23 // pred_fallthru
              _
          $region24: #{lstm_model_forward.6} parent=19 // pred_fallthru
            _
          %218 = vnop
        $region20: #{lstm_model_forward.6} parent=15 // pred_fallthru
          _
        // Predicated region
        $region55: #{lstm_model_forward.6} parent=15 // pred_check
          %p219 = pneg %p78
        $region56: #{lstm_model_forward.6} parent=15 // pred_check_branch
          %221 = sbr.rel (%p219) target = $region58
        $region57: #{lstm_model_forward.6} parent=15 // pred_region
          %p222 = scmp.lt.s32.totalorder %s15, 1
          %s223 = scalar_select %p222, %s15, 1
          %s224 = smul.addr %s223, 4
          %s225 = smul.addr %s224, 4
          %s226 = scalar_lea.vmem %s1, %s225
        $region58: #{lstm_model_forward.6} parent=15 // pred_fallthru
          _
      $region16: #{lstm_model_forward.6} parent=5 // pred_fallthru
        _
      %p227 = scmp.le.s32.totalorder 1, %s8
      %p228 = scmp.lt.s32.totalorder %s8, 3
      %p229 = pnand %p227, %p228
      %p230 = pneg %p229
      // Predicated region
      $region59: #{lstm_model_forward.6} parent=5 // pred_check
        _
      $region60: #{lstm_model_forward.6} parent=5 // pred_check_branch
        %232 = sbr.rel (%p229) target = $region62
      $region61: #{lstm_model_forward.6} parent=5 // pred_region
        %s233 = ssub.s32 %s8, 1
        %s234 = sand.u32 %s45, 1
        %s235 = sand.u32 %s45, 1
        %s236 = smul.addr %s235, 64
        %s237 = scalar_lea.vmem [#allocation4], %s236
        // Predicated region
        $region63: #{lstm_model_forward.6} parent=61 // pred_check
          %p238 = pneg %p58
        $region64: #{lstm_model_forward.6} parent=61 // pred_check_branch
          %240 = sbr.rel (%p238) target = $region66
        $region65: #{lstm_model_forward.6} parent=61 // pred_region
          _
        $region66: #{lstm_model_forward.6} parent=61 // pred_fallthru
          _
        %s241 = sand.u32 %s45, 1
        %s242 = sand.u32 %s45, 1
        %s243 = smul.addr %s242, 64
        %s244 = scalar_lea.vmem [#allocation4], %s243
        %p245 = pneg %p58
        %p246 = pneg %p55
        %p247 = scmp.lt.s32.totalorder %s17, 1
        %s248 = scalar_select %p247, %s17, 1
        %s249 = smul.addr %s248, 4
        %s250 = smul.addr %s249, 4
        %s251 = scalar_lea.vmem %s1, %s250
        %p252 = pneg %p84
        %p253 = pneg %p81
        %p254 = pneg %p122
        %p255 = pneg %p119
        %s256 = ssub.s32 0, %s18
        %s257 = smul.u32 %s17, %s256
        %s258 = ssub.s32 1, %s17
        %s259 = smul.u32 %s258, %s18
        %s260 = sadd.s32 %s257, %s259
        %s261 = smul.u32 8, %s260
        %p262 = scmp.lt.s32.totalorder %s17, 1
        %s263 = scalar_select %p262, %s17, 1
        %p264 = scmp.lt.s32.totalorder %s261, 7
        %s265 = scalar_select %p264, %s261, 7
        %s266 = smul.addr %s263, 8
        %s267 = sadd.s32 %s265, %s266
        %s268 = smul.addr %s267, 8
        %s269 = scalar_lea.vmem %s2, %s268
        %s270 = ssub.s32 0, %s18
        %s271 = smul.u32 %s17, %s270
        %s272 = ssub.s32 1, %s17
        %s273 = smul.u32 %s272, %s18
        %s274 = sadd.s32 %s271, %s273
        %s275 = smul.u32 8, %s274
        %p276 = scmp.lt.s32.totalorder %s17, 1
        %s277 = scalar_select %p276, %s17, 1
        %s278 = smul.addr %s277, 4
        %s279 = smul.addr %s278, 4
        %s280 = scalar_lea.vmem %s1, %s279
        %s281 = ssub.s32 0, %s18
        %s282 = smul.u32 %s17, %s281
        %s283 = ssub.s32 1, %s17
        %s284 = smul.u32 %s283, %s18
        %s285 = sadd.s32 %s282, %s284
        %s286 = smul.u32 8, %s285
        %p287 = scmp.lt.s32.totalorder %s17, 1
        %s288 = scalar_select %p287, %s17, 1
        %p289 = scmp.lt.s32.totalorder %s286, 7
        %s290 = scalar_select %p289, %s286, 7
        %s291 = smul.addr %s288, 8
        %s292 = sadd.s32 %s290, %s291
        %s293 = smul.addr %s292, 8
        %s294 = scalar_lea.vmem %s2, %s293
        %s295 = ssub.s32 0, %s18
        %s296 = smul.u32 %s17, %s295
        %s297 = ssub.s32 1, %s17
        %s298 = smul.u32 %s297, %s18
        %s299 = sadd.s32 %s296, %s298
        %s300 = smul.u32 8, %s299
        %p302 = scmp.eq.s32.totalorder %s18, 0
        // Predicated region
        $region67: #{lstm_model_forward.6} parent=61 // pred_check
          %p303 = pneg %p302
        $region68: #{lstm_model_forward.6} parent=61 // pred_check_branch
          %305 = sbr.rel (%p303) target = $region70
        $region69: #{lstm_model_forward.6} parent=61 // pred_region
          %vm306 = vcmask 261120
          %307 = vst.msk [vmem:[#allocation2] sm:$0xff] %vm306, 0.0
          %308 = vst.msk [vmem:[#allocation3] sm:$0xff] %vm306, 0.0
        $region70: #{lstm_model_forward.6} parent=61 // pred_fallthru
          _
        %v309 = vld [vmem:[%s280] sm:$0xf]
        %v310 = vld [vmem:[%s280 + $0x4] sm:$0xf]
        %v311 = vld [vmem:[%s280 + $0x8] sm:$0xf]
        %v312 = vld [vmem:[%s280 + $0xc] sm:$0xf]
        %v313 = vld [vmem:[#allocation2] sm:$0xff]
        %v314 = vld [vmem:[#allocation3] sm:$0xff]
        %s315 = smul.u32 %s17, 7
        %s316 = smul.u32 %s315, 8
        %s317 = scalar_lea.vmem %s237, %s316 [#allocation4]
        %v318 = vld [vmem:[%s317] sm:$0xff]
        %v319 = vpack.c.bf16 %v313, %v313
        %v324 = vunpack.c.l.b16 %v309
        %v325 = vunpack.c.l.b16 %v310
        %v326 = vunpack.c.l.b16 %v311
        %v327 = vunpack.c.l.b16 %v312
        %v328 = vpack.c.b16 %v325, %v324
        %v329 = vpack.c.b16 %v327, %v326
        %vm332 = vcmask 261120
        %v334 = vsel %vm332, %v319, 0
        %336 = vmatprep.subr.bf16.mxu0 0
        %337 = vmatpush1.bf16.msra.mxu0 0
        %338 = vmatprep.subr.bf16.mxu0 0
        %339 = vmatpush1.bf16.msra.mxu0 0
        %340 = vmatprep.subr.bf16.mxu0 0
        %341 = vmatpush1.bf16.msra.mxu0 0
        %342 = vmatprep.subr.bf16.mxu0 0
        %343 = vmatpush1.bf16.msra.mxu0 0
        %344 = vmatprep.subr.bf16.mxu0 0
        %345 = vmatpush1.bf16.msra.mxu0 0
        %346 = vmatprep.subr.bf16.mxu0 0
        %347 = vmatpush1.bf16.msra.mxu0 0
        %348 = vmatprep.subr.bf16.mxu0 0
        %349 = vmatpush1.bf16.msra.mxu0 %v329
        %350 = vmatprep.subr.bf16.mxu0 0
        %351 = vmatpush1.bf16.msra.mxu0 %v328
        %352 = vmatprep.subr.bf16.mxu0 0
        %353 = vmatpush2.bf16.msra.mxu0 0
        %354 = vmatprep.subr.bf16.mxu0 0
        %355 = vmatpush2.bf16.msra.mxu0 0
        %356 = vmatprep.subr.bf16.mxu0 0
        %357 = vmatpush2.bf16.msra.mxu0 0
        %358 = vmatprep.subr.bf16.mxu0 0
        %359 = vmatpush2.bf16.msra.mxu0 0
        %360 = vmatprep.subr.bf16.mxu0 0
        %361 = vmatpush2.bf16.msra.mxu0 0
        %362 = vmatprep.subr.bf16.mxu0 0
        %363 = vmatpush2.bf16.msra.mxu0 0
        %364 = vmatprep.subr.bf16.mxu0 0
        %365 = vmatpush2.bf16.msra.mxu0 0
        %366 = vmatprep.subr.bf16.mxu0 0
        %367 = vmatpush2.bf16.msra.mxu0 0
        %368 = vmatprep.mubr.bf16.mxu0 0
        %369 = vmatmul.mubr.bf16.gmra.mxu0 %v334
        %v370 = vpop.f32.mrf.mxu0
        %v371 = vadd.f32 0.0, %v370
        %v372 = vpop.f32.mrf.mxu0
        %v373 = vpop.f32.mrf.mxu0
        %v374 = vpop.f32.mrf.mxu0
        %375 = vdwg.mxu0
        %v376 = vadd.f32 %v318, %v371
        %v377 = vxor.u32 %v376, 2147483648
        %v378 = vmul.f32 %v377, 1.442695
        %v379 = vpow.pop %v378
        %v380 = vadd.f32 %v379, 1.0
        %v381 = vrcp.pop %v380
        %v382 = vmul.f32 1.0, %v381
        %v383 = vtanh.pop %v376
        %385 = vrot.lane.b32.xlu0 %v314, 32
        %v386 = vpop.permute.xlu0 %385
        %v388 = vmul.f32 %v382, %v386
        %390 = vrot.lane.b32.xlu0 %v383, 64
        %v391 = vpop.permute.xlu0 %390
        %v393 = vmul.f32 %v382, %v391
        %395 = vrot.lane.b32.xlu0 %v393, 32
        %v396 = vpop.permute.xlu0 %395
        %v398 = vadd.f32 %v388, %v396
        %v399 = vtanh.pop %v398
        %401 = vrot.lane.b32.xlu0 %v399, 64
        %v402 = vpop.permute.xlu0 %401
        %v404 = vmul.f32 %v382, %v402
        %406 = vrot.lane.b32.xlu0 %v404, 32
        %v407 = vpop.permute.xlu0 %406
        %s409 = scalar_lea.vmem %s294, %s316
        %410 = vst.msk [vmem:[%s409] sm:$0xff] %vm332, %v407
        %s411 = smul.u32 %s17, 6
        %s412 = ssub.s32 1, %s17
        %s413 = sadd.s32 %s411, %s412
        %s414 = smul.u32 %s413, 8
        %s415 = scalar_lea.vmem %s237, %s414 [#allocation4]
        %v416 = vld [vmem:[%s415] sm:$0xff]
        %v417 = vpack.c.bf16 %v404, %v404
        %419 = vrot.lane.b32.xlu0 %v417, 32
        %v420 = vpop.permute.xlu0 %419
        %v422 = vsel %vm332, %v420, 0
        %424 = vmatprep.subr.bf16.mxu0 0
        %425 = vmatpush1.bf16.msra.mxu0 0
        %426 = vmatprep.subr.bf16.mxu0 0
        %427 = vmatpush1.bf16.msra.mxu0 0
        %428 = vmatprep.subr.bf16.mxu0 0
        %429 = vmatpush1.bf16.msra.mxu0 0
        %430 = vmatprep.subr.bf16.mxu0 0
        %431 = vmatpush1.bf16.msra.mxu0 0
        %432 = vmatprep.subr.bf16.mxu0 0
        %433 = vmatpush1.bf16.msra.mxu0 0
        %434 = vmatprep.subr.bf16.mxu0 0
        %435 = vmatpush1.bf16.msra.mxu0 0
        %436 = vmatprep.subr.bf16.mxu0 0
        %437 = vmatpush1.bf16.msra.mxu0 %v329
        %438 = vmatprep.subr.bf16.mxu0 0
        %439 = vmatpush1.bf16.msra.mxu0 %v328
        %440 = vmatprep.subr.bf16.mxu0 0
        %441 = vmatpush2.bf16.msra.mxu0 0
        %442 = vmatprep.subr.bf16.mxu0 0
        %443 = vmatpush2.bf16.msra.mxu0 0
        %444 = vmatprep.subr.bf16.mxu0 0
        %445 = vmatpush2.bf16.msra.mxu0 0
        %446 = vmatprep.subr.bf16.mxu0 0
        %447 = vmatpush2.bf16.msra.mxu0 0
        %448 = vmatprep.subr.bf16.mxu0 0
        %449 = vmatpush2.bf16.msra.mxu0 0
        %450 = vmatprep.subr.bf16.mxu0 0
        %451 = vmatpush2.bf16.msra.mxu0 0
        %452 = vmatprep.subr.bf16.mxu0 0
        %453 = vmatpush2.bf16.msra.mxu0 0
        %454 = vmatprep.subr.bf16.mxu0 0
        %455 = vmatpush2.bf16.msra.mxu0 0
        %456 = vmatprep.mubr.bf16.mxu0 0
        %457 = vmatmul.mubr.bf16.gmra.mxu0 %v422
        %v458 = vpop.f32.mrf.mxu0
        %v459 = vadd.f32 0.0, %v458
        %v460 = vpop.f32.mrf.mxu0
        %v461 = vpop.f32.mrf.mxu0
        %v462 = vpop.f32.mrf.mxu0
        %463 = vdwg.mxu0
        %v464 = vadd.f32 %v416, %v459
        %v465 = vxor.u32 %v464, 2147483648
        %v466 = vmul.f32 %v465, 1.442695
        %v467 = vpow.pop %v466
        %v468 = vadd.f32 %v467, 1.0
        %v469 = vrcp.pop %v468
        %v470 = vmul.f32 1.0, %v469
        %v471 = vtanh.pop %v464
        %v472 = vmul.f32 %v470, %v398
        %474 = vrot.lane.b32.xlu0 %v471, 64
        %v475 = vpop.permute.xlu0 %474
        %v477 = vmul.f32 %v470, %v475
        %479 = vrot.lane.b32.xlu0 %v477, 32
        %v480 = vpop.permute.xlu0 %479
        %v482 = vadd.f32 %v472, %v480
        %v483 = vtanh.pop %v482
        %485 = vrot.lane.b32.xlu0 %v483, 64
        %v486 = vpop.permute.xlu0 %485
        %v488 = vmul.f32 %v470, %v486
        %490 = vrot.lane.b32.xlu0 %v488, 32
        %v491 = vpop.permute.xlu0 %490
        %s493 = scalar_lea.vmem %s294, %s414
        %494 = vst.msk [vmem:[%s493] sm:$0xff] %vm332, %v491
        %s495 = smul.u32 %s17, 5
        %s496 = smul.u32 %s412, 2
        %s497 = sadd.s32 %s495, %s496
        %s498 = smul.u32 %s497, 8
        %s499 = scalar_lea.vmem %s237, %s498 [#allocation4]
        %v500 = vld [vmem:[%s499] sm:$0xff]
        %v501 = vpack.c.bf16 %v488, %v488
        %503 = vrot.lane.b32.xlu0 %v501, 32
        %v504 = vpop.permute.xlu0 %503
        %v506 = vsel %vm332, %v504, 0
        %508 = vmatprep.subr.bf16.mxu0 0
        %509 = vmatpush1.bf16.msra.mxu0 0
        %510 = vmatprep.subr.bf16.mxu0 0
        %511 = vmatpush1.bf16.msra.mxu0 0
        %512 = vmatprep.subr.bf16.mxu0 0
        %513 = vmatpush1.bf16.msra.mxu0 0
        %514 = vmatprep.subr.bf16.mxu0 0
        %515 = vmatpush1.bf16.msra.mxu0 0
        %516 = vmatprep.subr.bf16.mxu0 0
        %517 = vmatpush1.bf16.msra.mxu0 0
        %518 = vmatprep.subr.bf16.mxu0 0
        %519 = vmatpush1.bf16.msra.mxu0 0
        %520 = vmatprep.subr.bf16.mxu0 0
        %521 = vmatpush1.bf16.msra.mxu0 %v329
        %522 = vmatprep.subr.bf16.mxu0 0
        %523 = vmatpush1.bf16.msra.mxu0 %v328
        %524 = vmatprep.subr.bf16.mxu0 0
        %525 = vmatpush2.bf16.msra.mxu0 0
        %526 = vmatprep.subr.bf16.mxu0 0
        %527 = vmatpush2.bf16.msra.mxu0 0
        %528 = vmatprep.subr.bf16.mxu0 0
        %529 = vmatpush2.bf16.msra.mxu0 0
        %530 = vmatprep.subr.bf16.mxu0 0
        %531 = vmatpush2.bf16.msra.mxu0 0
        %532 = vmatprep.subr.bf16.mxu0 0
        %533 = vmatpush2.bf16.msra.mxu0 0
        %534 = vmatprep.subr.bf16.mxu0 0
        %535 = vmatpush2.bf16.msra.mxu0 0
        %536 = vmatprep.subr.bf16.mxu0 0
        %537 = vmatpush2.bf16.msra.mxu0 0
        %538 = vmatprep.subr.bf16.mxu0 0
        %539 = vmatpush2.bf16.msra.mxu0 0
        %540 = vmatprep.mubr.bf16.mxu0 0
        %541 = vmatmul.mubr.bf16.gmra.mxu0 %v506
        %v542 = vpop.f32.mrf.mxu0
        %v543 = vadd.f32 0.0, %v542
        %v544 = vpop.f32.mrf.mxu0
        %v545 = vpop.f32.mrf.mxu0
        %v546 = vpop.f32.mrf.mxu0
        %547 = vdwg.mxu0
        %v548 = vadd.f32 %v500, %v543
        %v549 = vxor.u32 %v548, 2147483648
        %v550 = vmul.f32 %v549, 1.442695
        %v551 = vpow.pop %v550
        %v552 = vadd.f32 %v551, 1.0
        %v553 = vrcp.pop %v552
        %v554 = vmul.f32 1.0, %v553
        %v555 = vtanh.pop %v548
        %v556 = vmul.f32 %v554, %v482
        %558 = vrot.lane.b32.xlu0 %v555, 64
        %v559 = vpop.permute.xlu0 %558
        %v561 = vmul.f32 %v554, %v559
        %563 = vrot.lane.b32.xlu0 %v561, 32
        %v564 = vpop.permute.xlu0 %563
        %v566 = vadd.f32 %v556, %v564
        %v567 = vtanh.pop %v566
        %569 = vrot.lane.b32.xlu0 %v567, 64
        %v570 = vpop.permute.xlu0 %569
        %v572 = vmul.f32 %v554, %v570
        %574 = vrot.lane.b32.xlu0 %v572, 32
        %v575 = vpop.permute.xlu0 %574
        %s577 = scalar_lea.vmem %s294, %s498
        %578 = vst.msk [vmem:[%s577] sm:$0xff] %vm332, %v575
        %s579 = smul.u32 %s17, 4
        %s580 = smul.u32 %s412, 3
        %s581 = sadd.s32 %s579, %s580
        %s582 = smul.u32 %s581, 8
        %s583 = scalar_lea.vmem %s237, %s582 [#allocation4]
        %v584 = vld [vmem:[%s583] sm:$0xff]
        %v585 = vpack.c.bf16 %v572, %v572
        %587 = vrot.lane.b32.xlu0 %v585, 32
        %v588 = vpop.permute.xlu0 %587
        %v590 = vsel %vm332, %v588, 0
        %592 = vmatprep.subr.bf16.mxu0 0
        %593 = vmatpush1.bf16.msra.mxu0 0
        %594 = vmatprep.subr.bf16.mxu0 0
        %595 = vmatpush1.bf16.msra.mxu0 0
        %596 = vmatprep.subr.bf16.mxu0 0
        %597 = vmatpush1.bf16.msra.mxu0 0
        %598 = vmatprep.subr.bf16.mxu0 0
        %599 = vmatpush1.bf16.msra.mxu0 0
        %600 = vmatprep.subr.bf16.mxu0 0
        %601 = vmatpush1.bf16.msra.mxu0 0
        %602 = vmatprep.subr.bf16.mxu0 0
        %603 = vmatpush1.bf16.msra.mxu0 0
        %604 = vmatprep.subr.bf16.mxu0 0
        %605 = vmatpush1.bf16.msra.mxu0 %v329
        %606 = vmatprep.subr.bf16.mxu0 0
        %607 = vmatpush1.bf16.msra.mxu0 %v328
        %608 = vmatprep.subr.bf16.mxu0 0
        %609 = vmatpush2.bf16.msra.mxu0 0
        %610 = vmatprep.subr.bf16.mxu0 0
        %611 = vmatpush2.bf16.msra.mxu0 0
        %612 = vmatprep.subr.bf16.mxu0 0
        %613 = vmatpush2.bf16.msra.mxu0 0
        %614 = vmatprep.subr.bf16.mxu0 0
        %615 = vmatpush2.bf16.msra.mxu0 0
        %616 = vmatprep.subr.bf16.mxu0 0
        %617 = vmatpush2.bf16.msra.mxu0 0
        %618 = vmatprep.subr.bf16.mxu0 0
        %619 = vmatpush2.bf16.msra.mxu0 0
        %620 = vmatprep.subr.bf16.mxu0 0
        %621 = vmatpush2.bf16.msra.mxu0 0
        %622 = vmatprep.subr.bf16.mxu0 0
        %623 = vmatpush2.bf16.msra.mxu0 0
        %624 = vmatprep.mubr.bf16.mxu0 0
        %625 = vmatmul.mubr.bf16.gmra.mxu0 %v590
        %v626 = vpop.f32.mrf.mxu0
        %v627 = vadd.f32 0.0, %v626
        %v628 = vpop.f32.mrf.mxu0
        %v629 = vpop.f32.mrf.mxu0
        %v630 = vpop.f32.mrf.mxu0
        %631 = vdwg.mxu0
        %v632 = vadd.f32 %v584, %v627
        %v633 = vxor.u32 %v632, 2147483648
        %v634 = vmul.f32 %v633, 1.442695
        %v635 = vpow.pop %v634
        %v636 = vadd.f32 %v635, 1.0
        %v637 = vrcp.pop %v636
        %v638 = vmul.f32 1.0, %v637
        %v639 = vtanh.pop %v632
        %v640 = vmul.f32 %v638, %v566
        %642 = vrot.lane.b32.xlu0 %v639, 64
        %v643 = vpop.permute.xlu0 %642
        %v645 = vmul.f32 %v638, %v643
        %647 = vrot.lane.b32.xlu0 %v645, 32
        %v648 = vpop.permute.xlu0 %647
        %v650 = vadd.f32 %v640, %v648
        %v651 = vtanh.pop %v650
        %653 = vrot.lane.b32.xlu0 %v651, 64
        %v654 = vpop.permute.xlu0 %653
        %v656 = vmul.f32 %v638, %v654
        %658 = vrot.lane.b32.xlu0 %v656, 32
        %v659 = vpop.permute.xlu0 %658
        %s661 = scalar_lea.vmem %s294, %s582
        %662 = vst.msk [vmem:[%s661] sm:$0xff] %vm332, %v659
        %s663 = smul.u32 %s17, 3
        %s664 = smul.u32 %s412, 4
        %s665 = sadd.s32 %s663, %s664
        %s666 = smul.u32 %s665, 8
        %s667 = scalar_lea.vmem %s237, %s666 [#allocation4]
        %v668 = vld [vmem:[%s667] sm:$0xff]
        %v669 = vpack.c.bf16 %v656, %v656
        %671 = vrot.lane.b32.xlu0 %v669, 32
        %v672 = vpop.permute.xlu0 %671
        %v674 = vsel %vm332, %v672, 0
        %676 = vmatprep.subr.bf16.mxu0 0
        %677 = vmatpush1.bf16.msra.mxu0 0
        %678 = vmatprep.subr.bf16.mxu0 0
        %679 = vmatpush1.bf16.msra.mxu0 0
        %680 = vmatprep.subr.bf16.mxu0 0
        %681 = vmatpush1.bf16.msra.mxu0 0
        %682 = vmatprep.subr.bf16.mxu0 0
        %683 = vmatpush1.bf16.msra.mxu0 0
        %684 = vmatprep.subr.bf16.mxu0 0
        %685 = vmatpush1.bf16.msra.mxu0 0
        %686 = vmatprep.subr.bf16.mxu0 0
        %687 = vmatpush1.bf16.msra.mxu0 0
        %688 = vmatprep.subr.bf16.mxu0 0
        %689 = vmatpush1.bf16.msra.mxu0 %v329
        %690 = vmatprep.subr.bf16.mxu0 0
        %691 = vmatpush1.bf16.msra.mxu0 %v328
        %692 = vmatprep.subr.bf16.mxu0 0
        %693 = vmatpush2.bf16.msra.mxu0 0
        %694 = vmatprep.subr.bf16.mxu0 0
        %695 = vmatpush2.bf16.msra.mxu0 0
        %696 = vmatprep.subr.bf16.mxu0 0
        %697 = vmatpush2.bf16.msra.mxu0 0
        %698 = vmatprep.subr.bf16.mxu0 0
        %699 = vmatpush2.bf16.msra.mxu0 0
        %700 = vmatprep.subr.bf16.mxu0 0
        %701 = vmatpush2.bf16.msra.mxu0 0
        %702 = vmatprep.subr.bf16.mxu0 0
        %703 = vmatpush2.bf16.msra.mxu0 0
        %704 = vmatprep.subr.bf16.mxu0 0
        %705 = vmatpush2.bf16.msra.mxu0 0
        %706 = vmatprep.subr.bf16.mxu0 0
        %707 = vmatpush2.bf16.msra.mxu0 0
        %708 = vmatprep.mubr.bf16.mxu0 0
        %709 = vmatmul.mubr.bf16.gmra.mxu0 %v674
        %v710 = vpop.f32.mrf.mxu0
        %v711 = vadd.f32 0.0, %v710
        %v712 = vpop.f32.mrf.mxu0
        %v713 = vpop.f32.mrf.mxu0
        %v714 = vpop.f32.mrf.mxu0
        %715 = vdwg.mxu0
        %v716 = vadd.f32 %v668, %v711
        %v717 = vxor.u32 %v716, 2147483648
        %v718 = vmul.f32 %v717, 1.442695
        %v719 = vpow.pop %v718
        %v720 = vadd.f32 %v719, 1.0
        %v721 = vrcp.pop %v720
        %v722 = vmul.f32 1.0, %v721
        %v723 = vtanh.pop %v716
        %v724 = vmul.f32 %v722, %v650
        %726 = vrot.lane.b32.xlu0 %v723, 64
        %v727 = vpop.permute.xlu0 %726
        %v729 = vmul.f32 %v722, %v727
        %731 = vrot.lane.b32.xlu0 %v729, 32
        %v732 = vpop.permute.xlu0 %731
        %v734 = vadd.f32 %v724, %v732
        %v735 = vtanh.pop %v734
        %737 = vrot.lane.b32.xlu0 %v735, 64
        %v738 = vpop.permute.xlu0 %737
        %v740 = vmul.f32 %v722, %v738
        %742 = vrot.lane.b32.xlu0 %v740, 32
        %v743 = vpop.permute.xlu0 %742
        %s745 = scalar_lea.vmem %s294, %s666
        %746 = vst.msk [vmem:[%s745] sm:$0xff] %vm332, %v743
        %s747 = smul.u32 %s17, 2
        %s748 = smul.u32 %s412, 5
        %s749 = sadd.s32 %s747, %s748
        %s750 = smul.u32 %s749, 8
        %s751 = scalar_lea.vmem %s237, %s750 [#allocation4]
        %v752 = vld [vmem:[%s751] sm:$0xff]
        %v753 = vpack.c.bf16 %v740, %v740
        %755 = vrot.lane.b32.xlu0 %v753, 32
        %v756 = vpop.permute.xlu0 %755
        %v758 = vsel %vm332, %v756, 0
        %760 = vmatprep.subr.bf16.mxu0 0
        %761 = vmatpush1.bf16.msra.mxu0 0
        %762 = vmatprep.subr.bf16.mxu0 0
        %763 = vmatpush1.bf16.msra.mxu0 0
        %764 = vmatprep.subr.bf16.mxu0 0
        %765 = vmatpush1.bf16.msra.mxu0 0
        %766 = vmatprep.subr.bf16.mxu0 0
        %767 = vmatpush1.bf16.msra.mxu0 0
        %768 = vmatprep.subr.bf16.mxu0 0
        %769 = vmatpush1.bf16.msra.mxu0 0
        %770 = vmatprep.subr.bf16.mxu0 0
        %771 = vmatpush1.bf16.msra.mxu0 0
        %772 = vmatprep.subr.bf16.mxu0 0
        %773 = vmatpush1.bf16.msra.mxu0 %v329
        %774 = vmatprep.subr.bf16.mxu0 0
        %775 = vmatpush1.bf16.msra.mxu0 %v328
        %776 = vmatprep.subr.bf16.mxu0 0
        %777 = vmatpush2.bf16.msra.mxu0 0
        %778 = vmatprep.subr.bf16.mxu0 0
        %779 = vmatpush2.bf16.msra.mxu0 0
        %780 = vmatprep.subr.bf16.mxu0 0
        %781 = vmatpush2.bf16.msra.mxu0 0
        %782 = vmatprep.subr.bf16.mxu0 0
        %783 = vmatpush2.bf16.msra.mxu0 0
        %784 = vmatprep.subr.bf16.mxu0 0
        %785 = vmatpush2.bf16.msra.mxu0 0
        %786 = vmatprep.subr.bf16.mxu0 0
        %787 = vmatpush2.bf16.msra.mxu0 0
        %788 = vmatprep.subr.bf16.mxu0 0
        %789 = vmatpush2.bf16.msra.mxu0 0
        %790 = vmatprep.subr.bf16.mxu0 0
        %791 = vmatpush2.bf16.msra.mxu0 0
        %792 = vmatprep.mubr.bf16.mxu0 0
        %793 = vmatmul.mubr.bf16.gmra.mxu0 %v758
        %v794 = vpop.f32.mrf.mxu0
        %v795 = vadd.f32 0.0, %v794
        %v796 = vpop.f32.mrf.mxu0
        %v797 = vpop.f32.mrf.mxu0
        %v798 = vpop.f32.mrf.mxu0
        %799 = vdwg.mxu0
        %v800 = vadd.f32 %v752, %v795
        %v801 = vxor.u32 %v800, 2147483648
        %v802 = vmul.f32 %v801, 1.442695
        %v803 = vpow.pop %v802
        %v804 = vadd.f32 %v803, 1.0
        %v805 = vrcp.pop %v804
        %v806 = vmul.f32 1.0, %v805
        %v807 = vtanh.pop %v800
        %v808 = vmul.f32 %v806, %v734
        %810 = vrot.lane.b32.xlu0 %v807, 64
        %v811 = vpop.permute.xlu0 %810
        %v813 = vmul.f32 %v806, %v811
        %815 = vrot.lane.b32.xlu0 %v813, 32
        %v816 = vpop.permute.xlu0 %815
        %v818 = vadd.f32 %v808, %v816
        %v819 = vtanh.pop %v818
        %821 = vrot.lane.b32.xlu0 %v819, 64
        %v822 = vpop.permute.xlu0 %821
        %v824 = vmul.f32 %v806, %v822
        %826 = vrot.lane.b32.xlu0 %v824, 32
        %v827 = vpop.permute.xlu0 %826
        %s829 = scalar_lea.vmem %s294, %s750
        %830 = vst.msk [vmem:[%s829] sm:$0xff] %vm332, %v827
        %s831 = smul.u32 %s412, 6
        %s832 = sadd.s32 %s17, %s831
        %s833 = smul.u32 %s832, 8
        %s834 = scalar_lea.vmem %s237, %s833 [#allocation4]
        %v835 = vld [vmem:[%s834] sm:$0xff]
        %v836 = vpack.c.bf16 %v824, %v824
        %838 = vrot.lane.b32.xlu0 %v836, 32
        %v839 = vpop.permute.xlu0 %838
        %v841 = vsel %vm332, %v839, 0
        %843 = vmatprep.subr.bf16.mxu0 0
        %844 = vmatpush1.bf16.msra.mxu0 0
        %845 = vmatprep.subr.bf16.mxu0 0
        %846 = vmatpush1.bf16.msra.mxu0 0
        %847 = vmatprep.subr.bf16.mxu0 0
        %848 = vmatpush1.bf16.msra.mxu0 0
        %849 = vmatprep.subr.bf16.mxu0 0
        %850 = vmatpush1.bf16.msra.mxu0 0
        %851 = vmatprep.subr.bf16.mxu0 0
        %852 = vmatpush1.bf16.msra.mxu0 0
        %853 = vmatprep.subr.bf16.mxu0 0
        %854 = vmatpush1.bf16.msra.mxu0 0
        %855 = vmatprep.subr.bf16.mxu0 0
        %856 = vmatpush1.bf16.msra.mxu0 %v329
        %857 = vmatprep.subr.bf16.mxu0 0
        %858 = vmatpush1.bf16.msra.mxu0 %v328
        %859 = vmatprep.subr.bf16.mxu0 0
        %860 = vmatpush2.bf16.msra.mxu0 0
        %861 = vmatprep.subr.bf16.mxu0 0
        %862 = vmatpush2.bf16.msra.mxu0 0
        %863 = vmatprep.subr.bf16.mxu0 0
        %864 = vmatpush2.bf16.msra.mxu0 0
        %865 = vmatprep.subr.bf16.mxu0 0
        %866 = vmatpush2.bf16.msra.mxu0 0
        %867 = vmatprep.subr.bf16.mxu0 0
        %868 = vmatpush2.bf16.msra.mxu0 0
        %869 = vmatprep.subr.bf16.mxu0 0
        %870 = vmatpush2.bf16.msra.mxu0 0
        %871 = vmatprep.subr.bf16.mxu0 0
        %872 = vmatpush2.bf16.msra.mxu0 0
        %873 = vmatprep.subr.bf16.mxu0 0
        %874 = vmatpush2.bf16.msra.mxu0 0
        %875 = vmatprep.mubr.bf16.mxu0 0
        %876 = vmatmul.mubr.bf16.gmra.mxu0 %v841
        %v877 = vpop.f32.mrf.mxu0
        %v878 = vadd.f32 0.0, %v877
        %v879 = vpop.f32.mrf.mxu0
        %v880 = vpop.f32.mrf.mxu0
        %v881 = vpop.f32.mrf.mxu0
        %882 = vdwg.mxu0
        %v883 = vadd.f32 %v835, %v878
        %v884 = vxor.u32 %v883, 2147483648
        %v885 = vmul.f32 %v884, 1.442695
        %v886 = vpow.pop %v885
        %v887 = vadd.f32 %v886, 1.0
        %v888 = vrcp.pop %v887
        %v889 = vmul.f32 1.0, %v888
        %v890 = vtanh.pop %v883
        %v891 = vmul.f32 %v889, %v818
        %893 = vrot.lane.b32.xlu0 %v890, 64
        %v894 = vpop.permute.xlu0 %893
        %v896 = vmul.f32 %v889, %v894
        %898 = vrot.lane.b32.xlu0 %v896, 32
        %v899 = vpop.permute.xlu0 %898
        %v901 = vadd.f32 %v891, %v899
        %v902 = vtanh.pop %v901
        %904 = vrot.lane.b32.xlu0 %v902, 64
        %v905 = vpop.permute.xlu0 %904
        %v907 = vmul.f32 %v889, %v905
        %909 = vrot.lane.b32.xlu0 %v907, 32
        %v910 = vpop.permute.xlu0 %909
        %s912 = scalar_lea.vmem %s294, %s833
        %913 = vst.msk [vmem:[%s912] sm:$0xff] %vm332, %v910
        %s914 = smul.u32 %s412, 7
        %s915 = smul.u32 %s914, 8
        %s916 = scalar_lea.vmem %s237, %s915 [#allocation4]
        %v917 = vld [vmem:[%s916] sm:$0xff]
        %v918 = vpack.c.bf16 %v907, %v907
        %920 = vrot.lane.b32.xlu0 %v918, 32
        %v921 = vpop.permute.xlu0 %920
        %v923 = vsel %vm332, %v921, 0
        %925 = vmatprep.subr.bf16.mxu0 0
        %926 = vmatpush1.bf16.msra.mxu0 0
        %927 = vmatprep.subr.bf16.mxu0 0
        %928 = vmatpush1.bf16.msra.mxu0 0
        %929 = vmatprep.subr.bf16.mxu0 0
        %930 = vmatpush1.bf16.msra.mxu0 0
        %931 = vmatprep.subr.bf16.mxu0 0
        %932 = vmatpush1.bf16.msra.mxu0 0
        %933 = vmatprep.subr.bf16.mxu0 0
        %934 = vmatpush1.bf16.msra.mxu0 0
        %935 = vmatprep.subr.bf16.mxu0 0
        %936 = vmatpush1.bf16.msra.mxu0 0
        %937 = vmatprep.subr.bf16.mxu0 0
        %938 = vmatpush1.bf16.msra.mxu0 %v329
        %939 = vmatprep.subr.bf16.mxu0 0
        %940 = vmatpush1.bf16.msra.mxu0 %v328
        %941 = vmatprep.subr.bf16.mxu0 0
        %942 = vmatpush2.bf16.msra.mxu0 0
        %943 = vmatprep.subr.bf16.mxu0 0
        %944 = vmatpush2.bf16.msra.mxu0 0
        %945 = vmatprep.subr.bf16.mxu0 0
        %946 = vmatpush2.bf16.msra.mxu0 0
        %947 = vmatprep.subr.bf16.mxu0 0
        %948 = vmatpush2.bf16.msra.mxu0 0
        %949 = vmatprep.subr.bf16.mxu0 0
        %950 = vmatpush2.bf16.msra.mxu0 0
        %951 = vmatprep.subr.bf16.mxu0 0
        %952 = vmatpush2.bf16.msra.mxu0 0
        %953 = vmatprep.subr.bf16.mxu0 0
        %954 = vmatpush2.bf16.msra.mxu0 0
        %955 = vmatprep.subr.bf16.mxu0 0
        %956 = vmatpush2.bf16.msra.mxu0 0
        %957 = vmatprep.mubr.bf16.mxu0 0
        %958 = vmatmul.mubr.bf16.gmra.mxu0 %v923
        %v959 = vpop.f32.mrf.mxu0
        %v960 = vadd.f32 0.0, %v959
        %v961 = vpop.f32.mrf.mxu0
        %v962 = vpop.f32.mrf.mxu0
        %v963 = vpop.f32.mrf.mxu0
        %964 = vdwg.mxu0
        %v965 = vadd.f32 %v917, %v960
        %v966 = vxor.u32 %v965, 2147483648
        %v967 = vmul.f32 %v966, 1.442695
        %v968 = vpow.pop %v967
        %v969 = vadd.f32 %v968, 1.0
        %v970 = vrcp.pop %v969
        %v971 = vmul.f32 1.0, %v970
        %v972 = vtanh.pop %v965
        %v973 = vmul.f32 %v971, %v901
        %975 = vrot.lane.b32.xlu0 %v972, 64
        %v976 = vpop.permute.xlu0 %975
        %v978 = vmul.f32 %v971, %v976
        %980 = vrot.lane.b32.xlu0 %v978, 32
        %v981 = vpop.permute.xlu0 %980
        %v983 = vadd.f32 %v973, %v981
        %v984 = vtanh.pop %v983
        %986 = vrot.lane.b32.xlu0 %v984, 64
        %v987 = vpop.permute.xlu0 %986
        %v989 = vmul.f32 %v971, %v987
        %991 = vrot.lane.b32.xlu0 %v989, 32
        %v992 = vpop.permute.xlu0 %991
        %s994 = scalar_lea.vmem %s294, %s915
        %995 = vst.msk [vmem:[%s994] sm:$0xff] %vm332, %v992
        %996 = vst.msk [vmem:[#allocation2] sm:$0xff] %vm332, %v992
        %998 = vrot.lane.b32.xlu0 %v983, 96
        %v999 = vpop.permute.xlu0 %998
        %1001 = vst.msk [vmem:[#allocation3] sm:$0xff] %vm332, %v999
        %s1002 = ssub.s32 0, %s18
        %s1003 = smul.u32 %s17, %s1002
        %s1004 = ssub.s32 1, %s17
        %s1005 = smul.u32 %s1004, %s18
        %s1006 = sadd.s32 %s1003, %s1005
        %s1007 = smul.u32 8, %s1006
        %p1008 = scmp.lt.s32.totalorder %s17, 1
        %s1009 = scalar_select %p1008, %s17, 1
        %p1010 = scmp.lt.s32.totalorder %s1007, 7
        %s1011 = scalar_select %p1010, %s1007, 7
        %s1012 = smul.addr %s1009, 8
        %s1013 = sadd.s32 %s1011, %s1012
        %s1014 = smul.addr %s1013, 8
        %s1015 = scalar_lea.vmem %s2, %s1014
        // Predicated region
        $region71: #{lstm_model_forward.6} parent=61 // pred_check
          %p1016 = pneg %p119
        $region72: #{lstm_model_forward.6} parent=61 // pred_check_branch
          %1018 = sbr.rel (%p1016) target = $region74
        $region73: #{lstm_model_forward.6} parent=61 // pred_region
          %s1019 = ssub.s32 0, %s18
          %s1020 = smul.u32 %s17, %s1019
          %s1021 = ssub.s32 1, %s17
          %s1022 = smul.u32 %s1021, %s18
          %s1023 = sadd.s32 %s1020, %s1022
          %s1024 = smul.u32 8, %s1023
        $region74: #{lstm_model_forward.6} parent=61 // pred_fallthru
          _
      $region62: #{lstm_model_forward.6} parent=5 // pred_fallthru
        _
      %p1025 = scmp.le.s32.totalorder 2, %s8
      // Predicated region
      $region75: #{lstm_model_forward.6} parent=5 // pred_check
        %p1026 = pneg %p1025
      $region76: #{lstm_model_forward.6} parent=5 // pred_check_branch
        %1028 = sbr.rel (%p1026) target = $region78
      $region77: #{lstm_model_forward.6} parent=5 // pred_region
        %s1029 = ssub.s32 %s8, 2
        // Predicated region
        $region79: #{lstm_model_forward.6} parent=77 // pred_check
          %p1030 = pneg %p125
        $region80: #{lstm_model_forward.6} parent=77 // pred_check_branch
          %1032 = sbr.rel (%p1030) target = $region82
        $region81: #{lstm_model_forward.6} parent=77 // pred_region
          %s1033 = ssub.s32 0, %s20
          %s1034 = smul.u32 %s19, %s1033
          %s1035 = ssub.s32 1, %s19
          %s1036 = smul.u32 %s1035, %s20
          %s1037 = sadd.s32 %s1034, %s1036
          %s1038 = smul.u32 8, %s1037
          %p1039 = scmp.lt.s32.totalorder %s19, 1
          %s1040 = scalar_select %p1039, %s19, 1
          %p1041 = scmp.lt.s32.totalorder %s1038, 7
          %s1042 = scalar_select %p1041, %s1038, 7
          %s1043 = smul.addr %s1040, 8
          %s1044 = sadd.s32 %s1042, %s1043
          %s1045 = smul.addr %s1044, 8
          %s1046 = scalar_lea.vmem %s2, %s1045
        $region82: #{lstm_model_forward.6} parent=77 // pred_fallthru
          _
      $region78: #{lstm_model_forward.6} parent=5 // pred_fallthru
        _
    $region6: #{lstm_model_forward.6} parent=1 // loop_footer
      %s12 = sadd.s32 1, %s8
    $region7: #{lstm_model_forward.6} parent=1 // loop_footer_branch
      %7 = sbr.rel target = $region3
    $region8: #{lstm_model_forward.6} parent=1 // loop_exit
      _

// kernel: lstm_model_forward.9
$region0: #{lstm_model_forward.9}
  #allocation0 [shape = 'u32[]', space=smem, size = 0x4, offset = 0x4, fixed_abs, tag = 'smem constant byte address 0x4 - core index']
  #allocation1 [shape = 'u32[144,128]{1,0:T(1,128)}', space=vmem, size = 0x12000, scoped, tag = 'internal scratch']
  #allocation2 [shape = 'f32[1,1]{1,0:T(1,128)S(1)}', space=vmem, size = 0x200, scoped, tag = 'scoped memory for lstm_model_forward.9']
  %s0 = inlined_call_operand.vmem [shape: f32[2,8,8,32], index: 0, kind: input, shape index: {}]
  %s1 = inlined_call_operand.vmem [shape: bf16[32,32], index: 1, kind: input, shape index: {}]
  %s2 = inlined_call_operand.vmem [shape: bf16[32,32], index: 2, kind: input, shape index: {}]
  %s3 = inlined_call_operand.vmem [shape: f32[1,32], index: 3, kind: input, shape index: {}]
  %s4 = inlined_call_operand.vmem [shape: f32[1,32], index: 4, kind: input, shape index: {}]
  %s5 = inlined_call_operand.<no memory space> [shape: f32[1,1], index: 5, kind: input, shape index: {}]
  %s6 = inlined_call_operand.vmem [shape: bf16[32,128], index: 6, kind: input, shape index: {}]
  %s7 = inlined_call_operand.vmem [shape: bf16[32,128], index: 7, kind: input, shape index: {}]
  %s8 = inlined_call_operand.vmem [shape: f32[1,128], index: 8, kind: input, shape index: {}]
  %s9 = inlined_call_operand.vmem [shape: f32[1,128], index: 9, kind: input, shape index: {}]
  %s10 = inlined_call_operand.vmem [shape: f32[1,128], index: 10, kind: input, shape index: {}]
  %s11 = inlined_call_operand.vmem [shape: f32[1,128], index: 11, kind: input, shape index: {}]
  %s12 = inlined_call_operand.vmem [shape: f32[1,128], index: 12, kind: input, shape index: {}]
  %s13 = inlined_call_operand.vmem [shape: bf16[128,3], index: 13, kind: input, shape index: {}]
  %s14 = inlined_call_operand.vmem [shape: f32[1,3], index: 14, kind: input, shape index: {}]
  %s15 = inlined_call_operand.vmem [shape: f32[8,3], index: 15, kind: output, shape index: {}]
  %s16 = sld [smem:[#allocation0]]
  $region70: #{lstm_model_forward.9} parent=0
    _
  %s18 = ssub.s32 1, %s16
  %s19 = scalar_select 0, %s18, %s16
  %v20 = vstv %s5
  %21 = vst [vmem:[#allocation2] sm:$0x1] %v20
  // Predicated region
  $region2: #{lstm_model_forward.9} parent=0 // pred_check
    _
  $region3: #{lstm_model_forward.9} parent=0 // pred_check_branch
    %23 = sbr.rel (0) target = $region5
  $region4: #{lstm_model_forward.9} parent=0 // pred_region
    _
  $region5: #{lstm_model_forward.9} parent=0 // pred_fallthru
    _
  // Predicated region
  $region6: #{lstm_model_forward.9} parent=0 // pred_check
    _
  $region7: #{lstm_model_forward.9} parent=0 // pred_check_branch
    %25 = sbr.rel (0) target = $region9
  $region8: #{lstm_model_forward.9} parent=0 // pred_region
    _
  $region9: #{lstm_model_forward.9} parent=0 // pred_fallthru
    _
  // Predicated region
  $region10: #{lstm_model_forward.9} parent=0 // pred_check
    _
  $region11: #{lstm_model_forward.9} parent=0 // pred_check_branch
    %27 = sbr.rel (0) target = $region13
  $region12: #{lstm_model_forward.9} parent=0 // pred_region
    _
  $region13: #{lstm_model_forward.9} parent=0 // pred_fallthru
    _
  // Predicated region
  $region14: #{lstm_model_forward.9} parent=0 // pred_check
    _
  $region15: #{lstm_model_forward.9} parent=0 // pred_check_branch
    %29 = sbr.rel (0) target = $region17
  $region16: #{lstm_model_forward.9} parent=0 // pred_region
    _
  $region17: #{lstm_model_forward.9} parent=0 // pred_fallthru
    _
  // Predicated region
  $region18: #{lstm_model_forward.9} parent=0 // pred_check
    _
  $region19: #{lstm_model_forward.9} parent=0 // pred_check_branch
    %31 = sbr.rel (0) target = $region21
  $region20: #{lstm_model_forward.9} parent=0 // pred_region
    _
  $region21: #{lstm_model_forward.9} parent=0 // pred_fallthru
    _
  // Predicated region
  $region22: #{lstm_model_forward.9} parent=0 // pred_check
    _
  $region23: #{lstm_model_forward.9} parent=0 // pred_check_branch
    %33 = sbr.rel (0) target = $region25
  $region24: #{lstm_model_forward.9} parent=0 // pred_region
    _
  $region25: #{lstm_model_forward.9} parent=0 // pred_fallthru
    _
  // Predicated region
  $region26: #{lstm_model_forward.9} parent=0 // pred_check
    _
  $region27: #{lstm_model_forward.9} parent=0 // pred_check_branch
    %35 = sbr.rel (0) target = $region29
  $region28: #{lstm_model_forward.9} parent=0 // pred_region
    _
  $region29: #{lstm_model_forward.9} parent=0 // pred_fallthru
    _
  // Predicated region
  $region30: #{lstm_model_forward.9} parent=0 // pred_check
    _
  $region31: #{lstm_model_forward.9} parent=0 // pred_check_branch
    %37 = sbr.rel (0) target = $region33
  $region32: #{lstm_model_forward.9} parent=0 // pred_region
    _
  $region33: #{lstm_model_forward.9} parent=0 // pred_fallthru
    _
  // Predicated region
  $region34: #{lstm_model_forward.9} parent=0 // pred_check
    _
  $region35: #{lstm_model_forward.9} parent=0 // pred_check_branch
    %39 = sbr.rel (0) target = $region37
  $region36: #{lstm_model_forward.9} parent=0 // pred_region
    _
  $region37: #{lstm_model_forward.9} parent=0 // pred_fallthru
    _
  // Predicated region
  $region38: #{lstm_model_forward.9} parent=0 // pred_check
    _
  $region39: #{lstm_model_forward.9} parent=0 // pred_check_branch
    %41 = sbr.rel (0) target = $region41
  $region40: #{lstm_model_forward.9} parent=0 // pred_region
    _
  $region41: #{lstm_model_forward.9} parent=0 // pred_fallthru
    _
  // Predicated region
  $region42: #{lstm_model_forward.9} parent=0 // pred_check
    _
  $region43: #{lstm_model_forward.9} parent=0 // pred_check_branch
    %43 = sbr.rel (0) target = $region45
  $region44: #{lstm_model_forward.9} parent=0 // pred_region
    _
  $region45: #{lstm_model_forward.9} parent=0 // pred_fallthru
    _
  // Predicated region
  $region46: #{lstm_model_forward.9} parent=0 // pred_check
    _
  $region47: #{lstm_model_forward.9} parent=0 // pred_check_branch
    %45 = sbr.rel (0) target = $region49
  $region48: #{lstm_model_forward.9} parent=0 // pred_region
    _
  $region49: #{lstm_model_forward.9} parent=0 // pred_fallthru
    _
  // Predicated region
  $region50: #{lstm_model_forward.9} parent=0 // pred_check
    _
  $region51: #{lstm_model_forward.9} parent=0 // pred_check_branch
    %47 = sbr.rel (0) target = $region53
  $region52: #{lstm_model_forward.9} parent=0 // pred_region
    _
  $region53: #{lstm_model_forward.9} parent=0 // pred_fallthru
    _
  // Predicated region
  $region54: #{lstm_model_forward.9} parent=0 // pred_check
    _
  $region55: #{lstm_model_forward.9} parent=0 // pred_check_branch
    %49 = sbr.rel (0) target = $region57
  $region56: #{lstm_model_forward.9} parent=0 // pred_region
    _
  $region57: #{lstm_model_forward.9} parent=0 // pred_fallthru
    _
  // Predicated region
  $region58: #{lstm_model_forward.9} parent=0 // pred_check
    _
  $region59: #{lstm_model_forward.9} parent=0 // pred_check_branch
    %51 = sbr.rel (0) target = $region61
  $region60: #{lstm_model_forward.9} parent=0 // pred_region
    _
  $region61: #{lstm_model_forward.9} parent=0 // pred_fallthru
    _
  %v53 = vld [vmem:[%s0] sm:$0xff]
  %v54 = vld [vmem:[%s0 + $0x8] sm:$0xff]
  %v55 = vld [vmem:[%s0 + $0x10] sm:$0xff]
  %v56 = vld [vmem:[%s0 + $0x18] sm:$0xff]
  %v57 = vld [vmem:[%s0 + $0x20] sm:$0xff]
  %v58 = vld [vmem:[%s0 + $0x28] sm:$0xff]
  %v59 = vld [vmem:[%s0 + $0x30] sm:$0xff]
  %v60 = vld [vmem:[%s0 + $0x38] sm:$0xff]
  %s61 = scalar_lea.vmem %s0, 64
  %v62 = vld [vmem:[%s61] sm:$0xff]
  %v63 = vld [vmem:[%s61 + $0x8] sm:$0xff]
  %v64 = vld [vmem:[%s61 + $0x10] sm:$0xff]
  %v65 = vld [vmem:[%s61 + $0x18] sm:$0xff]
  %v66 = vld [vmem:[%s61 + $0x20] sm:$0xff]
  %v67 = vld [vmem:[%s61 + $0x28] sm:$0xff]
  %v68 = vld [vmem:[%s61 + $0x30] sm:$0xff]
  %v69 = vld [vmem:[%s61 + $0x38] sm:$0xff]
  %v70 = vpack.c.bf16 %v54, %v53
  %v71 = vpack.c.bf16 %v56, %v55
  %v72 = vpack.c.bf16 %v58, %v57
  %v73 = vpack.c.bf16 %v60, %v59
  %v74 = vld [vmem:[%s1] sm:$0xf]
  %v75 = vld [vmem:[%s1 + $0x4] sm:$0xf]
  %v76 = vld [vmem:[%s1 + $0x8] sm:$0xf]
  %v77 = vld [vmem:[%s1 + $0xc] sm:$0xf]
  %v78 = vpack.c.bf16 %v63, %v62
  %v79 = vpack.c.bf16 %v65, %v64
  %v80 = vpack.c.bf16 %v67, %v66
  %v81 = vpack.c.bf16 %v69, %v68
  %v82 = vld [vmem:[%s2] sm:$0xf]
  %v83 = vld [vmem:[%s2 + $0x4] sm:$0xf]
  %v84 = vld [vmem:[%s2 + $0x8] sm:$0xf]
  %v85 = vld [vmem:[%s2 + $0xc] sm:$0xf]
  %v90 = vunpack.c.l.b16 %v82
  %v91 = vunpack.c.l.b16 %v83
  %v92 = vunpack.c.l.b16 %v84
  %v93 = vunpack.c.l.b16 %v85
  %v94 = vpack.c.b16 %v91, %v90
  %v95 = vpack.c.b16 %v93, %v92
  %vm98 = vcmask 261120
  %v100 = vsel %vm98, %v78, 0
  %v103 = vsel %vm98, %v79, 0
  %v106 = vsel %vm98, %v80, 0
  %v109 = vsel %vm98, %v81, 0
  %111 = vmatprep.subr.bf16.mxu0 0
  %112 = vmatpush1.bf16.msra.mxu0 0
  %113 = vmatprep.subr.bf16.mxu0 0
  %114 = vmatpush1.bf16.msra.mxu0 0
  %115 = vmatprep.subr.bf16.mxu0 0
  %116 = vmatpush1.bf16.msra.mxu0 0
  %117 = vmatprep.subr.bf16.mxu0 0
  %118 = vmatpush1.bf16.msra.mxu0 0
  %119 = vmatprep.subr.bf16.mxu0 0
  %120 = vmatpush1.bf16.msra.mxu0 0
  %121 = vmatprep.subr.bf16.mxu0 0
  %122 = vmatpush1.bf16.msra.mxu0 0
  %123 = vmatprep.subr.bf16.mxu0 0
  %124 = vmatpush1.bf16.msra.mxu0 %v95
  %125 = vmatprep.subr.bf16.mxu0 0
  %126 = vmatpush1.bf16.msra.mxu0 %v94
  %127 = vmatprep.subr.bf16.mxu0 0
  %128 = vmatpush2.bf16.msra.mxu0 0
  %129 = vmatprep.subr.bf16.mxu0 0
  %130 = vmatpush2.bf16.msra.mxu0 0
  %131 = vmatprep.subr.bf16.mxu0 0
  %132 = vmatpush2.bf16.msra.mxu0 0
  %133 = vmatprep.subr.bf16.mxu0 0
  %134 = vmatpush2.bf16.msra.mxu0 0
  %135 = vmatprep.subr.bf16.mxu0 0
  %136 = vmatpush2.bf16.msra.mxu0 0
  %137 = vmatprep.subr.bf16.mxu0 0
  %138 = vmatpush2.bf16.msra.mxu0 0
  %139 = vmatprep.subr.bf16.mxu0 0
  %140 = vmatpush2.bf16.msra.mxu0 0
  %141 = vmatprep.subr.bf16.mxu0 0
  %142 = vmatpush2.bf16.msra.mxu0 0
  %143 = vmatprep.mubr.bf16.mxu0 0
  %144 = vmatmul.mubr.bf16.gmra.mxu0 %v100
  %v145 = vpop.f32.mrf.mxu0
  %v146 = vadd.f32 0.0, %v145
  %v147 = vpop.f32.mrf.mxu0
  %v148 = vpop.f32.mrf.mxu0
  %v149 = vadd.f32 0.0, %v148
  %v150 = vpop.f32.mrf.mxu0
  %151 = vmatprep.mubr.bf16.mxu0 0
  %152 = vmatmul.mubr.bf16.gmra.mxu0 %v103
  %v153 = vpop.f32.mrf.mxu0
  %v154 = vadd.f32 0.0, %v153
  %v155 = vpop.f32.mrf.mxu0
  %v156 = vpop.f32.mrf.mxu0
  %v157 = vadd.f32 0.0, %v156
  %v158 = vpop.f32.mrf.mxu0
  %159 = vmatprep.mubr.bf16.mxu0 0
  %160 = vmatmul.mubr.bf16.gmra.mxu0 %v106
  %v161 = vpop.f32.mrf.mxu0
  %v162 = vadd.f32 0.0, %v161
  %v163 = vpop.f32.mrf.mxu0
  %v164 = vpop.f32.mrf.mxu0
  %v165 = vadd.f32 0.0, %v164
  %v166 = vpop.f32.mrf.mxu0
  %167 = vmatprep.mubr.bf16.mxu0 0
  %168 = vmatmul.mubr.bf16.gmra.mxu0 %v109
  %v169 = vpop.f32.mrf.mxu0
  %v170 = vadd.f32 0.0, %v169
  %v171 = vpop.f32.mrf.mxu0
  %v172 = vpop.f32.mrf.mxu0
  %v173 = vadd.f32 0.0, %v172
  %v174 = vpop.f32.mrf.mxu0
  %175 = vdwg.mxu0
  %v180 = vunpack.c.l.b16 %v74
  %v181 = vunpack.c.l.b16 %v75
  %v182 = vunpack.c.l.b16 %v76
  %v183 = vunpack.c.l.b16 %v77
  %v184 = vpack.c.b16 %v181, %v180
  %v185 = vpack.c.b16 %v183, %v182
  %v189 = vsel %vm98, %v70, 0
  %v192 = vsel %vm98, %v71, 0
  %v195 = vsel %vm98, %v72, 0
  %v198 = vsel %vm98, %v73, 0
  %200 = vmatprep.subr.bf16.mxu0 0
  %201 = vmatpush1.bf16.msra.mxu0 0
  %202 = vmatprep.subr.bf16.mxu0 0
  %203 = vmatpush1.bf16.msra.mxu0 0
  %204 = vmatprep.subr.bf16.mxu0 0
  %205 = vmatpush1.bf16.msra.mxu0 0
  %206 = vmatprep.subr.bf16.mxu0 0
  %207 = vmatpush1.bf16.msra.mxu0 0
  %208 = vmatprep.subr.bf16.mxu0 0
  %209 = vmatpush1.bf16.msra.mxu0 0
  %210 = vmatprep.subr.bf16.mxu0 0
  %211 = vmatpush1.bf16.msra.mxu0 0
  %212 = vmatprep.subr.bf16.mxu0 0
  %213 = vmatpush1.bf16.msra.mxu0 %v185
  %214 = vmatprep.subr.bf16.mxu0 0
  %215 = vmatpush1.bf16.msra.mxu0 %v184
  %216 = vmatprep.subr.bf16.mxu0 0
  %217 = vmatpush2.bf16.msra.mxu0 0
  %218 = vmatprep.subr.bf16.mxu0 0
  %219 = vmatpush2.bf16.msra.mxu0 0
  %220 = vmatprep.subr.bf16.mxu0 0
  %221 = vmatpush2.bf16.msra.mxu0 0
  %222 = vmatprep.subr.bf16.mxu0 0
  %223 = vmatpush2.bf16.msra.mxu0 0
  %224 = vmatprep.subr.bf16.mxu0 0
  %225 = vmatpush2.bf16.msra.mxu0 0
  %226 = vmatprep.subr.bf16.mxu0 0
  %227 = vmatpush2.bf16.msra.mxu0 0
  %228 = vmatprep.subr.bf16.mxu0 0
  %229 = vmatpush2.bf16.msra.mxu0 0
  %230 = vmatprep.subr.bf16.mxu0 0
  %231 = vmatpush2.bf16.msra.mxu0 0
  %232 = vmatprep.mubr.bf16.mxu0 0
  %233 = vmatmul.mubr.bf16.gmra.mxu0 %v189
  %v234 = vpop.f32.mrf.mxu0
  %v235 = vadd.f32 %v146, %v234
  %v236 = vpop.f32.mrf.mxu0
  %v237 = vpop.f32.mrf.mxu0
  %v238 = vadd.f32 %v149, %v237
  %v239 = vpop.f32.mrf.mxu0
  %240 = vmatprep.mubr.bf16.mxu0 0
  %241 = vmatmul.mubr.bf16.gmra.mxu0 %v192
  %v242 = vpop.f32.mrf.mxu0
  %v243 = vadd.f32 %v154, %v242
  %v244 = vpop.f32.mrf.mxu0
  %v245 = vpop.f32.mrf.mxu0
  %v246 = vadd.f32 %v157, %v245
  %v247 = vpop.f32.mrf.mxu0
  %248 = vmatprep.mubr.bf16.mxu0 0
  %249 = vmatmul.mubr.bf16.gmra.mxu0 %v195
  %v250 = vpop.f32.mrf.mxu0
  %v251 = vadd.f32 %v162, %v250
  %v252 = vpop.f32.mrf.mxu0
  %v253 = vpop.f32.mrf.mxu0
  %v254 = vadd.f32 %v165, %v253
  %v255 = vpop.f32.mrf.mxu0
  %256 = vmatprep.mubr.bf16.mxu0 0
  %257 = vmatmul.mubr.bf16.gmra.mxu0 %v198
  %v258 = vpop.f32.mrf.mxu0
  %v259 = vadd.f32 %v170, %v258
  %v260 = vpop.f32.mrf.mxu0
  %v261 = vpop.f32.mrf.mxu0
  %v262 = vadd.f32 %v173, %v261
  %v263 = vpop.f32.mrf.mxu0
  %264 = vdwg.mxu0
  %v265 = vld [vmem:[%s3] sm:$0x1]
  %v267 = vlaneseq
  %v268 = vshrl.u32 %v267, 7
  %v269 = vsub.s32 0, %v268
  %v270 = vrot.slane %v265, %v269
  %v272 = vadd.f32 %v235, %v270
  %v273 = vadd.f32 %v238, %v270
  %v274 = vadd.f32 %v243, %v270
  %v275 = vadd.f32 %v246, %v270
  %v276 = vadd.f32 %v251, %v270
  %v277 = vadd.f32 %v254, %v270
  %v278 = vadd.f32 %v259, %v270
  %v279 = vadd.f32 %v262, %v270
  %v280 = vtanh.pop %v272
  %v281 = vtanh.pop %v273
  %v282 = vtanh.pop %v274
  %v283 = vtanh.pop %v275
  %v284 = vtanh.pop %v276
  %v285 = vtanh.pop %v277
  %v286 = vtanh.pop %v278
  %v287 = vtanh.pop %v279
  %v288 = vld [vmem:[%s4] sm:$0x1]
  %v290 = vlaneseq
  %v291 = vshrl.u32 %v290, 7
  %v292 = vsub.s32 0, %v291
  %v293 = vrot.slane %v288, %v292
  %v295 = vmul.f32 %v280, %v293
  %v296 = vmul.f32 %v281, %v293
  %v297 = vmul.f32 %v282, %v293
  %v298 = vmul.f32 %v283, %v293
  %v299 = vmul.f32 %v284, %v293
  %v300 = vmul.f32 %v285, %v293
  %v301 = vmul.f32 %v286, %v293
  %v302 = vmul.f32 %v287, %v293
  %v303 = vsel %vm98, %v295, 0.0
  %304 = vadd.xlane.f32.xlu0 %v303
  %v305 = vpop.xlane.xlu0 %304
  %v306 = vsel %vm98, %v296, 0.0
  %307 = vadd.xlane.f32.xlu0 %v306
  %v308 = vpop.xlane.xlu0 %307
  %v309 = vsel %vm98, %v297, 0.0
  %310 = vadd.xlane.f32.xlu0 %v309
  %v311 = vpop.xlane.xlu0 %310
  %v312 = vsel %vm98, %v298, 0.0
  %313 = vadd.xlane.f32.xlu0 %v312
  %v314 = vpop.xlane.xlu0 %313
  %v315 = vsel %vm98, %v299, 0.0
  %316 = vadd.xlane.f32.xlu0 %v315
  %v317 = vpop.xlane.xlu0 %316
  %v318 = vsel %vm98, %v300, 0.0
  %319 = vadd.xlane.f32.xlu0 %v318
  %v320 = vpop.xlane.xlu0 %319
  %v321 = vsel %vm98, %v301, 0.0
  %322 = vadd.xlane.f32.xlu0 %v321
  %v323 = vpop.xlane.xlu0 %322
  %v324 = vsel %vm98, %v302, 0.0
  %325 = vadd.xlane.f32.xlu0 %v324
  %v326 = vpop.xlane.xlu0 %325
  %v327 = vld [vmem:[#allocation2] sm:$0x1]
  %v329 = vlaneseq
  %v330 = vshrl.u32 %v329, 7
  %v331 = vsub.s32 0, %v330
  %v332 = vrot.slane %v327, %v331
  %v334 = vadd.f32 %v305, %v332
  %v335 = vadd.f32 %v308, %v332
  %v336 = vadd.f32 %v311, %v332
  %v337 = vadd.f32 %v314, %v332
  %v338 = vadd.f32 %v317, %v332
  %v339 = vadd.f32 %v320, %v332
  %v340 = vadd.f32 %v323, %v332
  %v341 = vadd.f32 %v326, %v332
  %vm342 = vcmask 7168
  %v343 = vsel %vm342, %v334, -inf
  %v344 = vsel %vm342, %v335, -inf
  %v345 = vsel %vm342, %v336, -inf
  %v346 = vsel %vm342, %v337, -inf
  %v347 = vsel %vm342, %v338, -inf
  %v348 = vmax.f32 %v343, %v347
  %v349 = vsel %vm342, %v339, -inf
  %v350 = vmax.f32 %v344, %v349
  %v351 = vsel %vm342, %v340, -inf
  %v352 = vmax.f32 %v345, %v351
  %v353 = vsel %vm342, %v341, -inf
  %v354 = vmax.f32 %v346, %v353
  %v355 = vmax.f32 %v348, %v350
  %v356 = vmax.f32 %v352, %v354
  %v357 = vmax.f32 %v355, %v356
  %v358 = vsub.f32 %v334, %v357
  %v359 = vsub.f32 %v335, %v357
  %v360 = vsub.f32 %v336, %v357
  %v361 = vsub.f32 %v337, %v357
  %v362 = vsub.f32 %v338, %v357
  %v363 = vsub.f32 %v339, %v357
  %v364 = vsub.f32 %v340, %v357
  %v365 = vsub.f32 %v341, %v357
  %v366 = vmul.f32 %v358, 1.442695
  %v367 = vpow.pop %v366
  %v368 = vmul.f32 %v359, 1.442695
  %v369 = vpow.pop %v368
  %v370 = vmul.f32 %v360, 1.442695
  %v371 = vpow.pop %v370
  %v372 = vmul.f32 %v361, 1.442695
  %v373 = vpow.pop %v372
  %v374 = vmul.f32 %v362, 1.442695
  %v375 = vpow.pop %v374
  %v376 = vmul.f32 %v363, 1.442695
  %v377 = vpow.pop %v376
  %v378 = vmul.f32 %v364, 1.442695
  %v379 = vpow.pop %v378
  %v380 = vmul.f32 %v365, 1.442695
  %v381 = vpow.pop %v380
  %v382 = vsel %vm342, %v367, 0.0
  %v383 = vsel %vm342, %v369, 0.0
  %v384 = vadd.f32 %v382, %v383
  %v385 = vsel %vm342, %v371, 0.0
  %v386 = vadd.f32 %v384, %v385
  %v387 = vsel %vm342, %v373, 0.0
  %v388 = vadd.f32 %v386, %v387
  %v389 = vsel %vm342, %v375, 0.0
  %v390 = vadd.f32 %v388, %v389
  %v391 = vsel %vm342, %v377, 0.0
  %v392 = vadd.f32 %v390, %v391
  %v393 = vsel %vm342, %v379, 0.0
  %v394 = vadd.f32 %v392, %v393
  %v395 = vsel %vm342, %v381, 0.0
  %v396 = vadd.f32 %v394, %v395
  %v397 = vrcp.pop %v396
  %v398 = vmul.f32 %v367, %v397
  %v399 = vmul.f32 %v369, %v397
  %v400 = vmul.f32 %v371, %v397
  %v401 = vmul.f32 %v373, %v397
  %v402 = vmul.f32 %v375, %v397
  %v403 = vmul.f32 %v377, %v397
  %v404 = vmul.f32 %v379, %v397
  %v405 = vmul.f32 %v381, %v397
  %407 = vset.pattern.permute.xlu0 0
  %408 = vperm.xlu0 %407, %v398
  %v409 = vpop.permute.xlu0 %408
  %412 = vset.pattern.permute.xlu0 0
  %413 = vperm.xlu0 %412, %v399
  %v414 = vpop.permute.xlu0 %413
  %417 = vset.pattern.permute.xlu0 0
  %418 = vperm.xlu0 %417, %v400
  %v419 = vpop.permute.xlu0 %418
  %422 = vset.pattern.permute.xlu0 0
  %423 = vperm.xlu0 %422, %v401
  %v424 = vpop.permute.xlu0 %423
  %427 = vset.pattern.permute.xlu0 0
  %428 = vperm.xlu0 %427, %v402
  %v429 = vpop.permute.xlu0 %428
  %432 = vset.pattern.permute.xlu0 0
  %433 = vperm.xlu0 %432, %v403
  %v434 = vpop.permute.xlu0 %433
  %437 = vset.pattern.permute.xlu0 0
  %438 = vperm.xlu0 %437, %v404
  %v439 = vpop.permute.xlu0 %438
  %442 = vset.pattern.permute.xlu0 0
  %443 = vperm.xlu0 %442, %v405
  %v444 = vpop.permute.xlu0 %443
  %v446 = vmul.f32 %v409, %v53
  %v447 = vmul.f32 %v414, %v54
  %v448 = vmul.f32 %v419, %v55
  %v449 = vmul.f32 %v424, %v56
  %v450 = vmul.f32 %v429, %v57
  %v451 = vmul.f32 %v434, %v58
  %v452 = vmul.f32 %v439, %v59
  %v453 = vmul.f32 %v444, %v60
  %v454 = vsel %vm98, %v446, 0.0
  %v455 = vsel %vm98, %v447, 0.0
  %v456 = vadd.f32 %v454, %v455
  %v457 = vsel %vm98, %v448, 0.0
  %v458 = vadd.f32 %v456, %v457
  %v459 = vsel %vm98, %v449, 0.0
  %v460 = vadd.f32 %v458, %v459
  %v461 = vsel %vm98, %v450, 0.0
  %v462 = vadd.f32 %v460, %v461
  %v463 = vsel %vm98, %v451, 0.0
  %v464 = vadd.f32 %v462, %v463
  %v465 = vsel %vm98, %v452, 0.0
  %v466 = vadd.f32 %v464, %v465
  %v467 = vsel %vm98, %v453, 0.0
  %v468 = vadd.f32 %v466, %v467
  %v469 = vmul.f32 %v409, %v62
  %v470 = vmul.f32 %v414, %v63
  %v471 = vmul.f32 %v419, %v64
  %v472 = vmul.f32 %v424, %v65
  %v473 = vmul.f32 %v429, %v66
  %v474 = vmul.f32 %v434, %v67
  %v475 = vmul.f32 %v439, %v68
  %v476 = vmul.f32 %v444, %v69
  %v477 = vsel %vm98, %v469, 0.0
  %v478 = vsel %vm98, %v470, 0.0
  %v479 = vadd.f32 %v477, %v478
  %v480 = vsel %vm98, %v471, 0.0
  %v481 = vadd.f32 %v479, %v480
  %v482 = vsel %vm98, %v472, 0.0
  %v483 = vadd.f32 %v481, %v482
  %v484 = vsel %vm98, %v473, 0.0
  %v485 = vadd.f32 %v483, %v484
  %v486 = vsel %vm98, %v474, 0.0
  %v487 = vadd.f32 %v485, %v486
  %v488 = vsel %vm98, %v475, 0.0
  %v489 = vadd.f32 %v487, %v488
  %v490 = vsel %vm98, %v476, 0.0
  %v491 = vadd.f32 %v489, %v490
  %v492 = vpack.c.bf16 %v468, %v468
  %v493 = vld [vmem:[%s6] sm:$0xf]
  %v494 = vld [vmem:[%s6 + $0x4] sm:$0xf]
  %v495 = vld [vmem:[%s6 + $0x8] sm:$0xf]
  %v496 = vld [vmem:[%s6 + $0xc] sm:$0xf]
  %v497 = vpack.c.bf16 %v491, %v491
  %v498 = vld [vmem:[%s7] sm:$0xf]
  %v499 = vld [vmem:[%s7 + $0x4] sm:$0xf]
  %v500 = vld [vmem:[%s7 + $0x8] sm:$0xf]
  %v501 = vld [vmem:[%s7 + $0xc] sm:$0xf]
  %v506 = vunpack.c.l.b16 %v498
  %v507 = vunpack.c.l.b16 %v499
  %v508 = vunpack.c.l.b16 %v500
  %v509 = vunpack.c.l.b16 %v501
  %v510 = vpack.c.b16 %v507, %v506
  %v511 = vpack.c.b16 %v509, %v508
  %v515 = vsel %vm98, %v497, 0
  %517 = vmatprep.subr.bf16.mxu0 0
  %518 = vmatpush1.bf16.msra.mxu0 0
  %519 = vmatprep.subr.bf16.mxu0 0
  %520 = vmatpush1.bf16.msra.mxu0 0
  %521 = vmatprep.subr.bf16.mxu0 0
  %522 = vmatpush1.bf16.msra.mxu0 0
  %523 = vmatprep.subr.bf16.mxu0 0
  %524 = vmatpush1.bf16.msra.mxu0 0
  %525 = vmatprep.subr.bf16.mxu0 0
  %526 = vmatpush1.bf16.msra.mxu0 0
  %527 = vmatprep.subr.bf16.mxu0 0
  %528 = vmatpush1.bf16.msra.mxu0 0
  %529 = vmatprep.subr.bf16.mxu0 0
  %530 = vmatpush1.bf16.msra.mxu0 %v511
  %531 = vmatprep.subr.bf16.mxu0 0
  %532 = vmatpush1.bf16.msra.mxu0 %v510
  %533 = vmatprep.subr.bf16.mxu0 0
  %534 = vmatpush2.bf16.msra.mxu0 0
  %535 = vmatprep.subr.bf16.mxu0 0
  %536 = vmatpush2.bf16.msra.mxu0 0
  %537 = vmatprep.subr.bf16.mxu0 0
  %538 = vmatpush2.bf16.msra.mxu0 0
  %539 = vmatprep.subr.bf16.mxu0 0
  %540 = vmatpush2.bf16.msra.mxu0 0
  %541 = vmatprep.subr.bf16.mxu0 0
  %542 = vmatpush2.bf16.msra.mxu0 0
  %543 = vmatprep.subr.bf16.mxu0 0
  %544 = vmatpush2.bf16.msra.mxu0 0
  %545 = vmatprep.subr.bf16.mxu0 0
  %546 = vmatpush2.bf16.msra.mxu0 0
  %547 = vmatprep.subr.bf16.mxu0 0
  %548 = vmatpush2.bf16.msra.mxu0 0
  %549 = vmatprep.mubr.bf16.mxu0 0
  %550 = vmatmul.mubr.bf16.gmra.mxu0 %v515
  %v551 = vpop.f32.mrf.mxu0
  %v552 = vadd.f32 0.0, %v551
  %v553 = vpop.f32.mrf.mxu0
  %v554 = vpop.f32.mrf.mxu0
  %v555 = vpop.f32.mrf.mxu0
  %556 = vdwg.mxu0
  %v561 = vunpack.c.l.b16 %v493
  %v562 = vunpack.c.l.b16 %v494
  %v563 = vunpack.c.l.b16 %v495
  %v564 = vunpack.c.l.b16 %v496
  %v565 = vpack.c.b16 %v562, %v561
  %v566 = vpack.c.b16 %v564, %v563
  %v570 = vsel %vm98, %v492, 0
  %572 = vmatprep.subr.bf16.mxu0 0
  %573 = vmatpush1.bf16.msra.mxu0 0
  %574 = vmatprep.subr.bf16.mxu0 0
  %575 = vmatpush1.bf16.msra.mxu0 0
  %576 = vmatprep.subr.bf16.mxu0 0
  %577 = vmatpush1.bf16.msra.mxu0 0
  %578 = vmatprep.subr.bf16.mxu0 0
  %579 = vmatpush1.bf16.msra.mxu0 0
  %580 = vmatprep.subr.bf16.mxu0 0
  %581 = vmatpush1.bf16.msra.mxu0 0
  %582 = vmatprep.subr.bf16.mxu0 0
  %583 = vmatpush1.bf16.msra.mxu0 0
  %584 = vmatprep.subr.bf16.mxu0 0
  %585 = vmatpush1.bf16.msra.mxu0 %v566
  %586 = vmatprep.subr.bf16.mxu0 0
  %587 = vmatpush1.bf16.msra.mxu0 %v565
  %588 = vmatprep.subr.bf16.mxu0 0
  %589 = vmatpush2.bf16.msra.mxu0 0
  %590 = vmatprep.subr.bf16.mxu0 0
  %591 = vmatpush2.bf16.msra.mxu0 0
  %592 = vmatprep.subr.bf16.mxu0 0
  %593 = vmatpush2.bf16.msra.mxu0 0
  %594 = vmatprep.subr.bf16.mxu0 0
  %595 = vmatpush2.bf16.msra.mxu0 0
  %596 = vmatprep.subr.bf16.mxu0 0
  %597 = vmatpush2.bf16.msra.mxu0 0
  %598 = vmatprep.subr.bf16.mxu0 0
  %599 = vmatpush2.bf16.msra.mxu0 0
  %600 = vmatprep.subr.bf16.mxu0 0
  %601 = vmatpush2.bf16.msra.mxu0 0
  %602 = vmatprep.subr.bf16.mxu0 0
  %603 = vmatpush2.bf16.msra.mxu0 0
  %604 = vmatprep.mubr.bf16.mxu0 0
  %605 = vmatmul.mubr.bf16.gmra.mxu0 %v570
  %v606 = vpop.f32.mrf.mxu0
  %v607 = vadd.f32 %v552, %v606
  %v608 = vpop.f32.mrf.mxu0
  %v609 = vpop.f32.mrf.mxu0
  %v610 = vpop.f32.mrf.mxu0
  %611 = vdwg.mxu0
  %v612 = vld [vmem:[%s8] sm:$0x1]
  %v614 = vlaneseq
  %v615 = vshrl.u32 %v614, 7
  %v616 = vsub.s32 0, %v615
  %v617 = vrot.slane %v612, %v616
  %v619 = vadd.f32 %v607, %v617
  %v620 = vld [vmem:[%s11] sm:$0x1]
  %v622 = vlaneseq
  %v623 = vshrl.u32 %v622, 7
  %v624 = vsub.s32 0, %v623
  %v625 = vrot.slane %v620, %v624
  %v627 = vsub.f32 %v619, %v625
  %v628 = vld [vmem:[%s12] sm:$0x1]
  %v629 = vadd.f32 %v628, 1e-05
  %v630 = vrsqrt.pop %v629
  %v632 = vlaneseq
  %v633 = vshrl.u32 %v632, 7
  %v634 = vsub.s32 0, %v633
  %v635 = vrot.slane %v630, %v634
  %v637 = vmul.f32 %v627, %v635
  %v638 = vld [vmem:[%s9] sm:$0x1]
  %v640 = vlaneseq
  %v641 = vshrl.u32 %v640, 7
  %v642 = vsub.s32 0, %v641
  %v643 = vrot.slane %v638, %v642
  %v645 = vmul.f32 %v637, %v643
  %v646 = vld [vmem:[%s10] sm:$0x1]
  %v648 = vlaneseq
  %v649 = vshrl.u32 %v648, 7
  %v650 = vsub.s32 0, %v649
  %v651 = vrot.slane %v646, %v650
  %v653 = vadd.f32 %v645, %v651
  %v654 = vmax.f32 %v653, 0.0
  %v655 = vpack.c.bf16 %v654, %v654
  %v656 = vld [vmem:[%s13] sm:$0xf]
  %v657 = vld [vmem:[%s13 + $0x4] sm:$0xf]
  %v658 = vld [vmem:[%s13 + $0x8] sm:$0xf]
  %v659 = vld [vmem:[%s13 + $0xc] sm:$0xf]
  %v660 = vld [vmem:[%s13 + $0x10] sm:$0xf]
  %v661 = vld [vmem:[%s13 + $0x14] sm:$0xf]
  %v662 = vld [vmem:[%s13 + $0x18] sm:$0xf]
  %v663 = vld [vmem:[%s13 + $0x1c] sm:$0xf]
  %v664 = vld [vmem:[%s13 + $0x20] sm:$0xf]
  %v665 = vld [vmem:[%s13 + $0x24] sm:$0xf]
  %v666 = vld [vmem:[%s13 + $0x28] sm:$0xf]
  %v667 = vld [vmem:[%s13 + $0x2c] sm:$0xf]
  %v668 = vld [vmem:[%s13 + $0x30] sm:$0xf]
  %v669 = vld [vmem:[%s13 + $0x34] sm:$0xf]
  %v670 = vld [vmem:[%s13 + $0x38] sm:$0xf]
  %v671 = vld [vmem:[%s13 + $0x3c] sm:$0xf]
  %v672 = vld [vmem:[%s14] sm:$0x1]
  %v674 = vlaneseq
  %v675 = vshrl.u32 %v674, 7
  %v676 = vsub.s32 0, %v675
  %v677 = vrot.slane %v672, %v676
  %v695 = vunpack.c.l.b16 %v656
  %v696 = vunpack.c.l.b16 %v657
  %v697 = vunpack.c.l.b16 %v658
  %v698 = vunpack.c.l.b16 %v659
  %v699 = vunpack.c.l.b16 %v660
  %v700 = vunpack.c.l.b16 %v661
  %v701 = vunpack.c.l.b16 %v662
  %v702 = vunpack.c.l.b16 %v663
  %v703 = vunpack.c.l.b16 %v664
  %v704 = vunpack.c.l.b16 %v665
  %v705 = vunpack.c.l.b16 %v666
  %v706 = vunpack.c.l.b16 %v667
  %v707 = vunpack.c.l.b16 %v668
  %v708 = vunpack.c.l.b16 %v669
  %v709 = vunpack.c.l.b16 %v670
  %v710 = vunpack.c.l.b16 %v671
  %v711 = vpack.c.b16 %v696, %v695
  %v712 = vpack.c.b16 %v698, %v697
  %v713 = vpack.c.b16 %v700, %v699
  %v714 = vpack.c.b16 %v702, %v701
  %v715 = vpack.c.b16 %v704, %v703
  %v716 = vpack.c.b16 %v706, %v705
  %v717 = vpack.c.b16 %v708, %v707
  %v718 = vpack.c.b16 %v710, %v709
  %727 = vmatprep.subr.bf16.mxu0 0
  %728 = vmatpush1.bf16.msra.mxu0 %v718
  %729 = vmatprep.subr.bf16.mxu0 0
  %730 = vmatpush1.bf16.msra.mxu0 %v717
  %731 = vmatprep.subr.bf16.mxu0 0
  %732 = vmatpush1.bf16.msra.mxu0 %v716
  %733 = vmatprep.subr.bf16.mxu0 0
  %734 = vmatpush1.bf16.msra.mxu0 %v715
  %735 = vmatprep.subr.bf16.mxu0 0
  %736 = vmatpush1.bf16.msra.mxu0 %v714
  %737 = vmatprep.subr.bf16.mxu0 0
  %738 = vmatpush1.bf16.msra.mxu0 %v713
  %739 = vmatprep.subr.bf16.mxu0 0
  %740 = vmatpush1.bf16.msra.mxu0 %v712
  %741 = vmatprep.subr.bf16.mxu0 0
  %742 = vmatpush1.bf16.msra.mxu0 %v711
  %743 = vmatprep.subr.bf16.mxu0 0
  %744 = vmatpush2.bf16.msra.mxu0 0
  %745 = vmatprep.subr.bf16.mxu0 0
  %746 = vmatpush2.bf16.msra.mxu0 0
  %747 = vmatprep.subr.bf16.mxu0 0
  %748 = vmatpush2.bf16.msra.mxu0 0
  %749 = vmatprep.subr.bf16.mxu0 0
  %750 = vmatpush2.bf16.msra.mxu0 0
  %751 = vmatprep.subr.bf16.mxu0 0
  %752 = vmatpush2.bf16.msra.mxu0 0
  %753 = vmatprep.subr.bf16.mxu0 0
  %754 = vmatpush2.bf16.msra.mxu0 0
  %755 = vmatprep.subr.bf16.mxu0 0
  %756 = vmatpush2.bf16.msra.mxu0 0
  %757 = vmatprep.subr.bf16.mxu0 0
  %758 = vmatpush2.bf16.msra.mxu0 0
  %759 = vmatprep.mubr.bf16.mxu0 0
  %760 = vmatmul.mubr.bf16.gmra.mxu0 %v655
  %v761 = vpop.f32.mrf.mxu0
  %v762 = vadd.f32 %v677, %v761
  %v763 = vpop.f32.mrf.mxu0
  %v764 = vpop.f32.mrf.mxu0
  %v765 = vpop.f32.mrf.mxu0
  %766 = vdwg.mxu0
  %vm767 = vcmask 23552
  %v768 = vsel %vm767, %v762, -inf
  %769 = vmax.xlane.f32.xlu0 %v768
  %v770 = vpop.xlane.xlu0 %769
  %v771 = vsub.f32 %v762, %v770
  %v772 = vmul.f32 %v771, 1.442695
  %v773 = vpow.pop %v772
  %v774 = vsel %vm767, %v773, 0.0
  %775 = vadd.xlane.f32.xlu0 %v774
  %v776 = vpop.xlane.xlu0 %775
  %v777 = vrcp.pop %v776
  %v778 = vmul.f32 %v773, %v777
  %779 = vst.msk [vmem:[%s15] sm:$0xff] %vm767, %v778
  // Predicated region
  $region62: #{lstm_model_forward.9} parent=0 // pred_check
    _
  $region63: #{lstm_model_forward.9} parent=0 // pred_check_branch
    %781 = sbr.rel (0) target = $region65
  $region64: #{lstm_model_forward.9} parent=0 // pred_region
    _
  $region65: #{lstm_model_forward.9} parent=0 // pred_fallthru
    _
  // Predicated region
  $region66: #{lstm_model_forward.9} parent=0 // pred_check
    _
  $region67: #{lstm_model_forward.9} parent=0 // pred_check_branch
    %783 = sbr.rel (0) target = $region69
  $region68: #{lstm_model_forward.9} parent=0 // pred_region
    _
  $region69: #{lstm_model_forward.9} parent=0 // pred_fallthru
    _

</llo_original>
